<compile_context>
chip_gen: v7x
topology: tpu7x:2x2x1
jax: 0.10.0
libtpu: 0.0.40
codegen_flags: <defaults>
</compile_context>

<pallas_src>
import functools

import jax
import jax.numpy as jnp
from jax.experimental import pallas as pl
from jax.experimental.pallas import tpu as pltpu

_VMEM_LIMIT = 64 * 1024 * 1024   # v5e/v6e: 128 MiB physical; v7x: 64 MiB/TC.
_PAD_MARGIN = 16                 # bf16 sublane-tile aligned left margin


# ----------------------------------------------------------------------------
# Fused 1x1-conv matmul:  out = [relu]( (x @ w_folded) + bias [+ residual] )
# ----------------------------------------------------------------------------
def _fused_mm_kernel_nk1(x_ref, w_ref, b_ref, *rest, relu, has_res):
    """Single-K-tile variant: result goes straight from the MXU to the store."""
    if has_res:
        res_ref, o_ref = rest
    else:
        (o_ref,) = rest
    y = jnp.dot(x_ref[...], w_ref[...], preferred_element_type=jnp.float32)
    y = y + b_ref[...]
    if has_res:
        y = y + res_ref[...].astype(jnp.float32)
    if relu:
        y = jnp.maximum(y, 0.0)
    o_ref[...] = y.astype(o_ref.dtype)


def _fused_mm_kernel(x_ref, w_ref, b_ref, *rest, relu, has_res):
    """K-tiled variant with an f32 VMEM accumulator (grid axis 1 = K)."""
    if has_res:
        res_ref, o_ref, acc_ref = rest
    else:
        o_ref, acc_ref = rest
    kidx = pl.program_id(1)

    @pl.when(kidx == 0)
    def _init():
        acc_ref[...] = jnp.zeros_like(acc_ref)

    acc_ref[...] += jnp.dot(x_ref[...], w_ref[...],
                            preferred_element_type=jnp.float32)

    @pl.when(kidx == pl.num_programs(1) - 1)
    def _finalize():
        y = acc_ref[...] + b_ref[...]
        if has_res:
            y = y + res_ref[...].astype(jnp.float32)
        if relu:
            y = jnp.maximum(y, 0.0)
        o_ref[...] = y.astype(o_ref.dtype)


def _pick_m_tile(m, tmax):
    """Largest legal M tile (avoids an HBM pad/slice pass when possible)."""
    if m <= tmax:
        return m, m
    t = (tmax // 8) * 8
    while t >= 8:
        if m % t == 0:
            return t, m
        t -= 8
    mp = ((m + tmax - 1) // tmax) * tmax      # rare fallback: pad
    return tmax, mp


def _pick_k_tile(k, tmax):
    if k <= tmax:
        return k
    if k % tmax == 0:
        return tmax
    t = (tmax // 128) * 128
    while t >= 128:
        if k % t == 0:
            return t
        t -= 128
    return k                                   # full-K block fallback


def fused_matmul_bn(x2d, w_folded, bias, residual=None, relu=True,
                    out_dtype=jnp.bfloat16, tm=512, tk=512,
                    alias_residual=False):
    """x2d: (M, K); w_folded: (K, N) with the BN scale pre-folded; bias: (N,)."""
    m, k = x2d.shape
    n = w_folded.shape[1]

    x_b = x2d.astype(jnp.bfloat16)
    w_b = w_folded.astype(jnp.bfloat16)
    b2 = bias.reshape(1, n).astype(jnp.float32)
    res_b = None if residual is None else residual.astype(jnp.bfloat16)

    tm_eff, mp = _pick_m_tile(m, tm)
    tk_eff = _pick_k_tile(k, tk)
    if mp != m:                                # rare fallback path
        x_b = jnp.pad(x_b, ((0, mp - m), (0, 0)))
        if res_b is not None:
            res_b = jnp.pad(res_b, ((0, mp - m), (0, 0)))

    nm, nk = mp // tm_eff, k // tk_eff
    has_res = res_b is not None

    io_aliases = {}
    if (has_res and alias_residual and mp == m
            and res_b.dtype == jnp.dtype(out_dtype)):
        io_aliases = {3: 0}                    # residual buffer -> output

    if nk == 1:
        in_specs = [
            pl.BlockSpec((tm_eff, k), lambda i: (i, 0)),
            pl.BlockSpec((k, n), lambda i: (0, 0)),
            pl.BlockSpec((1, n), lambda i: (0, 0)),
        ]
        args = [x_b, w_b, b2]
        if has_res:
            in_specs.append(pl.BlockSpec((tm_eff, n), lambda i: (i, 0)))
            args.append(res_b)
        kernel = functools.partial(_fused_mm_kernel_nk1, relu=relu,
                                   has_res=has_res)
        out = pl.pallas_call(
            kernel,
            out_shape=jax.ShapeDtypeStruct((mp, n), out_dtype),
            grid=(nm,),
            in_specs=in_specs,
            out_specs=pl.BlockSpec((tm_eff, n), lambda i: (i, 0)),
            input_output_aliases=io_aliases,
            compiler_params=pltpu.CompilerParams(
                dimension_semantics=("parallel",),
                vmem_limit_bytes=_VMEM_LIMIT),
        )(*args)
    else:
        in_specs = [
            pl.BlockSpec((tm_eff, tk_eff), lambda i, kk: (i, kk)),
            pl.BlockSpec((tk_eff, n), lambda i, kk: (kk, 0)),
            pl.BlockSpec((1, n), lambda i, kk: (0, 0)),
        ]
        args = [x_b, w_b, b2]
        if has_res:
            in_specs.append(pl.BlockSpec((tm_eff, n), lambda i, kk: (i, 0)))
            args.append(res_b)
        kernel = functools.partial(_fused_mm_kernel, relu=relu, has_res=has_res)
        out = pl.pallas_call(
            kernel,
            out_shape=jax.ShapeDtypeStruct((mp, n), out_dtype),
            grid=(nm, nk),
            in_specs=in_specs,
            out_specs=pl.BlockSpec((tm_eff, n), lambda i, kk: (i, 0)),
            scratch_shapes=[pltpu.VMEM((tm_eff, n), jnp.float32)],
            input_output_aliases=io_aliases,
            compiler_params=pltpu.CompilerParams(
                dimension_semantics=("parallel", "arbitrary"),
                vmem_limit_bytes=_VMEM_LIMIT),
        )(*args)
    return out if mp == m else out[:m]


# ----------------------------------------------------------------------------
# Fused kernel: conv1(1x1)+bn1+relu  ->  conv2(3x3,pad1)+bn2+relu  ->
#               avgpool(stride)      [+ kxk-pooled x for the downsample path]
# One grid step = one image.  The padded conv1 output lives in VMEM in a flat
# (row = h*Wp + w) layout so each of the 9 conv2 taps is a constant row shift,
# giving 9 accumulated matmuls with NO im2col tensor in HBM.
# ----------------------------------------------------------------------------
def _conv12_kernel(x_ref, w1_ref, b1_ref, w2_ref, b2_ref, *rest,
                   H, W, Wp, L, C, pool):
    if pool > 1:
        pwa_ref, pwx_ref, o_ref, px_ref, c1_ref, pad_ref, acc_ref = rest
    else:
        o_ref, c1_ref, pad_ref, acc_ref = rest

    # ---- conv1 (1x1) + bn1 bias + relu1, entirely in VMEM -------------------
    c1 = jnp.dot(x_ref[0], w1_ref[...], preferred_element_type=jnp.float32)
    c1_ref[...] = jnp.maximum(c1 + b1_ref[...], 0.0).astype(c1_ref.dtype)

    # ---- downsample-path pooled input (k x k mean of x) ---------------------
    if pool > 1:
        for hp in range(H // pool):
            base = hp * pool * W
            px = jnp.dot(pwx_ref[...], x_ref[0, base:base + pool * W, :],
                         preferred_element_type=jnp.float32)
            px_ref[0, hp] = px.astype(px_ref.dtype)

    # ---- build the zero-padded conv1 output (flat row = h*Wp + w layout) ----
    # Every row that conv2 can read is written exactly once below: the top pad
    # band, then per image row the data (at an aligned 16-row margin) plus the
    # trailing gap zeros, then the bottom pad band.
    zrow = lambda r: jnp.zeros((r, C), pad_ref.dtype)
    pad_ref[0:Wp + L, :] = zrow(Wp + L)                       # top pad band
    for h in range(H):
        dst = (h + 1) * Wp + L                                # sublane aligned
        pad_ref[dst:dst + W, :] = c1_ref[h * W:(h + 1) * W, :]
        pad_ref[dst + W:dst + Wp, :] = zrow(Wp - W)           # right/left pad
    bot = (H + 1) * Wp + L
    pad_rows = pad_ref.shape[0]
    pad_ref[bot:pad_rows, :] = zrow(pad_rows - bot)           # bottom pad band

    # ---- conv2 (3x3, pad 1): 9 shifted matmuls, f32 accumulation ------------
    for t in range(9):
        kh, kw = divmod(t, 3)
        s = kh * Wp + (L - 1) + kw
        part = jnp.dot(pad_ref[s:s + H * Wp, :],
                       w2_ref[t * C:(t + 1) * C, :],
                       preferred_element_type=jnp.float32)
        if t == 0:
            acc_ref[...] = part
        else:
            acc_ref[...] += part

    # ---- epilogue: bias + relu once, then k x k average pooling -------------
    # NOTE: acc rows with flat column index >= W hold cross-row garbage; they
    # are excluded by the zero columns of pwa_ref (pool>1) or never read
    # (pool==1).  Keep this invariant if the read pattern is ever changed.
    acc_ref[...] = jnp.maximum(acc_ref[...] + b2_ref[...], 0.0)
    if pool == 1:
        for h in range(H):
            o_ref[0, h] = acc_ref[h * Wp:h * Wp + W, :].astype(o_ref.dtype)
    else:
        for hp in range(H // pool):
            band = acc_ref[hp * pool * Wp:(hp * pool + pool) * Wp, :]
            row = jnp.dot(pwa_ref[...], band,
                          preferred_element_type=jnp.float32)
            o_ref[0, hp] = row.astype(o_ref.dtype)


def conv1_conv2_fused(x_flat, w1_folded, b1, w2_folded, b2,
                      *, H, W, Cin, C, pool):
    """x_flat: (N, H*W, Cin); w1_folded: (Cin, C); w2_folded: (9*C, C) in
    (kh, kw, cin) tap order.  Returns out2 (N, H//p, W//p, C) and, when
    pool > 1, the kxk-pooled input (N, H//p, W//p, Cin) for the downsample."""
    n_img = x_flat.shape[0]
    k = pool
    assert H % k == 0 and W % k == 0
    hk, wk = H // k, W // k
    wp = ((W + 2 + 7) // 8) * 8            # flat-layout row stride (>= W + 2)
    L = _PAD_MARGIN
    pad_rows = (H + 2) * wp + L + 8

    kernel = functools.partial(_conv12_kernel, H=H, W=W, Wp=wp, L=L, C=C,
                               pool=k)

    in_specs = [
        pl.BlockSpec((1, H * W, Cin), lambda i: (i, 0, 0)),
        pl.BlockSpec((Cin, C), lambda i: (0, 0)),
        pl.BlockSpec((1, C), lambda i: (0, 0)),
        pl.BlockSpec((9 * C, C), lambda i: (0, 0)),
        pl.BlockSpec((1, C), lambda i: (0, 0)),
    ]
    args = [x_flat.astype(jnp.bfloat16),
            w1_folded.astype(jnp.bfloat16),
            b1.reshape(1, C).astype(jnp.float32),
            w2_folded.astype(jnp.bfloat16),
            b2.reshape(1, C).astype(jnp.float32)]
    scratch = [pltpu.VMEM((H * W, C), jnp.bfloat16),      # conv1 output
               pltpu.VMEM((pad_rows, C), jnp.bfloat16),   # zero-padded image
               pltpu.VMEM((H * wp, C), jnp.float32)]      # conv2 accumulator
    cparams = pltpu.CompilerParams(dimension_semantics=("parallel",),
                                   vmem_limit_bytes=_VMEM_LIMIT)

    if k == 1:
        return pl.pallas_call(
            kernel,
            out_shape=jax.ShapeDtypeStruct((n_img, H, W, C), jnp.bfloat16),
            grid=(n_img,),
            in_specs=in_specs,
            out_specs=pl.BlockSpec((1, H, W, C), lambda i: (i, 0, 0, 0)),
            scratch_shapes=scratch,
            compiler_params=cparams,
        )(*args)

    # Pooling matrices.  pwa pools a k*Wp-row band of the acc (zero weight on
    # the Wp-W garbage columns); pwx pools a k*W-row band of the raw input.
    r = jnp.arange(k * wp)
    col = r % wp
    sel = (col // k)[None, :] == jnp.arange(wk)[:, None]
    pwa = jnp.where(sel & (col < W)[None, :], 1.0 / (k * k), 0.0
                    ).astype(jnp.float32)
    r2 = jnp.arange(k * W)
    sel2 = ((r2 % W) // k)[None, :] == jnp.arange(wk)[:, None]
    pwx = (sel2.astype(jnp.float32) * (1.0 / (k * k))).astype(jnp.bfloat16)

    in_specs += [pl.BlockSpec((wk, k * wp), lambda i: (0, 0)),
                 pl.BlockSpec((wk, k * W), lambda i: (0, 0))]
    args += [pwa, pwx]

    out2, pooled_x = pl.pallas_call(
        kernel,
        out_shape=(jax.ShapeDtypeStruct((n_img, hk, wk, C), jnp.bfloat16),
                   jax.ShapeDtypeStruct((n_img, hk, wk, Cin), jnp.bfloat16)),
        grid=(n_img,),
        in_specs=in_specs,
        out_specs=(pl.BlockSpec((1, hk, wk, C), lambda i: (i, 0, 0, 0)),
                   pl.BlockSpec((1, hk, wk, Cin), lambda i: (i, 0, 0, 0))),
        scratch_shapes=scratch,
        compiler_params=cparams,
    )(*args)
    return out2, pooled_x


# ----------------------------------------------------------------------------
# Glue helpers (plain JAX)
# ----------------------------------------------------------------------------
def fold_bn(gamma, beta, mean, var, eps=1e-5):
    s = gamma / jnp.sqrt(var + eps)
    b = beta - mean * s
    return s, b


def avgpool(x_nhwc, k):
    if k <= 1:
        return x_nhwc
    n, h, w, c = x_nhwc.shape
    return x_nhwc.reshape(n, h // k, k, w // k, k, c).mean(axis=(2, 4))


# ----------------------------------------------------------------------------
# Bottleneck forward (eval-mode BN folded into the matmuls)
# ----------------------------------------------------------------------------
def bottleneck_forward(x_nhwc, params, stride):
    n, h, w, cin = x_nhwc.shape
    planes = params["w1"].shape[1]
    cout = planes * 4
    k = stride
    hk, wk = h // k, w // k
    has_ds = (k > 1) or (cin != cout)

    s1, b1 = fold_bn(*params["bn1"])
    s2, b2 = fold_bn(*params["bn2"])
    s3, b3 = fold_bn(*params["bn3"])

    x_flat = x_nhwc.reshape(n, h * w, cin).astype(jnp.bfloat16)

    # conv1+bn1+relu1 -> conv2+bn2+relu2 -> avgpool, one fused kernel; when
    # stride>1 the same kernel also emits the pooled input for the downsample.
    if k > 1:
        out2, pooled_x = conv1_conv2_fused(
            x_flat, params["w1"] * s1[None, :], b1,
            params["w2_mat"] * s2[None, :], b2,
            H=h, W=w, Cin=cin, C=planes, pool=k)
        idn_in = pooled_x.reshape(-1, cin)
    else:
        out2 = conv1_conv2_fused(
            x_flat, params["w1"] * s1[None, :], b1,
            params["w2_mat"] * s2[None, :], b2,
            H=h, W=w, Cin=cin, C=planes, pool=1)
        idn_in = x_flat.reshape(-1, cin)

    # downsample identity (avgpool already fused above) -> conv1x1 + bn
    if has_ds:
        sd, bd = fold_bn(*params["bnd"])
        identity = fused_matmul_bn(idn_in, params["wd"] * sd[None, :], bd,
                                   relu=False)
    else:
        identity = x_flat.reshape(-1, cin)

    # conv3 (1x1) + bn3 + residual add + relu3
    out = fused_matmul_bn(out2.reshape(-1, planes),
                          params["w3"] * s3[None, :], b3,
                          residual=identity, relu=True,
                          alias_residual=has_ds)
    return out.reshape(n, hk, wk, cout)


# ----------------------------------------------------------------------------
# Pure-JAX reference mirroring the kernel's bf16 quantization points.
# ----------------------------------------------------------------------------
def bottleneck_ref(x_nhwc, params, stride):
    bf = lambda a: a.astype(jnp.bfloat16).astype(jnp.float32)
    n, h, w, cin = x_nhwc.shape
    planes = params["w1"].shape[1]
    cout = planes * 4
    k = stride

    s1, b1 = fold_bn(*params["bn1"])
    s2, b2 = fold_bn(*params["bn2"])
    s3, b3 = fold_bn(*params["bn3"])

    o1 = jnp.einsum("nhwc,cd->nhwd", bf(x_nhwc), bf(params["w1"] * s1[None, :]))
    o1 = bf(jnp.maximum(o1 + b1, 0.0))

    w2 = params["w2_torch"] * s2[:, None, None, None]        # (Cout,Cin,3,3)
    w2 = bf(jnp.transpose(w2, (2, 3, 1, 0)))                 # HWIO
    o2 = jax.lax.conv_general_dilated(
        o1, w2, window_strides=(1, 1), padding="SAME",
        dimension_numbers=("NHWC", "HWIO", "NHWC"))
    o2 = jnp.maximum(o2 + b2, 0.0)
    o2 = bf(avgpool(o2, k))

    if k > 1 or cin != cout:
        sd, bd = fold_bn(*params["bnd"])
        idn = jnp.einsum("nhwc,cd->nhwd", bf(avgpool(bf(x_nhwc), k)),
                         bf(params["wd"] * sd[None, :])) + bd
        idn = bf(idn)
    else:
        idn = bf(x_nhwc)

    o3 = jnp.einsum("nhwc,cd->nhwd", o2, bf(params["w3"] * s3[None, :])) + b3
    return jnp.maximum(o3 + idn, 0.0)


# ----------------------------------------------------------------------------
def make_params(key, inplanes, planes):
    cout = planes * 4
    ks = jax.random.split(key, 8)

    def bn_params(kk, c):
        k1, k2, k3, k4 = jax.random.split(kk, 4)
        gamma = 1.0 + 0.1 * jax.random.normal(k1, (c,), jnp.float32)
        beta = 0.1 * jax.random.normal(k2, (c,), jnp.float32)
        mean = 0.1 * jax.random.normal(k3, (c,), jnp.float32)
        var = 0.5 + jnp.abs(jax.random.normal(k4, (c,), jnp.float32))
        return (gamma, beta, mean, var)

    w1 = 0.1 * jax.random.normal(ks[0], (inplanes, planes), jnp.float32)
    w2_torch = 0.1 * jax.random.normal(ks[1], (planes, planes, 3, 3),
                                       jnp.float32)
    # (Cout, Cin, KH, KW) -> (KH, KW, Cin, Cout) -> (9*Cin, Cout): matches the
    # (kh, kw, cin) tap order used by the conv2 kernel.
    w2_mat = jnp.transpose(w2_torch, (2, 3, 1, 0)).reshape(9 * planes, planes)
    w3 = 0.1 * jax.random.normal(ks[2], (planes, cout), jnp.float32)
    wd = 0.1 * jax.random.normal(ks[3], (inplanes, cout), jnp.float32)

    return {
        "w1": w1, "bn1": bn_params(ks[4], planes),
        "w2_torch": w2_torch, "w2_mat": w2_mat, "bn2": bn_params(ks[5], planes),
        "w3": w3, "bn3": bn_params(ks[6], cout),
        "wd": wd, "bnd": bn_params(ks[7], cout),
    }


if __name__ == "__main__":
    key = jax.random.PRNGKey(0)
    H = W = 8

    configs = [
        # (batch, inplanes, planes, stride)
        (2, 32, 16, 2),   # stride-2: fused avgpool + pooled-x downsample path
        (2, 64, 16, 1),   # stride-1, inplanes == planes*4: identity pass-through
        (2, 32, 16, 1),   # stride-1 with a 1x1 downsample (no pooling)
    ]
    for idx, (batch, inplanes, planes, stride) in enumerate(configs):
        kx, kp, key = jax.random.split(key, 3)
        # PyTorch-equivalent NCHW input; we compute in NHWC.
        x_nchw = jax.random.normal(kx, (batch, inplanes, H, W), jnp.float32)
        x_nhwc = jnp.transpose(x_nchw, (0, 2, 3, 1))
        params = make_params(kp, inplanes, planes)

        out = jax.block_until_ready(bottleneck_forward(x_nhwc, params, stride))
        ref = bottleneck_ref(x_nhwc, params, stride)

        assert out.shape == ref.shape == (batch, H // stride, W // stride,
                                          planes * 4), (idx, out.shape)
        assert out.dtype == jnp.bfloat16
        out_f32 = out.astype(jnp.float32)
        err = float(jnp.max(jnp.abs(out_f32 - ref)))
        assert jnp.allclose(out_f32, ref, atol=2e-2, rtol=2e-2), (idx, err)

    # Self-check of the K-tiled (nk > 1) fused-matmul path.
    k1, k2, k3, k4, key = jax.random.split(key, 5)
    xt = jax.random.normal(k1, (64, 256), jnp.float32)
    wt = 0.1 * jax.random.normal(k2, (256, 128), jnp.float32)
    bt = 0.1 * jax.random.normal(k3, (128,), jnp.float32)
    rt = jax.random.normal(k4, (64, 128), jnp.float32)
    bf = lambda a: a.astype(jnp.bfloat16).astype(jnp.float32)
    yk = jax.block_until_ready(
        fused_matmul_bn(xt, wt, bt, residual=rt, relu=True, tk=128))
    yr = jnp.maximum(bf(xt) @ bf(wt) + bt + bf(rt), 0.0)
    errk = float(jnp.max(jnp.abs(yk.astype(jnp.float32) - yr)))
    assert jnp.allclose(yk.astype(jnp.float32), yr, atol=2e-2, rtol=2e-2), errk

    print("KERNEL_OK")
</pallas_src>

<mosaic_0001>
module attributes {stable_mosaic.version = 11 : i64} {
  func.func @_conv12_kernel(%arg0: i32, %arg1: memref<1x64x32xbf16, #tpu.memory_space<vmem>>, %arg2: memref<32x16xbf16, #tpu.memory_space<vmem>>, %arg3: memref<1x16xf32, #tpu.memory_space<vmem>>, %arg4: memref<144x16xbf16, #tpu.memory_space<vmem>>, %arg5: memref<1x16xf32, #tpu.memory_space<vmem>>, %arg6: memref<4x32xf32, #tpu.memory_space<vmem>>, %arg7: memref<4x16xbf16, #tpu.memory_space<vmem>>, %arg8: memref<1x4x4x16xbf16, #tpu.memory_space<vmem>>, %arg9: memref<1x4x4x32xbf16, #tpu.memory_space<vmem>>, %arg10: memref<64x16xbf16, #tpu.memory_space<vmem>>, %arg11: memref<184x16xbf16, #tpu.memory_space<vmem>>, %arg12: memref<128x16xf32, #tpu.memory_space<vmem>>) attributes {dimension_semantics = [#tpu.dimension_semantics<parallel>], iteration_bounds = array<i64: 2>, scalar_prefetch = 0 : i64, scratch_operands = 3 : i64, tpu.core_type = #tpu.core_type<tc>, window_params = [{transform_indices = @transform_0, window_bounds = array<i64: 1, 64, 32>}, {pipeline_mode = #tpu.pipeline_mode<synchronous>, transform_indices = @transform_1, window_bounds = array<i64: 32, 16>}, {pipeline_mode = #tpu.pipeline_mode<synchronous>, transform_indices = @transform_2, window_bounds = array<i64: 1, 16>}, {pipeline_mode = #tpu.pipeline_mode<synchronous>, transform_indices = @transform_3, window_bounds = array<i64: 144, 16>}, {pipeline_mode = #tpu.pipeline_mode<synchronous>, transform_indices = @transform_4, window_bounds = array<i64: 1, 16>}, {pipeline_mode = #tpu.pipeline_mode<synchronous>, transform_indices = @transform_5, window_bounds = array<i64: 4, 32>}, {pipeline_mode = #tpu.pipeline_mode<synchronous>, transform_indices = @transform_6, window_bounds = array<i64: 4, 16>}, {transform_indices = @transform_7, window_bounds = array<i64: 1, 4, 4, 16>}, {transform_indices = @transform_8, window_bounds = array<i64: 1, 4, 4, 32>}]} {
    %c0 = arith.constant 0 : index
    %c0_0 = arith.constant 0 : index
    %c0_1 = arith.constant 0 : index
    %0 = vector.load %arg1[%c0, %c0_0, %c0_1] : memref<1x64x32xbf16, #tpu.memory_space<vmem>>, vector<1x64x32xbf16>
    %1 = vector.shape_cast %0 : vector<1x64x32xbf16> to vector<64x32xbf16>
    %c0_2 = arith.constant 0 : index
    %c0_3 = arith.constant 0 : index
    %2 = vector.load %arg2[%c0_2, %c0_3] : memref<32x16xbf16, #tpu.memory_space<vmem>>, vector<32x16xbf16>
    %cst = arith.constant dense<0.000000e+00> : vector<64x16xf32>
    %3 = tpu.matmul %1, %2, %cst {dimension_numbers = #tpu.dot_dimension_numbers<[1], [0], [0], [1], [0, 0, 1, 1], [], []>} : vector<64x32xbf16>, vector<32x16xbf16>, vector<64x16xf32> -> vector<64x16xf32>
    %c0_4 = arith.constant 0 : index
    %c0_5 = arith.constant 0 : index
    %4 = vector.load %arg3[%c0_4, %c0_5] : memref<1x16xf32, #tpu.memory_space<vmem>>, vector<1x16xf32>
    %5 = vector.broadcast %4 : vector<1x16xf32> to vector<64x16xf32>
    %6 = arith.addf %3, %5 : vector<64x16xf32>
    %cst_6 = arith.constant 0.000000e+00 : f32
    %7 = vector.broadcast %cst_6 : f32 to vector<64x16xf32>
    %8 = arith.maximumf %6, %7 : vector<64x16xf32>
    %9 = arith.truncf %8 : vector<64x16xf32> to vector<64x16xbf16>
    %c0_7 = arith.constant 0 : index
    %c0_8 = arith.constant 0 : index
    %10 = vector.load %arg10[%c0_7, %c0_8] : memref<64x16xbf16, #tpu.memory_space<vmem>>, vector<64x16xbf16>
    tpu.vector_store %arg10[%c0_7, %c0_8], %9 {strides = array<i32>} : memref<64x16xbf16, #tpu.memory_space<vmem>>, vector<64x16xbf16>,
    %c0_9 = arith.constant 0 : index
    %c0_10 = arith.constant 0 : index
    %11 = vector.load %arg7[%c0_9, %c0_10] : memref<4x16xbf16, #tpu.memory_space<vmem>>, vector<4x16xbf16>
    %c0_11 = arith.constant 0 : index
    %c0_12 = arith.constant 0 : index
    %c0_13 = arith.constant 0 : index
    %12 = vector.load %arg1[%c0_11, %c0_12, %c0_13] : memref<1x64x32xbf16, #tpu.memory_space<vmem>>, vector<1x16x32xbf16>
    %13 = vector.shape_cast %12 : vector<1x16x32xbf16> to vector<16x32xbf16>
    %cst_14 = arith.constant dense<0.000000e+00> : vector<4x32xf32>
    %14 = tpu.matmul %11, %13, %cst_14 {dimension_numbers = #tpu.dot_dimension_numbers<[1], [0], [0], [1], [0, 0, 1, 1], [], []>} : vector<4x16xbf16>, vector<16x32xbf16>, vector<4x32xf32> -> vector<4x32xf32>
    %15 = arith.truncf %14 : vector<4x32xf32> to vector<4x32xbf16>
    %c0_15 = arith.constant 0 : index
    %c0_16 = arith.constant 0 : index
    %c0_17 = arith.constant 0 : index
    %c0_18 = arith.constant 0 : index
    %16 = vector.load %arg9[%c0_15, %c0_16, %c0_17, %c0_18] : memref<1x4x4x32xbf16, #tpu.memory_space<vmem>>, vector<1x1x4x32xbf16>
    %17 = vector.shape_cast %16 : vector<1x1x4x32xbf16> to vector<4x32xbf16>
    %18 = vector.shape_cast %15 : vector<4x32xbf16> to vector<1x1x4x32xbf16>
    tpu.vector_store %arg9[%c0_15, %c0_16, %c0_17, %c0_18], %18 {strides = array<i32>} : memref<1x4x4x32xbf16, #tpu.memory_space<vmem>>, vector<1x1x4x32xbf16>,
    %c0_19 = arith.constant 0 : index
    %c0_20 = arith.constant 0 : index
    %19 = vector.load %arg7[%c0_19, %c0_20] : memref<4x16xbf16, #tpu.memory_space<vmem>>, vector<4x16xbf16>
    %c0_21 = arith.constant 0 : index
    %c16 = arith.constant 16 : index
    %c0_22 = arith.constant 0 : index
    %20 = vector.load %arg1[%c0_21, %c16, %c0_22] : memref<1x64x32xbf16, #tpu.memory_space<vmem>>, vector<1x16x32xbf16>
    %21 = vector.shape_cast %20 : vector<1x16x32xbf16> to vector<16x32xbf16>
    %cst_23 = arith.constant dense<0.000000e+00> : vector<4x32xf32>
    %22 = tpu.matmul %19, %21, %cst_23 {dimension_numbers = #tpu.dot_dimension_numbers<[1], [0], [0], [1], [0, 0, 1, 1], [], []>} : vector<4x16xbf16>, vector<16x32xbf16>, vector<4x32xf32> -> vector<4x32xf32>
    %23 = arith.truncf %22 : vector<4x32xf32> to vector<4x32xbf16>
    %c0_24 = arith.constant 0 : index
    %c1 = arith.constant 1 : index
    %c0_25 = arith.constant 0 : index
    %c0_26 = arith.constant 0 : index
    %24 = vector.load %arg9[%c0_24, %c1, %c0_25, %c0_26] : memref<1x4x4x32xbf16, #tpu.memory_space<vmem>>, vector<1x1x4x32xbf16>
    %25 = vector.shape_cast %24 : vector<1x1x4x32xbf16> to vector<4x32xbf16>
    %26 = vector.shape_cast %23 : vector<4x32xbf16> to vector<1x1x4x32xbf16>
    tpu.vector_store %arg9[%c0_24, %c1, %c0_25, %c0_26], %26 {strides = array<i32>} : memref<1x4x4x32xbf16, #tpu.memory_space<vmem>>, vector<1x1x4x32xbf16>,
    %c0_27 = arith.constant 0 : index
    %c0_28 = arith.constant 0 : index
    %27 = vector.load %arg7[%c0_27, %c0_28] : memref<4x16xbf16, #tpu.memory_space<vmem>>, vector<4x16xbf16>
    %c0_29 = arith.constant 0 : index
    %c32 = arith.constant 32 : index
    %c0_30 = arith.constant 0 : index
    %28 = vector.load %arg1[%c0_29, %c32, %c0_30] : memref<1x64x32xbf16, #tpu.memory_space<vmem>>, vector<1x16x32xbf16>
    %29 = vector.shape_cast %28 : vector<1x16x32xbf16> to vector<16x32xbf16>
    %cst_31 = arith.constant dense<0.000000e+00> : vector<4x32xf32>
    %30 = tpu.matmul %27, %29, %cst_31 {dimension_numbers = #tpu.dot_dimension_numbers<[1], [0], [0], [1], [0, 0, 1, 1], [], []>} : vector<4x16xbf16>, vector<16x32xbf16>, vector<4x32xf32> -> vector<4x32xf32>
    %31 = arith.truncf %30 : vector<4x32xf32> to vector<4x32xbf16>
    %c0_32 = arith.constant 0 : index
    %c2 = arith.constant 2 : index
    %c0_33 = arith.constant 0 : index
    %c0_34 = arith.constant 0 : index
    %32 = vector.load %arg9[%c0_32, %c2, %c0_33, %c0_34] : memref<1x4x4x32xbf16, #tpu.memory_space<vmem>>, vector<1x1x4x32xbf16>
    %33 = vector.shape_cast %32 : vector<1x1x4x32xbf16> to vector<4x32xbf16>
    %34 = vector.shape_cast %31 : vector<4x32xbf16> to vector<1x1x4x32xbf16>
    tpu.vector_store %arg9[%c0_32, %c2, %c0_33, %c0_34], %34 {strides = array<i32>} : memref<1x4x4x32xbf16, #tpu.memory_space<vmem>>, vector<1x1x4x32xbf16>,
    %c0_35 = arith.constant 0 : index
    %c0_36 = arith.constant 0 : index
    %35 = vector.load %arg7[%c0_35, %c0_36] : memref<4x16xbf16, #tpu.memory_space<vmem>>, vector<4x16xbf16>
    %c0_37 = arith.constant 0 : index
    %c48 = arith.constant 48 : index
    %c0_38 = arith.constant 0 : index
    %36 = vector.load %arg1[%c0_37, %c48, %c0_38] : memref<1x64x32xbf16, #tpu.memory_space<vmem>>, vector<1x16x32xbf16>
    %37 = vector.shape_cast %36 : vector<1x16x32xbf16> to vector<16x32xbf16>
    %cst_39 = arith.constant dense<0.000000e+00> : vector<4x32xf32>
    %38 = tpu.matmul %35, %37, %cst_39 {dimension_numbers = #tpu.dot_dimension_numbers<[1], [0], [0], [1], [0, 0, 1, 1], [], []>} : vector<4x16xbf16>, vector<16x32xbf16>, vector<4x32xf32> -> vector<4x32xf32>
    %39 = arith.truncf %38 : vector<4x32xf32> to vector<4x32xbf16>
    %c0_40 = arith.constant 0 : index
    %c3 = arith.constant 3 : index
    %c0_41 = arith.constant 0 : index
    %c0_42 = arith.constant 0 : index
    %40 = vector.load %arg9[%c0_40, %c3, %c0_41, %c0_42] : memref<1x4x4x32xbf16, #tpu.memory_space<vmem>>, vector<1x1x4x32xbf16>
    %41 = vector.shape_cast %40 : vector<1x1x4x32xbf16> to vector<4x32xbf16>
    %42 = vector.shape_cast %39 : vector<4x32xbf16> to vector<1x1x4x32xbf16>
    tpu.vector_store %arg9[%c0_40, %c3, %c0_41, %c0_42], %42 {strides = array<i32>} : memref<1x4x4x32xbf16, #tpu.memory_space<vmem>>, vector<1x1x4x32xbf16>,
    %cst_43 = arith.constant 0.000000e+00 : bf16
    %43 = vector.broadcast %cst_43 : bf16 to vector<32x16xbf16>
    %c0_44 = arith.constant 0 : index
    %c0_45 = arith.constant 0 : index
    %44 = vector.load %arg11[%c0_44, %c0_45] : memref<184x16xbf16, #tpu.memory_space<vmem>>, vector<32x16xbf16>
    tpu.vector_store %arg11[%c0_44, %c0_45], %43 {strides = array<i32>} : memref<184x16xbf16, #tpu.memory_space<vmem>>, vector<32x16xbf16>,
    %c0_46 = arith.constant 0 : index
    %c0_47 = arith.constant 0 : index
    %45 = vector.load %arg10[%c0_46, %c0_47] : memref<64x16xbf16, #tpu.memory_space<vmem>>, vector<8x16xbf16>
    %c32_48 = arith.constant 32 : index
    %c0_49 = arith.constant 0 : index
    %46 = vector.load %arg11[%c32_48, %c0_49] : memref<184x16xbf16, #tpu.memory_space<vmem>>, vector<8x16xbf16>
    tpu.vector_store %arg11[%c32_48, %c0_49], %45 {strides = array<i32>} : memref<184x16xbf16, #tpu.memory_space<vmem>>, vector<8x16xbf16>,
    %cst_50 = arith.constant 0.000000e+00 : bf16
    %47 = vector.broadcast %cst_50 : bf16 to vector<8x16xbf16>
    %c40 = arith.constant 40 : index
    %c0_51 = arith.constant 0 : index
    %48 = vector.load %arg11[%c40, %c0_51] : memref<184x16xbf16, #tpu.memory_space<vmem>>, vector<8x16xbf16>
    tpu.vector_store %arg11[%c40, %c0_51], %47 {strides = array<i32>} : memref<184x16xbf16, #tpu.memory_space<vmem>>, vector<8x16xbf16>,
    %c8 = arith.constant 8 : index
    %c0_52 = arith.constant 0 : index
    %49 = vector.load %arg10[%c8, %c0_52] : memref<64x16xbf16, #tpu.memory_space<vmem>>, vector<8x16xbf16>
    %c48_53 = arith.constant 48 : index
    %c0_54 = arith.constant 0 : index
    %50 = vector.load %arg11[%c48_53, %c0_54] : memref<184x16xbf16, #tpu.memory_space<vmem>>, vector<8x16xbf16>
    tpu.vector_store %arg11[%c48_53, %c0_54], %49 {strides = array<i32>} : memref<184x16xbf16, #tpu.memory_space<vmem>>, vector<8x16xbf16>,
    %cst_55 = arith.constant 0.000000e+00 : bf16
    %51 = vector.broadcast %cst_55 : bf16 to vector<8x16xbf16>
    %c56 = arith.constant 56 : index
    %c0_56 = arith.constant 0 : index
    %52 = vector.load %arg11[%c56, %c0_56] : memref<184x16xbf16, #tpu.memory_space<vmem>>, vector<8x16xbf16>
    tpu.vector_store %arg11[%c56, %c0_56], %51 {strides = array<i32>} : memref<184x16xbf16, #tpu.memory_space<vmem>>, vector<8x16xbf16>,
    %c16_57 = arith.constant 16 : index
    %c0_58 = arith.constant 0 : index
    %53 = vector.load %arg10[%c16_57, %c0_58] : memref<64x16xbf16, #tpu.memory_space<vmem>>, vector<8x16xbf16>
    %c64 = arith.constant 64 : index
    %c0_59 = arith.constant 0 : index
    %54 = vector.load %arg11[%c64, %c0_59] : memref<184x16xbf16, #tpu.memory_space<vmem>>, vector<8x16xbf16>
    tpu.vector_store %arg11[%c64, %c0_59], %53 {strides = array<i32>} : memref<184x16xbf16, #tpu.memory_space<vmem>>, vector<8x16xbf16>,
    %cst_60 = arith.constant 0.000000e+00 : bf16
    %55 = vector.broadcast %cst_60 : bf16 to vector<8x16xbf16>
    %c72 = arith.constant 72 : index
    %c0_61 = arith.constant 0 : index
    %56 = vector.load %arg11[%c72, %c0_61] : memref<184x16xbf16, #tpu.memory_space<vmem>>, vector<8x16xbf16>
    tpu.vector_store %arg11[%c72, %c0_61], %55 {strides = array<i32>} : memref<184x16xbf16, #tpu.memory_space<vmem>>, vector<8x16xbf16>,
    %c24 = arith.constant 24 : index
    %c0_62 = arith.constant 0 : index
    %57 = vector.load %arg10[%c24, %c0_62] : memref<64x16xbf16, #tpu.memory_space<vmem>>, vector<8x16xbf16>
    %c80 = arith.constant 80 : index
    %c0_63 = arith.constant 0 : index
    %58 = vector.load %arg11[%c80, %c0_63] : memref<184x16xbf16, #tpu.memory_space<vmem>>, vector<8x16xbf16>
    tpu.vector_store %arg11[%c80, %c0_63], %57 {strides = array<i32>} : memref<184x16xbf16, #tpu.memory_space<vmem>>, vector<8x16xbf16>,
    %cst_64 = arith.constant 0.000000e+00 : bf16
    %59 = vector.broadcast %cst_64 : bf16 to vector<8x16xbf16>
    %c88 = arith.constant 88 : index
    %c0_65 = arith.constant 0 : index
    %60 = vector.load %arg11[%c88, %c0_65] : memref<184x16xbf16, #tpu.memory_space<vmem>>, vector<8x16xbf16>
    tpu.vector_store %arg11[%c88, %c0_65], %59 {strides = array<i32>} : memref<184x16xbf16, #tpu.memory_space<vmem>>, vector<8x16xbf16>,
    %c32_66 = arith.constant 32 : index
    %c0_67 = arith.constant 0 : index
    %61 = vector.load %arg10[%c32_66, %c0_67] : memref<64x16xbf16, #tpu.memory_space<vmem>>, vector<8x16xbf16>
    %c96 = arith.constant 96 : index
    %c0_68 = arith.constant 0 : index
    %62 = vector.load %arg11[%c96, %c0_68] : memref<184x16xbf16, #tpu.memory_space<vmem>>, vector<8x16xbf16>
    tpu.vector_store %arg11[%c96, %c0_68], %61 {strides = array<i32>} : memref<184x16xbf16, #tpu.memory_space<vmem>>, vector<8x16xbf16>,
    %cst_69 = arith.constant 0.000000e+00 : bf16
    %63 = vector.broadcast %cst_69 : bf16 to vector<8x16xbf16>
    %c104 = arith.constant 104 : index
    %c0_70 = arith.constant 0 : index
    %64 = vector.load %arg11[%c104, %c0_70] : memref<184x16xbf16, #tpu.memory_space<vmem>>, vector<8x16xbf16>
    tpu.vector_store %arg11[%c104, %c0_70], %63 {strides = array<i32>} : memref<184x16xbf16, #tpu.memory_space<vmem>>, vector<8x16xbf16>,
    %c40_71 = arith.constant 40 : index
    %c0_72 = arith.constant 0 : index
    %65 = vector.load %arg10[%c40_71, %c0_72] : memref<64x16xbf16, #tpu.memory_space<vmem>>, vector<8x16xbf16>
    %c112 = arith.constant 112 : index
    %c0_73 = arith.constant 0 : index
    %66 = vector.load %arg11[%c112, %c0_73] : memref<184x16xbf16, #tpu.memory_space<vmem>>, vector<8x16xbf16>
    tpu.vector_store %arg11[%c112, %c0_73], %65 {strides = array<i32>} : memref<184x16xbf16, #tpu.memory_space<vmem>>, vector<8x16xbf16>,
    %cst_74 = arith.constant 0.000000e+00 : bf16
    %67 = vector.broadcast %cst_74 : bf16 to vector<8x16xbf16>
    %c120 = arith.constant 120 : index
    %c0_75 = arith.constant 0 : index
    %68 = vector.load %arg11[%c120, %c0_75] : memref<184x16xbf16, #tpu.memory_space<vmem>>, vector<8x16xbf16>
    tpu.vector_store %arg11[%c120, %c0_75], %67 {strides = array<i32>} : memref<184x16xbf16, #tpu.memory_space<vmem>>, vector<8x16xbf16>,
    %c48_76 = arith.constant 48 : index
    %c0_77 = arith.constant 0 : index
    %69 = vector.load %arg10[%c48_76, %c0_77] : memref<64x16xbf16, #tpu.memory_space<vmem>>, vector<8x16xbf16>
    %c128 = arith.constant 128 : index
    %c0_78 = arith.constant 0 : index
    %70 = vector.load %arg11[%c128, %c0_78] : memref<184x16xbf16, #tpu.memory_space<vmem>>, vector<8x16xbf16>
    tpu.vector_store %arg11[%c128, %c0_78], %69 {strides = array<i32>} : memref<184x16xbf16, #tpu.memory_space<vmem>>, vector<8x16xbf16>,
    %cst_79 = arith.constant 0.000000e+00 : bf16
    %71 = vector.broadcast %cst_79 : bf16 to vector<8x16xbf16>
    %c136 = arith.constant 136 : index
    %c0_80 = arith.constant 0 : index
    %72 = vector.load %arg11[%c136, %c0_80] : memref<184x16xbf16, #tpu.memory_space<vmem>>, vector<8x16xbf16>
    tpu.vector_store %arg11[%c136, %c0_80], %71 {strides = array<i32>} : memref<184x16xbf16, #tpu.memory_space<vmem>>, vector<8x16xbf16>,
    %c56_81 = arith.constant 56 : index
    %c0_82 = arith.constant 0 : index
    %73 = vector.load %arg10[%c56_81, %c0_82] : memref<64x16xbf16, #tpu.memory_space<vmem>>, vector<8x16xbf16>
    %c144 = arith.constant 144 : index
    %c0_83 = arith.constant 0 : index
    %74 = vector.load %arg11[%c144, %c0_83] : memref<184x16xbf16, #tpu.memory_space<vmem>>, vector<8x16xbf16>
    tpu.vector_store %arg11[%c144, %c0_83], %73 {strides = array<i32>} : memref<184x16xbf16, #tpu.memory_space<vmem>>, vector<8x16xbf16>,
    %cst_84 = arith.constant 0.000000e+00 : bf16
    %75 = vector.broadcast %cst_84 : bf16 to vector<8x16xbf16>
    %c152 = arith.constant 152 : index
    %c0_85 = arith.constant 0 : index
    %76 = vector.load %arg11[%c152, %c0_85] : memref<184x16xbf16, #tpu.memory_space<vmem>>, vector<8x16xbf16>
    tpu.vector_store %arg11[%c152, %c0_85], %75 {strides = array<i32>} : memref<184x16xbf16, #tpu.memory_space<vmem>>, vector<8x16xbf16>,
    %cst_86 = arith.constant 0.000000e+00 : bf16
    %77 = vector.broadcast %cst_86 : bf16 to vector<24x16xbf16>
    %c160 = arith.constant 160 : index
    %c0_87 = arith.constant 0 : index
    %78 = vector.load %arg11[%c160, %c0_87] : memref<184x16xbf16, #tpu.memory_space<vmem>>, vector<24x16xbf16>
    tpu.vector_store %arg11[%c160, %c0_87], %77 {strides = array<i32>} : memref<184x16xbf16, #tpu.memory_space<vmem>>, vector<24x16xbf16>,
    %c15 = arith.constant 15 : index
    %c0_88 = arith.constant 0 : index
    %79 = vector.load %arg11[%c15, %c0_88] : memref<184x16xbf16, #tpu.memory_space<vmem>>, vector<128x16xbf16>
    %c0_89 = arith.constant 0 : index
    %c0_90 = arith.constant 0 : index
    %80 = vector.load %arg4[%c0_89, %c0_90] : memref<144x16xbf16, #tpu.memory_space<vmem>>, vector<16x16xbf16>
    %cst_91 = arith.constant dense<0.000000e+00> : vector<128x16xf32>
    %81 = tpu.matmul %79, %80, %cst_91 {dimension_numbers = #tpu.dot_dimension_numbers<[1], [0], [0], [1], [0, 0, 1, 1], [], []>} : vector<128x16xbf16>, vector<16x16xbf16>, vector<128x16xf32> -> vector<128x16xf32>
    %c0_92 = arith.constant 0 : index
    %c0_93 = arith.constant 0 : index
    %82 = vector.load %arg12[%c0_92, %c0_93] : memref<128x16xf32, #tpu.memory_space<vmem>>, vector<128x16xf32>
    tpu.vector_store %arg12[%c0_92, %c0_93], %81 {strides = array<i32>} : memref<128x16xf32, #tpu.memory_space<vmem>>, vector<128x16xf32>,
    %c16_94 = arith.constant 16 : index
    %c0_95 = arith.constant 0 : index
    %83 = vector.load %arg11[%c16_94, %c0_95] : memref<184x16xbf16, #tpu.memory_space<vmem>>, vector<128x16xbf16>
    %c16_96 = arith.constant 16 : index
    %c0_97 = arith.constant 0 : index
    %84 = vector.load %arg4[%c16_96, %c0_97] : memref<144x16xbf16, #tpu.memory_space<vmem>>, vector<16x16xbf16>
    %cst_98 = arith.constant dense<0.000000e+00> : vector<128x16xf32>
    %85 = tpu.matmul %83, %84, %cst_98 {dimension_numbers = #tpu.dot_dimension_numbers<[1], [0], [0], [1], [0, 0, 1, 1], [], []>} : vector<128x16xbf16>, vector<16x16xbf16>, vector<128x16xf32> -> vector<128x16xf32>
    %c0_99 = arith.constant 0 : index
    %c0_100 = arith.constant 0 : index
    %86 = vector.load %arg12[%c0_99, %c0_100] : memref<128x16xf32, #tpu.memory_space<vmem>>, vector<128x16xf32>
    %87 = arith.addf %86, %85 : vector<128x16xf32>
    %c0_101 = arith.constant 0 : index
    %c0_102 = arith.constant 0 : index
    %88 = vector.load %arg12[%c0_101, %c0_102] : memref<128x16xf32, #tpu.memory_space<vmem>>, vector<128x16xf32>
    tpu.vector_store %arg12[%c0_101, %c0_102], %87 {strides = array<i32>} : memref<128x16xf32, #tpu.memory_space<vmem>>, vector<128x16xf32>,
    %c17 = arith.constant 17 : index
    %c0_103 = arith.constant 0 : index
    %89 = vector.load %arg11[%c17, %c0_103] : memref<184x16xbf16, #tpu.memory_space<vmem>>, vector<128x16xbf16>
    %c32_104 = arith.constant 32 : index
    %c0_105 = arith.constant 0 : index
    %90 = vector.load %arg4[%c32_104, %c0_105] : memref<144x16xbf16, #tpu.memory_space<vmem>>, vector<16x16xbf16>
    %cst_106 = arith.constant dense<0.000000e+00> : vector<128x16xf32>
    %91 = tpu.matmul %89, %90, %cst_106 {dimension_numbers = #tpu.dot_dimension_numbers<[1], [0], [0], [1], [0, 0, 1, 1], [], []>} : vector<128x16xbf16>, vector<16x16xbf16>, vector<128x16xf32> -> vector<128x16xf32>
    %c0_107 = arith.constant 0 : index
    %c0_108 = arith.constant 0 : index
    %92 = vector.load %arg12[%c0_107, %c0_108] : memref<128x16xf32, #tpu.memory_space<vmem>>, vector<128x16xf32>
    %93 = arith.addf %92, %91 : vector<128x16xf32>
    %c0_109 = arith.constant 0 : index
    %c0_110 = arith.constant 0 : index
    %94 = vector.load %arg12[%c0_109, %c0_110] : memref<128x16xf32, #tpu.memory_space<vmem>>, vector<128x16xf32>
    tpu.vector_store %arg12[%c0_109, %c0_110], %93 {strides = array<i32>} : memref<128x16xf32, #tpu.memory_space<vmem>>, vector<128x16xf32>,
    %c31 = arith.constant 31 : index
    %c0_111 = arith.constant 0 : index
    %95 = vector.load %arg11[%c31, %c0_111] : memref<184x16xbf16, #tpu.memory_space<vmem>>, vector<128x16xbf16>
    %c48_112 = arith.constant 48 : index
    %c0_113 = arith.constant 0 : index
    %96 = vector.load %arg4[%c48_112, %c0_113] : memref<144x16xbf16, #tpu.memory_space<vmem>>, vector<16x16xbf16>
    %cst_114 = arith.constant dense<0.000000e+00> : vector<128x16xf32>
    %97 = tpu.matmul %95, %96, %cst_114 {dimension_numbers = #tpu.dot_dimension_numbers<[1], [0], [0], [1], [0, 0, 1, 1], [], []>} : vector<128x16xbf16>, vector<16x16xbf16>, vector<128x16xf32> -> vector<128x16xf32>
    %c0_115 = arith.constant 0 : index
    %c0_116 = arith.constant 0 : index
    %98 = vector.load %arg12[%c0_115, %c0_116] : memref<128x16xf32, #tpu.memory_space<vmem>>, vector<128x16xf32>
    %99 = arith.addf %98, %97 : vector<128x16xf32>
    %c0_117 = arith.constant 0 : index
    %c0_118 = arith.constant 0 : index
    %100 = vector.load %arg12[%c0_117, %c0_118] : memref<128x16xf32, #tpu.memory_space<vmem>>, vector<128x16xf32>
    tpu.vector_store %arg12[%c0_117, %c0_118], %99 {strides = array<i32>} : memref<128x16xf32, #tpu.memory_space<vmem>>, vector<128x16xf32>,
    %c32_119 = arith.constant 32 : index
    %c0_120 = arith.constant 0 : index
    %101 = vector.load %arg11[%c32_119, %c0_120] : memref<184x16xbf16, #tpu.memory_space<vmem>>, vector<128x16xbf16>
    %c64_121 = arith.constant 64 : index
    %c0_122 = arith.constant 0 : index
    %102 = vector.load %arg4[%c64_121, %c0_122] : memref<144x16xbf16, #tpu.memory_space<vmem>>, vector<16x16xbf16>
    %cst_123 = arith.constant dense<0.000000e+00> : vector<128x16xf32>
    %103 = tpu.matmul %101, %102, %cst_123 {dimension_numbers = #tpu.dot_dimension_numbers<[1], [0], [0], [1], [0, 0, 1, 1], [], []>} : vector<128x16xbf16>, vector<16x16xbf16>, vector<128x16xf32> -> vector<128x16xf32>
    %c0_124 = arith.constant 0 : index
    %c0_125 = arith.constant 0 : index
    %104 = vector.load %arg12[%c0_124, %c0_125] : memref<128x16xf32, #tpu.memory_space<vmem>>, vector<128x16xf32>
    %105 = arith.addf %104, %103 : vector<128x16xf32>
    %c0_126 = arith.constant 0 : index
    %c0_127 = arith.constant 0 : index
    %106 = vector.load %arg12[%c0_126, %c0_127] : memref<128x16xf32, #tpu.memory_space<vmem>>, vector<128x16xf32>
    tpu.vector_store %arg12[%c0_126, %c0_127], %105 {strides = array<i32>} : memref<128x16xf32, #tpu.memory_space<vmem>>, vector<128x16xf32>,
    %c33 = arith.constant 33 : index
    %c0_128 = arith.constant 0 : index
    %107 = vector.load %arg11[%c33, %c0_128] : memref<184x16xbf16, #tpu.memory_space<vmem>>, vector<128x16xbf16>
    %c80_129 = arith.constant 80 : index
    %c0_130 = arith.constant 0 : index
    %108 = vector.load %arg4[%c80_129, %c0_130] : memref<144x16xbf16, #tpu.memory_space<vmem>>, vector<16x16xbf16>
    %cst_131 = arith.constant dense<0.000000e+00> : vector<128x16xf32>
    %109 = tpu.matmul %107, %108, %cst_131 {dimension_numbers = #tpu.dot_dimension_numbers<[1], [0], [0], [1], [0, 0, 1, 1], [], []>} : vector<128x16xbf16>, vector<16x16xbf16>, vector<128x16xf32> -> vector<128x16xf32>
    %c0_132 = arith.constant 0 : index
    %c0_133 = arith.constant 0 : index
    %110 = vector.load %arg12[%c0_132, %c0_133] : memref<128x16xf32, #tpu.memory_space<vmem>>, vector<128x16xf32>
    %111 = arith.addf %110, %109 : vector<128x16xf32>
    %c0_134 = arith.constant 0 : index
    %c0_135 = arith.constant 0 : index
    %112 = vector.load %arg12[%c0_134, %c0_135] : memref<128x16xf32, #tpu.memory_space<vmem>>, vector<128x16xf32>
    tpu.vector_store %arg12[%c0_134, %c0_135], %111 {strides = array<i32>} : memref<128x16xf32, #tpu.memory_space<vmem>>, vector<128x16xf32>,
    %c47 = arith.constant 47 : index
    %c0_136 = arith.constant 0 : index
    %113 = vector.load %arg11[%c47, %c0_136] : memref<184x16xbf16, #tpu.memory_space<vmem>>, vector<128x16xbf16>
    %c96_137 = arith.constant 96 : index
    %c0_138 = arith.constant 0 : index
    %114 = vector.load %arg4[%c96_137, %c0_138] : memref<144x16xbf16, #tpu.memory_space<vmem>>, vector<16x16xbf16>
    %cst_139 = arith.constant dense<0.000000e+00> : vector<128x16xf32>
    %115 = tpu.matmul %113, %114, %cst_139 {dimension_numbers = #tpu.dot_dimension_numbers<[1], [0], [0], [1], [0, 0, 1, 1], [], []>} : vector<128x16xbf16>, vector<16x16xbf16>, vector<128x16xf32> -> vector<128x16xf32>
    %c0_140 = arith.constant 0 : index
    %c0_141 = arith.constant 0 : index
    %116 = vector.load %arg12[%c0_140, %c0_141] : memref<128x16xf32, #tpu.memory_space<vmem>>, vector<128x16xf32>
    %117 = arith.addf %116, %115 : vector<128x16xf32>
    %c0_142 = arith.constant 0 : index
    %c0_143 = arith.constant 0 : index
    %118 = vector.load %arg12[%c0_142, %c0_143] : memref<128x16xf32, #tpu.memory_space<vmem>>, vector<128x16xf32>
    tpu.vector_store %arg12[%c0_142, %c0_143], %117 {strides = array<i32>} : memref<128x16xf32, #tpu.memory_space<vmem>>, vector<128x16xf32>,
    %c48_144 = arith.constant 48 : index
    %c0_145 = arith.constant 0 : index
    %119 = vector.load %arg11[%c48_144, %c0_145] : memref<184x16xbf16, #tpu.memory_space<vmem>>, vector<128x16xbf16>
    %c112_146 = arith.constant 112 : index
    %c0_147 = arith.constant 0 : index
    %120 = vector.load %arg4[%c112_146, %c0_147] : memref<144x16xbf16, #tpu.memory_space<vmem>>, vector<16x16xbf16>
    %cst_148 = arith.constant dense<0.000000e+00> : vector<128x16xf32>
    %121 = tpu.matmul %119, %120, %cst_148 {dimension_numbers = #tpu.dot_dimension_numbers<[1], [0], [0], [1], [0, 0, 1, 1], [], []>} : vector<128x16xbf16>, vector<16x16xbf16>, vector<128x16xf32> -> vector<128x16xf32>
    %c0_149 = arith.constant 0 : index
    %c0_150 = arith.constant 0 : index
    %122 = vector.load %arg12[%c0_149, %c0_150] : memref<128x16xf32, #tpu.memory_space<vmem>>, vector<128x16xf32>
    %123 = arith.addf %122, %121 : vector<128x16xf32>
    %c0_151 = arith.constant 0 : index
    %c0_152 = arith.constant 0 : index
    %124 = vector.load %arg12[%c0_151, %c0_152] : memref<128x16xf32, #tpu.memory_space<vmem>>, vector<128x16xf32>
    tpu.vector_store %arg12[%c0_151, %c0_152], %123 {strides = array<i32>} : memref<128x16xf32, #tpu.memory_space<vmem>>, vector<128x16xf32>,
    %c49 = arith.constant 49 : index
    %c0_153 = arith.constant 0 : index
    %125 = vector.load %arg11[%c49, %c0_153] : memref<184x16xbf16, #tpu.memory_space<vmem>>, vector<128x16xbf16>
    %c128_154 = arith.constant 128 : index
    %c0_155 = arith.constant 0 : index
    %126 = vector.load %arg4[%c128_154, %c0_155] : memref<144x16xbf16, #tpu.memory_space<vmem>>, vector<16x16xbf16>
    %cst_156 = arith.constant dense<0.000000e+00> : vector<128x16xf32>
    %127 = tpu.matmul %125, %126, %cst_156 {dimension_numbers = #tpu.dot_dimension_numbers<[1], [0], [0], [1], [0, 0, 1, 1], [], []>} : vector<128x16xbf16>, vector<16x16xbf16>, vector<128x16xf32> -> vector<128x16xf32>
    %c0_157 = arith.constant 0 : index
    %c0_158 = arith.constant 0 : index
    %128 = vector.load %arg12[%c0_157, %c0_158] : memref<128x16xf32, #tpu.memory_space<vmem>>, vector<128x16xf32>
    %129 = arith.addf %128, %127 : vector<128x16xf32>
    %c0_159 = arith.constant 0 : index
    %c0_160 = arith.constant 0 : index
    %130 = vector.load %arg12[%c0_159, %c0_160] : memref<128x16xf32, #tpu.memory_space<vmem>>, vector<128x16xf32>
    tpu.vector_store %arg12[%c0_159, %c0_160], %129 {strides = array<i32>} : memref<128x16xf32, #tpu.memory_space<vmem>>, vector<128x16xf32>,
    %c0_161 = arith.constant 0 : index
    %c0_162 = arith.constant 0 : index
    %131 = vector.load %arg12[%c0_161, %c0_162] : memref<128x16xf32, #tpu.memory_space<vmem>>, vector<128x16xf32>
    %c0_163 = arith.constant 0 : index
    %c0_164 = arith.constant 0 : index
    %132 = vector.load %arg5[%c0_163, %c0_164] : memref<1x16xf32, #tpu.memory_space<vmem>>, vector<1x16xf32>
    %133 = vector.broadcast %132 : vector<1x16xf32> to vector<128x16xf32>
    %134 = arith.addf %131, %133 : vector<128x16xf32>
    %cst_165 = arith.constant 0.000000e+00 : f32
    %135 = vector.broadcast %cst_165 : f32 to vector<128x16xf32>
    %136 = arith.maximumf %134, %135 : vector<128x16xf32>
    %c0_166 = arith.constant 0 : index
    %c0_167 = arith.constant 0 : index
    %137 = vector.load %arg12[%c0_166, %c0_167] : memref<128x16xf32, #tpu.memory_space<vmem>>, vector<128x16xf32>
    tpu.vector_store %arg12[%c0_166, %c0_167], %136 {strides = array<i32>} : memref<128x16xf32, #tpu.memory_space<vmem>>, vector<128x16xf32>,
    %c0_168 = arith.constant 0 : index
    %c0_169 = arith.constant 0 : index
    %138 = vector.load %arg12[%c0_168, %c0_169] : memref<128x16xf32, #tpu.memory_space<vmem>>, vector<32x16xf32>
    %c0_170 = arith.constant 0 : index
    %c0_171 = arith.constant 0 : index
    %139 = vector.load %arg6[%c0_170, %c0_171] : memref<4x32xf32, #tpu.memory_space<vmem>>, vector<4x32xf32>
    %cst_172 = arith.constant dense<0.000000e+00> : vector<4x16xf32>
    %140 = tpu.matmul %139, %138, %cst_172 {dimension_numbers = #tpu.dot_dimension_numbers<[1], [0], [0], [1], [0, 0, 1, 1], [], []>} : vector<4x32xf32>, vector<32x16xf32>, vector<4x16xf32> -> vector<4x16xf32>
    %141 = arith.truncf %140 : vector<4x16xf32> to vector<4x16xbf16>
    %c0_173 = arith.constant 0 : index
    %c0_174 = arith.constant 0 : index
    %c0_175 = arith.constant 0 : index
    %c0_176 = arith.constant 0 : index
    %142 = vector.load %arg8[%c0_173, %c0_174, %c0_175, %c0_176] : memref<1x4x4x16xbf16, #tpu.memory_space<vmem>>, vector<1x1x4x16xbf16>
    %143 = vector.shape_cast %142 : vector<1x1x4x16xbf16> to vector<4x16xbf16>
    %144 = vector.shape_cast %141 : vector<4x16xbf16> to vector<1x1x4x16xbf16>
    tpu.vector_store %arg8[%c0_173, %c0_174, %c0_175, %c0_176], %144 {strides = array<i32>} : memref<1x4x4x16xbf16, #tpu.memory_space<vmem>>, vector<1x1x4x16xbf16>,
    %c32_177 = arith.constant 32 : index
    %c0_178 = arith.constant 0 : index
    %145 = vector.load %arg12[%c32_177, %c0_178] : memref<128x16xf32, #tpu.memory_space<vmem>>, vector<32x16xf32>
    %c0_179 = arith.constant 0 : index
    %c0_180 = arith.constant 0 : index
    %146 = vector.load %arg6[%c0_179, %c0_180] : memref<4x32xf32, #tpu.memory_space<vmem>>, vector<4x32xf32>
    %cst_181 = arith.constant dense<0.000000e+00> : vector<4x16xf32>
    %147 = tpu.matmul %146, %145, %cst_181 {dimension_numbers = #tpu.dot_dimension_numbers<[1], [0], [0], [1], [0, 0, 1, 1], [], []>} : vector<4x32xf32>, vector<32x16xf32>, vector<4x16xf32> -> vector<4x16xf32>
    %148 = arith.truncf %147 : vector<4x16xf32> to vector<4x16xbf16>
    %c0_182 = arith.constant 0 : index
    %c1_183 = arith.constant 1 : index
    %c0_184 = arith.constant 0 : index
    %c0_185 = arith.constant 0 : index
    %149 = vector.load %arg8[%c0_182, %c1_183, %c0_184, %c0_185] : memref<1x4x4x16xbf16, #tpu.memory_space<vmem>>, vector<1x1x4x16xbf16>
    %150 = vector.shape_cast %149 : vector<1x1x4x16xbf16> to vector<4x16xbf16>
    %151 = vector.shape_cast %148 : vector<4x16xbf16> to vector<1x1x4x16xbf16>
    tpu.vector_store %arg8[%c0_182, %c1_183, %c0_184, %c0_185], %151 {strides = array<i32>} : memref<1x4x4x16xbf16, #tpu.memory_space<vmem>>, vector<1x1x4x16xbf16>,
    %c64_186 = arith.constant 64 : index
    %c0_187 = arith.constant 0 : index
    %152 = vector.load %arg12[%c64_186, %c0_187] : memref<128x16xf32, #tpu.memory_space<vmem>>, vector<32x16xf32>
    %c0_188 = arith.constant 0 : index
    %c0_189 = arith.constant 0 : index
    %153 = vector.load %arg6[%c0_188, %c0_189] : memref<4x32xf32, #tpu.memory_space<vmem>>, vector<4x32xf32>
    %cst_190 = arith.constant dense<0.000000e+00> : vector<4x16xf32>
    %154 = tpu.matmul %153, %152, %cst_190 {dimension_numbers = #tpu.dot_dimension_numbers<[1], [0], [0], [1], [0, 0, 1, 1], [], []>} : vector<4x32xf32>, vector<32x16xf32>, vector<4x16xf32> -> vector<4x16xf32>
    %155 = arith.truncf %154 : vector<4x16xf32> to vector<4x16xbf16>
    %c0_191 = arith.constant 0 : index
    %c2_192 = arith.constant 2 : index
    %c0_193 = arith.constant 0 : index
    %c0_194 = arith.constant 0 : index
    %156 = vector.load %arg8[%c0_191, %c2_192, %c0_193, %c0_194] : memref<1x4x4x16xbf16, #tpu.memory_space<vmem>>, vector<1x1x4x16xbf16>
    %157 = vector.shape_cast %156 : vector<1x1x4x16xbf16> to vector<4x16xbf16>
    %158 = vector.shape_cast %155 : vector<4x16xbf16> to vector<1x1x4x16xbf16>
    tpu.vector_store %arg8[%c0_191, %c2_192, %c0_193, %c0_194], %158 {strides = array<i32>} : memref<1x4x4x16xbf16, #tpu.memory_space<vmem>>, vector<1x1x4x16xbf16>,
    %c96_195 = arith.constant 96 : index
    %c0_196 = arith.constant 0 : index
    %159 = vector.load %arg12[%c96_195, %c0_196] : memref<128x16xf32, #tpu.memory_space<vmem>>, vector<32x16xf32>
    %c0_197 = arith.constant 0 : index
    %c0_198 = arith.constant 0 : index
    %160 = vector.load %arg6[%c0_197, %c0_198] : memref<4x32xf32, #tpu.memory_space<vmem>>, vector<4x32xf32>
    %cst_199 = arith.constant dense<0.000000e+00> : vector<4x16xf32>
    %161 = tpu.matmul %160, %159, %cst_199 {dimension_numbers = #tpu.dot_dimension_numbers<[1], [0], [0], [1], [0, 0, 1, 1], [], []>} : vector<4x32xf32>, vector<32x16xf32>, vector<4x16xf32> -> vector<4x16xf32>
    %162 = arith.truncf %161 : vector<4x16xf32> to vector<4x16xbf16>
    %c0_200 = arith.constant 0 : index
    %c3_201 = arith.constant 3 : index
    %c0_202 = arith.constant 0 : index
    %c0_203 = arith.constant 0 : index
    %163 = vector.load %arg8[%c0_200, %c3_201, %c0_202, %c0_203] : memref<1x4x4x16xbf16, #tpu.memory_space<vmem>>, vector<1x1x4x16xbf16>
    %164 = vector.shape_cast %163 : vector<1x1x4x16xbf16> to vector<4x16xbf16>
    %165 = vector.shape_cast %162 : vector<4x16xbf16> to vector<1x1x4x16xbf16>
    tpu.vector_store %arg8[%c0_200, %c3_201, %c0_202, %c0_203], %165 {strides = array<i32>} : memref<1x4x4x16xbf16, #tpu.memory_space<vmem>>, vector<1x1x4x16xbf16>,
    return
  }
  func.func @transform_0(%arg0: i32) -> (i32, i32, i32) {
    %c0_i32 = arith.constant 0 : i32
    %c0_i32_0 = arith.constant 0 : i32
    %c0_i32_1 = arith.constant 0 : i32
    return %arg0, %c0_i32, %c0_i32_0 : i32, i32, i32
  }
  func.func @transform_1(%arg0: i32) -> (i32, i32) {
    %c0_i32 = arith.constant 0 : i32
    %c0_i32_0 = arith.constant 0 : i32
    %c0_i32_1 = arith.constant 0 : i32
    return %c0_i32, %c0_i32_0 : i32, i32
  }
  func.func @transform_2(%arg0: i32) -> (i32, i32) {
    %c0_i32 = arith.constant 0 : i32
    %c0_i32_0 = arith.constant 0 : i32
    %c0_i32_1 = arith.constant 0 : i32
    return %c0_i32, %c0_i32_0 : i32, i32
  }
  func.func @transform_3(%arg0: i32) -> (i32, i32) {
    %c0_i32 = arith.constant 0 : i32
    %c0_i32_0 = arith.constant 0 : i32
    %c0_i32_1 = arith.constant 0 : i32
    return %c0_i32, %c0_i32_0 : i32, i32
  }
  func.func @transform_4(%arg0: i32) -> (i32, i32) {
    %c0_i32 = arith.constant 0 : i32
    %c0_i32_0 = arith.constant 0 : i32
    %c0_i32_1 = arith.constant 0 : i32
    return %c0_i32, %c0_i32_0 : i32, i32
  }
  func.func @transform_5(%arg0: i32) -> (i32, i32) {
    %c0_i32 = arith.constant 0 : i32
    %c0_i32_0 = arith.constant 0 : i32
    %c0_i32_1 = arith.constant 0 : i32
    return %c0_i32, %c0_i32_0 : i32, i32
  }
  func.func @transform_6(%arg0: i32) -> (i32, i32) {
    %c0_i32 = arith.constant 0 : i32
    %c0_i32_0 = arith.constant 0 : i32
    %c0_i32_1 = arith.constant 0 : i32
    return %c0_i32, %c0_i32_0 : i32, i32
  }
  func.func @transform_7(%arg0: i32) -> (i32, i32, i32, i32) {
    %c0_i32 = arith.constant 0 : i32
    %c0_i32_0 = arith.constant 0 : i32
    %c0_i32_1 = arith.constant 0 : i32
    %c0_i32_2 = arith.constant 0 : i32
    return %arg0, %c0_i32, %c0_i32_0, %c0_i32_1 : i32, i32, i32, i32
  }
  func.func @transform_8(%arg0: i32) -> (i32, i32, i32, i32) {
    %c0_i32 = arith.constant 0 : i32
    %c0_i32_0 = arith.constant 0 : i32
    %c0_i32_1 = arith.constant 0 : i32
    %c0_i32_2 = arith.constant 0 : i32
    return %arg0, %c0_i32, %c0_i32_0, %c0_i32_1 : i32, i32, i32, i32
  }
}

</mosaic_0001>

<llo_original>
// kernel: tpu_custom_call.1
$region0: #{tpu_custom_call.1}
  #allocation0 [shape = 'u32[]', space=smem, size = 0x4, offset = 0x4, fixed_abs, tag = 'smem constant byte address 0x4 - core index']
  #allocation1 [shape = 'u32[144,128]{1,0:T(1,128)}', space=vmem, size = 0x12000, scoped, tag = 'internal scratch']
  #allocation2 [shape = 'bf16[64,16]{1,0:T(16,128)(2,1)}', space=vmem, size = 0x4000, scoped, tag = 'scratch operand']
  #allocation3 [shape = 'bf16[184,16]{1,0:T(8,128)(2,1)}', space=vmem, size = 0xb800, scoped, tag = 'scratch operand']
  #allocation4 [shape = 'f32[128,16]{1,0:T(8,128)}', space=vmem, size = 0x10000, scoped, tag = 'scratch operand']
  %s0 = inlined_call_operand.hbm [shape: bf16[2,64,32], index: 0, kind: input, shape index: {}]
  %s1 = inlined_call_operand.hbm [shape: bf16[32,16], index: 1, kind: input, shape index: {}]
  %s2 = inlined_call_operand.hbm [shape: f32[1,16], index: 2, kind: input, shape index: {}]
  %s3 = inlined_call_operand.hbm [shape: bf16[144,16], index: 3, kind: input, shape index: {}]
  %s4 = inlined_call_operand.hbm [shape: f32[1,16], index: 4, kind: input, shape index: {}]
  %s5 = inlined_call_operand.hbm [shape: f32[4,32], index: 5, kind: input, shape index: {}]
  %s6 = inlined_call_operand.hbm [shape: bf16[4,16], index: 6, kind: input, shape index: {}]
  %s7 = inlined_call_operand.hbm [shape: bf16[2,4,4,16], index: 7, kind: output, shape index: {0}]
  %s8 = inlined_call_operand.hbm [shape: bf16[2,4,4,32], index: 8, kind: output, shape index: {1}]
  %9 = xla_tuple %s7, %s8
  %s10 = sld [smem:[#allocation0]]
  $region97: #{tpu_custom_call.1} parent=0
    _
  %s12 = ssub.s32 1, %s10
  %s13 = scalar_select 0, %s12, %s10
  $region1: #{tpu_custom_call.1} parent=0
    #allocation5 [shape = 'u8[32768]{0}', space=vmem, size = 0x8000, scoped, tag = 'input window, operand 0']
    #allocation6 [shape = 's32[2]{0}', space=sflag, size = 0x8, scoped, tag = 'scoped memory for tpu_custom_call.1']
    #allocation7 [shape = 's32[2]{0}', space=sflag, size = 0x8, scoped, tag = 'scoped memory for tpu_custom_call.1']
    #allocation8 [shape = 'u8[8192]{0}', space=vmem, size = 0x2000, scoped, tag = 'input window, operand 1, single buffered']
    #allocation9 [shape = 's32[1]{0}', space=sflag, size = 0x4, scoped, tag = 'scoped memory for tpu_custom_call.1']
    #allocation10 [shape = 'u8[512]{0}', space=vmem, size = 0x400, scoped, tag = 'input window, operand 2, single buffered']
    #allocation11 [shape = 'u8[36864]{0}', space=vmem, size = 0x9000, scoped, tag = 'input window, operand 3, single buffered']
    #allocation12 [shape = 's32[1]{0}', space=sflag, size = 0x4, scoped, tag = 'scoped memory for tpu_custom_call.1']
    #allocation13 [shape = 'u8[512]{0}', space=vmem, size = 0x400, scoped, tag = 'input window, operand 4, single buffered']
    #allocation14 [shape = 'u8[2048]{0}', space=vmem, size = 0x800, scoped, tag = 'input window, operand 5, single buffered']
    #allocation15 [shape = 's32[1]{0}', space=sflag, size = 0x4, scoped, tag = 'scoped memory for tpu_custom_call.1']
    #allocation16 [shape = 'u8[1024]{0}', space=vmem, size = 0x400, scoped, tag = 'input window, operand 6, single buffered']
    #allocation17 [shape = 'u8[8192]{0}', space=vmem, size = 0x2000, scoped, tag = 'output window, operand 0']
    #allocation18 [shape = 'u8[8192]{0}', space=vmem, size = 0x2000, scoped, tag = 'output window, operand 1']
    #allocation19 [shape = 's32[2]{0}', space=sflag, size = 0x8, scoped, tag = 'scoped memory for tpu_custom_call.1']
    %14 = vsyncpa [#allocation6], 0
    %s15 = scalar_lea.sflag [#allocation6], 1
    %16 = vsyncpa %s15, 0
    %17 = vsyncpa [#allocation9], 0
    %18 = vsyncpa [#allocation12], 0
    %19 = vsyncpa [#allocation15], 0
    %20 = vsyncpa [#allocation7], 0
    %s21 = scalar_lea.sflag [#allocation7], 1
    %22 = vsyncpa %s21, 0
    %23 = vsyncpa [#allocation19], 0
    %s24 = scalar_lea.sflag [#allocation19], 1
    %25 = vsyncpa %s24, 0
    loop: start=0, step=1, limit=4
    $region2: #{tpu_custom_call.1} parent=1 // loop_pre_header
      _
    $region3: #{tpu_custom_call.1} parent=1 // loop_header
      %s27 = sphi 0, %s31
      %p28 = scmp.ge.s32.totalorder %s27, 4
      %s37 = sphi 0, %s39
      %s40 = sphi 0, %s37
      %s41 = sphi 0, %s40
      %s57 = sphi 0, %s41
      %s61 = sphi 0, %s61
      %s63 = sphi 0, %s61
      %s64 = sphi 0, %s63
      %s78 = sphi 0, %s64
      %s82 = sphi 0, %s82
      %s84 = sphi 0, %s82
      %s85 = sphi 0, %s84
      %s99 = sphi 0, %s85
      %s103 = sphi 0, %s103
      %s105 = sphi 0, %s103
      %s106 = sphi 0, %s105
      %s120 = sphi 0, %s106
      %s124 = sphi 0, %s124
      %s126 = sphi 0, %s124
      %s127 = sphi 0, %s126
      %s141 = sphi 0, %s127
      %s145 = sphi 0, %s145
      %s147 = sphi 0, %s145
      %s148 = sphi 0, %s147
      %s162 = sphi 0, %s148
      %s166 = sphi 0, %s166
      %s168 = sphi 0, %s166
      %s169 = sphi 0, %s168
      %s183 = sphi 0, %s169
      %s189 = sphi 0, %s191
      %s192 = sphi 0, %s189
      %s193 = sphi 0, %s192
      %s209 = sphi 0, %s193
      %s215 = sphi 0, %s217
      %s218 = sphi 0, %s215
      %s219 = sphi 0, %s218
      %s235 = sphi 0, %s219
    $region4: #{tpu_custom_call.1} parent=1 // loop_header_branch
      %30 = sbr.rel (%p28) target = $region8
    $region5: #{tpu_custom_call.1} parent=1 // loop_body
      %s32 = ssub.s32 %s27, 1
      %s33 = ssub.s32 %s27, 2
      %s34 = sadd.s32 %s27, 1
      %s35 = ssub.s32 %s27, %s34
      %p36 = scmp.eq.s32.totalorder %s35, 0
      %s38 = sadd.s32 %s37, 1
      %s39 = scalar_select %p36, %s37, %s38
      %p42 = pneg %p36
      %p43 = scmp.eq.s32.totalorder %s27, 1
      %p44 = por %p42, %p43
      %p45 = scmp.ne.s32.totalorder %s37, %s40
      %p46 = scmp.eq.s32.totalorder %s27, 0
      %p47 = por %p45, %p46
      %p48 = scmp.ne.s32.totalorder %s37, %s40
      %p49 = scmp.eq.s32.totalorder %s32, 1
      %p50 = por %p48, %p49
      %p51 = scmp.ne.s32.totalorder %s40, %s41
      %p52 = scmp.eq.s32.totalorder %s32, 0
      %p53 = por %p51, %p52
      %p54 = scmp.ne.s32.totalorder %s40, %s41
      %p55 = scmp.eq.s32.totalorder %s33, 1
      %p56 = por %p54, %p55
      %p58 = scmp.ne.s32.totalorder %s41, %s57
      %p59 = scmp.eq.s32.totalorder %s33, 0
      %p60 = por %p58, %p59
      %s62 = sadd.s32 %s61, 1
      %p65 = scmp.eq.s32.totalorder %s27, 1
      %p66 = scmp.ne.s32.totalorder %s61, %s63
      %p67 = scmp.eq.s32.totalorder %s27, 0
      %p68 = por %p66, %p67
      %p69 = scmp.ne.s32.totalorder %s61, %s63
      %p70 = scmp.eq.s32.totalorder %s32, 1
      %p71 = por %p69, %p70
      %p72 = scmp.ne.s32.totalorder %s63, %s64
      %p73 = scmp.eq.s32.totalorder %s32, 0
      %p74 = por %p72, %p73
      %p75 = scmp.ne.s32.totalorder %s63, %s64
      %p76 = scmp.eq.s32.totalorder %s33, 1
      %p77 = por %p75, %p76
      %p79 = scmp.ne.s32.totalorder %s64, %s78
      %p80 = scmp.eq.s32.totalorder %s33, 0
      %p81 = por %p79, %p80
      %s83 = sadd.s32 %s82, 1
      %p86 = scmp.eq.s32.totalorder %s27, 1
      %p87 = scmp.ne.s32.totalorder %s82, %s84
      %p88 = scmp.eq.s32.totalorder %s27, 0
      %p89 = por %p87, %p88
      %p90 = scmp.ne.s32.totalorder %s82, %s84
      %p91 = scmp.eq.s32.totalorder %s32, 1
      %p92 = por %p90, %p91
      %p93 = scmp.ne.s32.totalorder %s84, %s85
      %p94 = scmp.eq.s32.totalorder %s32, 0
      %p95 = por %p93, %p94
      %p96 = scmp.ne.s32.totalorder %s84, %s85
      %p97 = scmp.eq.s32.totalorder %s33, 1
      %p98 = por %p96, %p97
      %p100 = scmp.ne.s32.totalorder %s85, %s99
      %p101 = scmp.eq.s32.totalorder %s33, 0
      %p102 = por %p100, %p101
      %s104 = sadd.s32 %s103, 1
      %p107 = scmp.eq.s32.totalorder %s27, 1
      %p108 = scmp.ne.s32.totalorder %s103, %s105
      %p109 = scmp.eq.s32.totalorder %s27, 0
      %p110 = por %p108, %p109
      %p111 = scmp.ne.s32.totalorder %s103, %s105
      %p112 = scmp.eq.s32.totalorder %s32, 1
      %p113 = por %p111, %p112
      %p114 = scmp.ne.s32.totalorder %s105, %s106
      %p115 = scmp.eq.s32.totalorder %s32, 0
      %p116 = por %p114, %p115
      %p117 = scmp.ne.s32.totalorder %s105, %s106
      %p118 = scmp.eq.s32.totalorder %s33, 1
      %p119 = por %p117, %p118
      %p121 = scmp.ne.s32.totalorder %s106, %s120
      %p122 = scmp.eq.s32.totalorder %s33, 0
      %p123 = por %p121, %p122
      %s125 = sadd.s32 %s124, 1
      %p128 = scmp.eq.s32.totalorder %s27, 1
      %p129 = scmp.ne.s32.totalorder %s124, %s126
      %p130 = scmp.eq.s32.totalorder %s27, 0
      %p131 = por %p129, %p130
      %p132 = scmp.ne.s32.totalorder %s124, %s126
      %p133 = scmp.eq.s32.totalorder %s32, 1
      %p134 = por %p132, %p133
      %p135 = scmp.ne.s32.totalorder %s126, %s127
      %p136 = scmp.eq.s32.totalorder %s32, 0
      %p137 = por %p135, %p136
      %p138 = scmp.ne.s32.totalorder %s126, %s127
      %p139 = scmp.eq.s32.totalorder %s33, 1
      %p140 = por %p138, %p139
      %p142 = scmp.ne.s32.totalorder %s127, %s141
      %p143 = scmp.eq.s32.totalorder %s33, 0
      %p144 = por %p142, %p143
      %s146 = sadd.s32 %s145, 1
      %p149 = scmp.eq.s32.totalorder %s27, 1
      %p150 = scmp.ne.s32.totalorder %s145, %s147
      %p151 = scmp.eq.s32.totalorder %s27, 0
      %p152 = por %p150, %p151
      %p153 = scmp.ne.s32.totalorder %s145, %s147
      %p154 = scmp.eq.s32.totalorder %s32, 1
      %p155 = por %p153, %p154
      %p156 = scmp.ne.s32.totalorder %s147, %s148
      %p157 = scmp.eq.s32.totalorder %s32, 0
      %p158 = por %p156, %p157
      %p159 = scmp.ne.s32.totalorder %s147, %s148
      %p160 = scmp.eq.s32.totalorder %s33, 1
      %p161 = por %p159, %p160
      %p163 = scmp.ne.s32.totalorder %s148, %s162
      %p164 = scmp.eq.s32.totalorder %s33, 0
      %p165 = por %p163, %p164
      %s167 = sadd.s32 %s166, 1
      %p170 = scmp.eq.s32.totalorder %s27, 1
      %p171 = scmp.ne.s32.totalorder %s166, %s168
      %p172 = scmp.eq.s32.totalorder %s27, 0
      %p173 = por %p171, %p172
      %p174 = scmp.ne.s32.totalorder %s166, %s168
      %p175 = scmp.eq.s32.totalorder %s32, 1
      %p176 = por %p174, %p175
      %p177 = scmp.ne.s32.totalorder %s168, %s169
      %p178 = scmp.eq.s32.totalorder %s32, 0
      %p179 = por %p177, %p178
      %p180 = scmp.ne.s32.totalorder %s168, %s169
      %p181 = scmp.eq.s32.totalorder %s33, 1
      %p182 = por %p180, %p181
      %p184 = scmp.ne.s32.totalorder %s169, %s183
      %p185 = scmp.eq.s32.totalorder %s33, 0
      %p186 = por %p184, %p185
      %s187 = ssub.s32 %s27, %s34
      %p188 = scmp.eq.s32.totalorder %s187, 0
      %s190 = sadd.s32 %s189, 1
      %s191 = scalar_select %p188, %s189, %s190
      %p194 = pneg %p188
      %p195 = scmp.eq.s32.totalorder %s27, 1
      %p196 = por %p194, %p195
      %p197 = scmp.ne.s32.totalorder %s189, %s192
      %p198 = scmp.eq.s32.totalorder %s27, 0
      %p199 = por %p197, %p198
      %p200 = scmp.ne.s32.totalorder %s189, %s192
      %p201 = scmp.eq.s32.totalorder %s32, 1
      %p202 = por %p200, %p201
      %p203 = scmp.ne.s32.totalorder %s192, %s193
      %p204 = scmp.eq.s32.totalorder %s32, 0
      %p205 = por %p203, %p204
      %p206 = scmp.ne.s32.totalorder %s192, %s193
      %p207 = scmp.eq.s32.totalorder %s33, 1
      %p208 = por %p206, %p207
      %p210 = scmp.ne.s32.totalorder %s193, %s209
      %p211 = scmp.eq.s32.totalorder %s33, 0
      %p212 = por %p210, %p211
      %s213 = ssub.s32 %s27, %s34
      %p214 = scmp.eq.s32.totalorder %s213, 0
      %s216 = sadd.s32 %s215, 1
      %s217 = scalar_select %p214, %s215, %s216
      %p220 = pneg %p214
      %p221 = scmp.eq.s32.totalorder %s27, 1
      %p222 = por %p220, %p221
      %p223 = scmp.ne.s32.totalorder %s215, %s218
      %p224 = scmp.eq.s32.totalorder %s27, 0
      %p225 = por %p223, %p224
      %p226 = scmp.ne.s32.totalorder %s215, %s218
      %p227 = scmp.eq.s32.totalorder %s32, 1
      %p228 = por %p226, %p227
      %p229 = scmp.ne.s32.totalorder %s218, %s219
      %p230 = scmp.eq.s32.totalorder %s32, 0
      %p231 = por %p229, %p230
      %p232 = scmp.ne.s32.totalorder %s218, %s219
      %p233 = scmp.eq.s32.totalorder %s33, 1
      %p234 = por %p232, %p233
      %p236 = scmp.ne.s32.totalorder %s219, %s235
      %p237 = scmp.eq.s32.totalorder %s33, 0
      %p238 = por %p236, %p237
      %p239 = scmp.le.s32.totalorder 1, %s27
      %p240 = scmp.lt.s32.totalorder %s27, 3
      %p241 = pnand %p239, %p240
      %p242 = pneg %p241
      // Predicated region
      $region9: #{tpu_custom_call.1} parent=5 // pred_check
        _
      $region10: #{tpu_custom_call.1} parent=5 // pred_check_branch
        %244 = sbr.rel (%p241) target = $region12
      $region11: #{tpu_custom_call.1} parent=5 // pred_region
        %s245 = ssub.s32 %s27, 1
        // Predicated region
        $region13: #{tpu_custom_call.1} parent=11 // pred_check
          %p246 = pneg %p74
        $region14: #{tpu_custom_call.1} parent=11 // pred_check_branch
          %248 = sbr.rel (%p246) target = $region16
        $region15: #{tpu_custom_call.1} parent=11 // pred_region
          %s250 = ssub.s32 256, 256
          %251 = vsyncadd [#allocation9], %s250
          %s252 = sshll.u32 [#allocation8], 4
          %s253 = int_to_ptr.vmem [resolvable:$true] %s252
          %258 = dma.hbm_to_vmem [thread:$0]  %s1, 256, %s253, [#allocation9], 64, 64, 4
        $region16: #{tpu_custom_call.1} parent=11 // pred_fallthru
          _
        // Predicated region
        $region17: #{tpu_custom_call.1} parent=11 // pred_check
          %p259 = pneg %p95
        $region18: #{tpu_custom_call.1} parent=11 // pred_check_branch
          %261 = sbr.rel (%p259) target = $region20
        $region19: #{tpu_custom_call.1} parent=11 // pred_region
          %s263 = ssub.s32 16, 16
          %264 = vsyncadd [#allocation9], %s263
          %s266 = sshll.u32 [#allocation10], 4
          %s267 = int_to_ptr.vmem [resolvable:$true] %s266
          %269 = dma.hbm_to_vmem [thread:$0]  %s2, 16, %s267, [#allocation9]
        $region20: #{tpu_custom_call.1} parent=11 // pred_fallthru
          _
        // Predicated region
        $region21: #{tpu_custom_call.1} parent=11 // pred_check
          %p270 = pneg %p116
        $region22: #{tpu_custom_call.1} parent=11 // pred_check_branch
          %272 = sbr.rel (%p270) target = $region24
        $region23: #{tpu_custom_call.1} parent=11 // pred_region
          %s274 = ssub.s32 1152, 1152
          %275 = vsyncadd [#allocation12], %s274
          %s276 = sshll.u32 [#allocation11], 4
          %s277 = int_to_ptr.vmem [resolvable:$true] %s276
          %282 = dma.hbm_to_vmem [thread:$0]  %s3, 1152, %s277, [#allocation12], 64, 64, 4
        $region24: #{tpu_custom_call.1} parent=11 // pred_fallthru
          _
        // Predicated region
        $region25: #{tpu_custom_call.1} parent=11 // pred_check
          %p283 = pneg %p137
        $region26: #{tpu_custom_call.1} parent=11 // pred_check_branch
          %285 = sbr.rel (%p283) target = $region28
        $region27: #{tpu_custom_call.1} parent=11 // pred_region
          %s287 = ssub.s32 16, 16
          %288 = vsyncadd [#allocation12], %s287
          %s290 = sshll.u32 [#allocation13], 4
          %s291 = int_to_ptr.vmem [resolvable:$true] %s290
          %293 = dma.hbm_to_vmem [thread:$0]  %s4, 16, %s291, [#allocation12]
        $region28: #{tpu_custom_call.1} parent=11 // pred_fallthru
          _
        // Predicated region
        $region29: #{tpu_custom_call.1} parent=11 // pred_check
          %p294 = pneg %p158
        $region30: #{tpu_custom_call.1} parent=11 // pred_check_branch
          %296 = sbr.rel (%p294) target = $region32
        $region31: #{tpu_custom_call.1} parent=11 // pred_region
          %s298 = ssub.s32 64, 64
          %299 = vsyncadd [#allocation15], %s298
          %s301 = sshll.u32 [#allocation14], 4
          %s302 = int_to_ptr.vmem [resolvable:$true] %s301
          %304 = dma.hbm_to_vmem [thread:$0]  %s5, 64, %s302, [#allocation15]
        $region32: #{tpu_custom_call.1} parent=11 // pred_fallthru
          _
        // Predicated region
        $region33: #{tpu_custom_call.1} parent=11 // pred_check
          %p305 = pneg %p179
        $region34: #{tpu_custom_call.1} parent=11 // pred_check_branch
          %307 = sbr.rel (%p305) target = $region36
        $region35: #{tpu_custom_call.1} parent=11 // pred_region
          %s309 = ssub.s32 32, 32
          %310 = vsyncadd [#allocation15], %s309
          %s312 = sshll.u32 [#allocation16], 4
          %s313 = int_to_ptr.vmem [resolvable:$true] %s312
          %315 = dma.hbm_to_vmem [thread:$0]  %s6, 32, %s313, [#allocation15]
        $region36: #{tpu_custom_call.1} parent=11 // pred_fallthru
          _
      $region12: #{tpu_custom_call.1} parent=5 // pred_fallthru
        _
      %p316 = scmp.lt.s32.totalorder %s27, 2
      // Predicated region
      $region37: #{tpu_custom_call.1} parent=5 // pred_check
        %p317 = pneg %p316
      $region38: #{tpu_custom_call.1} parent=5 // pred_check_branch
        %319 = sbr.rel (%p317) target = $region40
      $region39: #{tpu_custom_call.1} parent=5 // pred_region
        // Predicated region
        $region41: #{tpu_custom_call.1} parent=39 // pred_check
          %p320 = pneg %p47
        $region42: #{tpu_custom_call.1} parent=39 // pred_check_branch
          %322 = sbr.rel (%p320) target = $region44
        $region43: #{tpu_custom_call.1} parent=39 // pred_region
          %s323 = sand.u32 %s37, 1
          %s324 = scalar_lea.sflag [#allocation6], %s323
          %s325 = sand.u32 %s37, 1
          %s326 = smul.addr %s325, 32
          %s327 = scalar_lea.vmem [#allocation5], %s326
          %s329 = ssub.s32 512, 512
          %330 = vsyncadd %s324, %s329
          %s331 = smul.addr %s27, 8
          %s332 = smul.addr %s331, 64
          %s333 = scalar_lea.hbm %s0, %s332
          %s334 = sshll.u32 %s327, 4
          %s335 = int_to_ptr.vmem [resolvable:$true] %s334
          %340 = dma.hbm_to_vmem [thread:$0]  %s333, 512, %s335, %s324, 64, 64, 4
        $region44: #{tpu_custom_call.1} parent=39 // pred_fallthru
          _
      $region40: #{tpu_custom_call.1} parent=5 // pred_fallthru
        _
      %p341 = scmp.le.s32.totalorder 1, %s27
      %p342 = scmp.lt.s32.totalorder %s27, 3
      %p343 = pnand %p341, %p342
      %p344 = pneg %p343
      // Predicated region
      $region45: #{tpu_custom_call.1} parent=5 // pred_check
        _
      $region46: #{tpu_custom_call.1} parent=5 // pred_check_branch
        %346 = sbr.rel (%p343) target = $region48
      $region47: #{tpu_custom_call.1} parent=5 // pred_region
        %s347 = ssub.s32 %s27, 1
        %s348 = sand.u32 %s40, 1
        %s349 = scalar_lea.sflag [#allocation6], %s348
        %s350 = sand.u32 %s40, 1
        %s351 = smul.addr %s350, 32
        %s352 = scalar_lea.vmem [#allocation5], %s351
        // Predicated region
        $region49: #{tpu_custom_call.1} parent=47 // pred_check
          %p353 = pneg %p53
        $region50: #{tpu_custom_call.1} parent=47 // pred_check_branch
          %355 = sbr.rel (%p353) target = $region52
        $region51: #{tpu_custom_call.1} parent=47 // pred_region
          %356 = dma.done %s349, 512
        $region52: #{tpu_custom_call.1} parent=47 // pred_fallthru
          _
        // Predicated region
        $region53: #{tpu_custom_call.1} parent=47 // pred_check
          %p357 = pneg %p74
        $region54: #{tpu_custom_call.1} parent=47 // pred_check_branch
          %359 = sbr.rel (%p357) target = $region56
        $region55: #{tpu_custom_call.1} parent=47 // pred_region
          %360 = dma.done [#allocation9], 256
        $region56: #{tpu_custom_call.1} parent=47 // pred_fallthru
          _
        // Predicated region
        $region57: #{tpu_custom_call.1} parent=47 // pred_check
          %p361 = pneg %p95
        $region58: #{tpu_custom_call.1} parent=47 // pred_check_branch
          %363 = sbr.rel (%p361) target = $region60
        $region59: #{tpu_custom_call.1} parent=47 // pred_region
          %364 = dma.done [#allocation9], 16
        $region60: #{tpu_custom_call.1} parent=47 // pred_fallthru
          _
        // Predicated region
        $region61: #{tpu_custom_call.1} parent=47 // pred_check
          %p365 = pneg %p116
        $region62: #{tpu_custom_call.1} parent=47 // pred_check_branch
          %367 = sbr.rel (%p365) target = $region64
        $region63: #{tpu_custom_call.1} parent=47 // pred_region
          %368 = dma.done [#allocation12], 1152
        $region64: #{tpu_custom_call.1} parent=47 // pred_fallthru
          _
        // Predicated region
        $region65: #{tpu_custom_call.1} parent=47 // pred_check
          %p369 = pneg %p137
        $region66: #{tpu_custom_call.1} parent=47 // pred_check_branch
          %371 = sbr.rel (%p369) target = $region68
        $region67: #{tpu_custom_call.1} parent=47 // pred_region
          %372 = dma.done [#allocation12], 16
        $region68: #{tpu_custom_call.1} parent=47 // pred_fallthru
          _
        // Predicated region
        $region69: #{tpu_custom_call.1} parent=47 // pred_check
          %p373 = pneg %p158
        $region70: #{tpu_custom_call.1} parent=47 // pred_check_branch
          %375 = sbr.rel (%p373) target = $region72
        $region71: #{tpu_custom_call.1} parent=47 // pred_region
          %376 = dma.done [#allocation15], 64
        $region72: #{tpu_custom_call.1} parent=47 // pred_fallthru
          _
        // Predicated region
        $region73: #{tpu_custom_call.1} parent=47 // pred_check
          %p377 = pneg %p179
        $region74: #{tpu_custom_call.1} parent=47 // pred_check_branch
          %379 = sbr.rel (%p377) target = $region76
        $region75: #{tpu_custom_call.1} parent=47 // pred_region
          %380 = dma.done [#allocation15], 32
        $region76: #{tpu_custom_call.1} parent=47 // pred_fallthru
          _
        %s381 = sand.u32 %s40, 1
        %s382 = scalar_lea.sflag [#allocation6], %s381
        %s383 = sand.u32 %s40, 1
        %s384 = smul.addr %s383, 32
        %s385 = scalar_lea.vmem [#allocation5], %s384
        %p386 = pneg %p53
        %p387 = pneg %p50
        %p388 = pneg %p74
        %p389 = pneg %p71
        %p390 = pneg %p95
        %p391 = pneg %p92
        %p392 = pneg %p116
        %p393 = pneg %p113
        %p394 = pneg %p137
        %p395 = pneg %p134
        %p396 = pneg %p158
        %p397 = pneg %p155
        %p398 = pneg %p179
        %p399 = pneg %p176
        %p400 = pneg %p205
        %p401 = pneg %p202
        %s402 = sand.u32 %s192, 1
        %s403 = scalar_lea.sflag [#allocation7], %s402
        %s404 = sand.u32 %s192, 1
        %s405 = smul.addr %s404, 8
        %s406 = scalar_lea.vmem [#allocation17], %s405
        %p407 = pneg %p231
        %p408 = pneg %p228
        %s409 = sand.u32 %s218, 1
        %s410 = scalar_lea.sflag [#allocation19], %s409
        %s411 = sand.u32 %s218, 1
        %s412 = smul.addr %s411, 8
        %s413 = scalar_lea.vmem [#allocation18], %s412
        %v415 = vld [vmem:[%s352] sm:$0xf]
        %v416 = vld [vmem:[%s352 + $0x4] sm:$0xf]
        %v417 = vld [vmem:[%s352 + $0x8] sm:$0xf]
        %v418 = vld [vmem:[%s352 + $0xc] sm:$0xf]
        %v419 = vld [vmem:[%s352 + $0x10] sm:$0xf]
        %v420 = vld [vmem:[%s352 + $0x14] sm:$0xf]
        %v421 = vld [vmem:[%s352 + $0x18] sm:$0xf]
        %v422 = vld [vmem:[%s352 + $0x1c] sm:$0xf]
        %v423 = vld [vmem:[#allocation8] sm:$0xf]
        %v424 = vld [vmem:[#allocation8 + $0x4] sm:$0xf]
        %v425 = vld [vmem:[#allocation8 + $0x8] sm:$0xf]
        %v426 = vld [vmem:[#allocation8 + $0xc] sm:$0xf]
        %v427 = vld [vmem:[#allocation10] sm:$0x1]
        %v429 = vlaneseq
        %v430 = vshrl.u32 %v429, 7
        %v431 = vsub.s32 0, %v430
        %v432 = vrot.slane %v427, %v431
        %v442 = vunpack.c.l.b16 %v415
        %v443 = vunpack.c.l.b16 %v416
        %v444 = vunpack.c.l.b16 %v417
        %v445 = vunpack.c.l.b16 %v418
        %v446 = vunpack.c.l.b16 %v419
        %v447 = vunpack.c.l.b16 %v420
        %v448 = vunpack.c.l.b16 %v421
        %v449 = vunpack.c.l.b16 %v422
        %v450 = vpack.c.b16 %v443, %v442
        %v451 = vpack.c.b16 %v445, %v444
        %v452 = vpack.c.b16 %v447, %v446
        %v453 = vpack.c.b16 %v449, %v448
        %v458 = vunpack.c.l.b16 %v423
        %v459 = vunpack.c.l.b16 %v424
        %v460 = vunpack.c.l.b16 %v425
        %v461 = vunpack.c.l.b16 %v426
        %v462 = vpack.c.b16 %v459, %v458
        %v463 = vpack.c.b16 %v461, %v460
        %vm466 = vcmask 261120
        %v468 = vsel %vm466, %v450, 0
        %v471 = vsel %vm466, %v451, 0
        %v474 = vsel %vm466, %v452, 0
        %v477 = vsel %vm466, %v453, 0
        %479 = vmatprep.subr.bf16.mxu0 0
        %480 = vmatpush1.bf16.msra.mxu0 %v462
        %481 = vmatprep.subr.bf16.mxu0 0
        %482 = vmatpush1.bf16.msra.mxu0 %v463
        %483 = vmatprep.subr.bf16.mxu0 0
        %484 = vmatpush1.bf16.msra.mxu0 0
        %485 = vmatprep.subr.bf16.mxu0 0
        %486 = vmatpush1.bf16.msra.mxu0 0
        %487 = vmatprep.subr.bf16.mxu0 0
        %488 = vmatpush1.bf16.msra.mxu0 0
        %489 = vmatprep.subr.bf16.mxu0 0
        %490 = vmatpush1.bf16.msra.mxu0 0
        %491 = vmatprep.subr.bf16.mxu0 0
        %492 = vmatpush1.bf16.msra.mxu0 0
        %493 = vmatprep.subr.bf16.mxu0 0
        %494 = vmatpush1.bf16.msra.mxu0 0
        %495 = vmatprep.subr.bf16.mxu0 0
        %496 = vmatpush1.bf16.msra.mxu0 0
        %497 = vmatprep.subr.bf16.mxu0 0
        %498 = vmatpush1.bf16.msra.mxu0 0
        %499 = vmatprep.subr.bf16.mxu0 0
        %500 = vmatpush1.bf16.msra.mxu0 0
        %501 = vmatprep.subr.bf16.mxu0 0
        %502 = vmatpush1.bf16.msra.mxu0 0
        %503 = vmatprep.subr.bf16.mxu0 0
        %504 = vmatpush1.bf16.msra.mxu0 0
        %505 = vmatprep.subr.bf16.mxu0 0
        %506 = vmatpush1.bf16.msra.mxu0 0
        %507 = vmatprep.subr.bf16.mxu0 0
        %508 = vmatpush1.bf16.msra.mxu0 0
        %509 = vmatprep.subr.bf16.mxu0 0
        %510 = vmatpush1.bf16.msra.mxu0 0
        %511 = vmatprep.mubr.bf16.mxu0 0
        %512 = vmatmul.mubr.bf16.gmra.mrb[0].mxu0 %v468
        %v513 = vpop.f32.mrb[0].mxu0
        %v514 = vadd.f32 %v432, %v513
        %v515 = vpop.f32.mrb[0].mxu0
        %v516 = vpop.f32.mrb[0].mxu0
        %v517 = vadd.f32 %v432, %v516
        %v518 = vpop.f32.mrb[0].mxu0
        %519 = vmatprep.mubr.bf16.mxu0 0
        %520 = vmatmul.mubr.bf16.gmra.mrb[0].mxu0 %v471
        %v521 = vpop.f32.mrb[0].mxu0
        %v522 = vadd.f32 %v432, %v521
        %v523 = vpop.f32.mrb[0].mxu0
        %v524 = vpop.f32.mrb[0].mxu0
        %v525 = vadd.f32 %v432, %v524
        %v526 = vpop.f32.mrb[0].mxu0
        %527 = vmatprep.mubr.bf16.mxu0 0
        %528 = vmatmul.mubr.bf16.gmra.mrb[0].mxu0 %v474
        %v529 = vpop.f32.mrb[0].mxu0
        %v530 = vadd.f32 %v432, %v529
        %v531 = vpop.f32.mrb[0].mxu0
        %v532 = vpop.f32.mrb[0].mxu0
        %v533 = vadd.f32 %v432, %v532
        %v534 = vpop.f32.mrb[0].mxu0
        %535 = vmatprep.mubr.bf16.mxu0 0
        %536 = vmatmul.mubr.bf16.gmra.mrb[0].mxu0 %v477
        %v537 = vpop.f32.mrb[0].mxu0
        %v538 = vadd.f32 %v432, %v537
        %v539 = vpop.f32.mrb[0].mxu0
        %v540 = vpop.f32.mrb[0].mxu0
        %v541 = vadd.f32 %v432, %v540
        %v542 = vpop.f32.mrb[0].mxu0
        %543 = vdwg.mxu0
        %v544 = vmax.f32 %v514, 0.0
        %v545 = vmax.f32 %v517, 0.0
        %v546 = vmax.f32 %v522, 0.0
        %v547 = vmax.f32 %v525, 0.0
        %v548 = vmax.f32 %v530, 0.0
        %v549 = vmax.f32 %v533, 0.0
        %v550 = vmax.f32 %v538, 0.0
        %v551 = vmax.f32 %v541, 0.0
        %v552 = vpack.c.bf16 %v545, %v544
        %v553 = vpack.c.bf16 %v547, %v546
        %v554 = vpack.c.bf16 %v549, %v548
        %v555 = vpack.c.bf16 %v551, %v550
        %vm556 = vcmask 130048
        %557 = vst.msk [vmem:[#allocation2] sm:$0xff] %vm556, %v552
        %558 = vst.msk [vmem:[#allocation2 + $0x8] sm:$0xff] %vm556, %v553
        %559 = vst.msk [vmem:[#allocation2 + $0x10] sm:$0xff] %vm556, %v554
        %560 = vst.msk [vmem:[#allocation2 + $0x18] sm:$0xff] %vm556, %v555
        %v561 = vld [vmem:[#allocation16] sm:$0x3]
        %v562 = vld [vmem:[%s352] sm:$0xf]
        %v563 = vld [vmem:[%s352 + $0x4] sm:$0xf]
        %v566 = vunpack.c.l.b16 %v562
        %v567 = vunpack.c.l.b16 %v563
        %v568 = vpack.c.b16 %v567, %v566
        %v571 = vsel %vm556, %v561, 0
        %573 = vmatprep.subr.bf16.mxu0 0
        %574 = vmatpush1.bf16.msra.mxu0 %v568
        %575 = vmatprep.subr.bf16.mxu0 0
        %576 = vmatpush1.bf16.msra.mxu0 0
        %577 = vmatprep.subr.bf16.mxu0 0
        %578 = vmatpush1.bf16.msra.mxu0 0
        %579 = vmatprep.subr.bf16.mxu0 0
        %580 = vmatpush1.bf16.msra.mxu0 0
        %581 = vmatprep.subr.bf16.mxu0 0
        %582 = vmatpush1.bf16.msra.mxu0 0
        %583 = vmatprep.subr.bf16.mxu0 0
        %584 = vmatpush1.bf16.msra.mxu0 0
        %585 = vmatprep.subr.bf16.mxu0 0
        %586 = vmatpush1.bf16.msra.mxu0 0
        %587 = vmatprep.subr.bf16.mxu0 0
        %588 = vmatpush1.bf16.msra.mxu0 0
        %589 = vmatprep.subr.bf16.mxu0 0
        %590 = vmatpush1.bf16.msra.mxu0 0
        %591 = vmatprep.subr.bf16.mxu0 0
        %592 = vmatpush1.bf16.msra.mxu0 0
        %593 = vmatprep.subr.bf16.mxu0 0
        %594 = vmatpush1.bf16.msra.mxu0 0
        %595 = vmatprep.subr.bf16.mxu0 0
        %596 = vmatpush1.bf16.msra.mxu0 0
        %597 = vmatprep.subr.bf16.mxu0 0
        %598 = vmatpush1.bf16.msra.mxu0 0
        %599 = vmatprep.subr.bf16.mxu0 0
        %600 = vmatpush1.bf16.msra.mxu0 0
        %601 = vmatprep.subr.bf16.mxu0 0
        %602 = vmatpush1.bf16.msra.mxu0 0
        %603 = vmatprep.subr.bf16.mxu0 0
        %604 = vmatpush1.bf16.msra.mxu0 0
        %605 = vmatprep.mubr.bf16.mxu0 0
        %606 = vmatmul.mubr.bf16.gmra.mrb[0].mxu0 %v571
        %v607 = vpop.f32.mrb[0].mxu0
        %v608 = vadd.f32 0.0, %v607
        %v609 = vpop.f32.mrb[0].mxu0
        %v610 = vpop.f32.mrb[0].mxu0
        %v611 = vpop.f32.mrb[0].mxu0
        %612 = vdwg.mxu0
        %v613 = vpack.c.bf16 %v608, %v608
        %vm614 = vcmask 254976
        %615 = vst.msk [vmem:[%s413] sm:$0x3] %vm614, %v613
        %v616 = vld [vmem:[#allocation16] sm:$0x3]
        %v617 = vld [vmem:[%s352 + $0x8] sm:$0xf]
        %v618 = vld [vmem:[%s352 + $0xc] sm:$0xf]
        %v621 = vunpack.c.l.b16 %v617
        %v622 = vunpack.c.l.b16 %v618
        %v623 = vpack.c.b16 %v622, %v621
        %v626 = vsel %vm556, %v616, 0
        %628 = vmatprep.subr.bf16.mxu0 0
        %629 = vmatpush1.bf16.msra.mxu0 %v623
        %630 = vmatprep.subr.bf16.mxu0 0
        %631 = vmatpush1.bf16.msra.mxu0 0
        %632 = vmatprep.subr.bf16.mxu0 0
        %633 = vmatpush1.bf16.msra.mxu0 0
        %634 = vmatprep.subr.bf16.mxu0 0
        %635 = vmatpush1.bf16.msra.mxu0 0
        %636 = vmatprep.subr.bf16.mxu0 0
        %637 = vmatpush1.bf16.msra.mxu0 0
        %638 = vmatprep.subr.bf16.mxu0 0
        %639 = vmatpush1.bf16.msra.mxu0 0
        %640 = vmatprep.subr.bf16.mxu0 0
        %641 = vmatpush1.bf16.msra.mxu0 0
        %642 = vmatprep.subr.bf16.mxu0 0
        %643 = vmatpush1.bf16.msra.mxu0 0
        %644 = vmatprep.subr.bf16.mxu0 0
        %645 = vmatpush1.bf16.msra.mxu0 0
        %646 = vmatprep.subr.bf16.mxu0 0
        %647 = vmatpush1.bf16.msra.mxu0 0
        %648 = vmatprep.subr.bf16.mxu0 0
        %649 = vmatpush1.bf16.msra.mxu0 0
        %650 = vmatprep.subr.bf16.mxu0 0
        %651 = vmatpush1.bf16.msra.mxu0 0
        %652 = vmatprep.subr.bf16.mxu0 0
        %653 = vmatpush1.bf16.msra.mxu0 0
        %654 = vmatprep.subr.bf16.mxu0 0
        %655 = vmatpush1.bf16.msra.mxu0 0
        %656 = vmatprep.subr.bf16.mxu0 0
        %657 = vmatpush1.bf16.msra.mxu0 0
        %658 = vmatprep.subr.bf16.mxu0 0
        %659 = vmatpush1.bf16.msra.mxu0 0
        %660 = vmatprep.mubr.bf16.mxu0 0
        %661 = vmatmul.mubr.bf16.gmra.mrb[0].mxu0 %v626
        %v662 = vpop.f32.mrb[0].mxu0
        %v663 = vadd.f32 0.0, %v662
        %v664 = vpop.f32.mrb[0].mxu0
        %v665 = vpop.f32.mrb[0].mxu0
        %v666 = vpop.f32.mrb[0].mxu0
        %667 = vdwg.mxu0
        %v668 = vpack.c.bf16 %v663, %v663
        %s669 = scalar_lea.vmem %s413, 2 [#allocation18]
        %670 = vst.msk [vmem:[%s669] sm:$0x3] %vm614, %v668
        %v671 = vld [vmem:[#allocation16] sm:$0x3]
        %v672 = vld [vmem:[%s352 + $0x10] sm:$0xf]
        %v673 = vld [vmem:[%s352 + $0x14] sm:$0xf]
        %v676 = vunpack.c.l.b16 %v672
        %v677 = vunpack.c.l.b16 %v673
        %v678 = vpack.c.b16 %v677, %v676
        %v681 = vsel %vm556, %v671, 0
        %683 = vmatprep.subr.bf16.mxu0 0
        %684 = vmatpush1.bf16.msra.mxu0 %v678
        %685 = vmatprep.subr.bf16.mxu0 0
        %686 = vmatpush1.bf16.msra.mxu0 0
        %687 = vmatprep.subr.bf16.mxu0 0
        %688 = vmatpush1.bf16.msra.mxu0 0
        %689 = vmatprep.subr.bf16.mxu0 0
        %690 = vmatpush1.bf16.msra.mxu0 0
        %691 = vmatprep.subr.bf16.mxu0 0
        %692 = vmatpush1.bf16.msra.mxu0 0
        %693 = vmatprep.subr.bf16.mxu0 0
        %694 = vmatpush1.bf16.msra.mxu0 0
        %695 = vmatprep.subr.bf16.mxu0 0
        %696 = vmatpush1.bf16.msra.mxu0 0
        %697 = vmatprep.subr.bf16.mxu0 0
        %698 = vmatpush1.bf16.msra.mxu0 0
        %699 = vmatprep.subr.bf16.mxu0 0
        %700 = vmatpush1.bf16.msra.mxu0 0
        %701 = vmatprep.subr.bf16.mxu0 0
        %702 = vmatpush1.bf16.msra.mxu0 0
        %703 = vmatprep.subr.bf16.mxu0 0
        %704 = vmatpush1.bf16.msra.mxu0 0
        %705 = vmatprep.subr.bf16.mxu0 0
        %706 = vmatpush1.bf16.msra.mxu0 0
        %707 = vmatprep.subr.bf16.mxu0 0
        %708 = vmatpush1.bf16.msra.mxu0 0
        %709 = vmatprep.subr.bf16.mxu0 0
        %710 = vmatpush1.bf16.msra.mxu0 0
        %711 = vmatprep.subr.bf16.mxu0 0
        %712 = vmatpush1.bf16.msra.mxu0 0
        %713 = vmatprep.subr.bf16.mxu0 0
        %714 = vmatpush1.bf16.msra.mxu0 0
        %715 = vmatprep.mubr.bf16.mxu0 0
        %716 = vmatmul.mubr.bf16.gmra.mrb[0].mxu0 %v681
        %v717 = vpop.f32.mrb[0].mxu0
        %v718 = vadd.f32 0.0, %v717
        %v719 = vpop.f32.mrb[0].mxu0
        %v720 = vpop.f32.mrb[0].mxu0
        %v721 = vpop.f32.mrb[0].mxu0
        %722 = vdwg.mxu0
        %v723 = vpack.c.bf16 %v718, %v718
        %s724 = scalar_lea.vmem %s413, 4 [#allocation18]
        %725 = vst.msk [vmem:[%s724] sm:$0x3] %vm614, %v723
        %v726 = vld [vmem:[#allocation16] sm:$0x3]
        %v727 = vld [vmem:[%s352 + $0x18] sm:$0xf]
        %v728 = vld [vmem:[%s352 + $0x1c] sm:$0xf]
        %v731 = vunpack.c.l.b16 %v727
        %v732 = vunpack.c.l.b16 %v728
        %v733 = vpack.c.b16 %v732, %v731
        %v736 = vsel %vm556, %v726, 0
        %738 = vmatprep.subr.bf16.mxu0 0
        %739 = vmatpush1.bf16.msra.mxu0 %v733
        %740 = vmatprep.subr.bf16.mxu0 0
        %741 = vmatpush1.bf16.msra.mxu0 0
        %742 = vmatprep.subr.bf16.mxu0 0
        %743 = vmatpush1.bf16.msra.mxu0 0
        %744 = vmatprep.subr.bf16.mxu0 0
        %745 = vmatpush1.bf16.msra.mxu0 0
        %746 = vmatprep.subr.bf16.mxu0 0
        %747 = vmatpush1.bf16.msra.mxu0 0
        %748 = vmatprep.subr.bf16.mxu0 0
        %749 = vmatpush1.bf16.msra.mxu0 0
        %750 = vmatprep.subr.bf16.mxu0 0
        %751 = vmatpush1.bf16.msra.mxu0 0
        %752 = vmatprep.subr.bf16.mxu0 0
        %753 = vmatpush1.bf16.msra.mxu0 0
        %754 = vmatprep.subr.bf16.mxu0 0
        %755 = vmatpush1.bf16.msra.mxu0 0
        %756 = vmatprep.subr.bf16.mxu0 0
        %757 = vmatpush1.bf16.msra.mxu0 0
        %758 = vmatprep.subr.bf16.mxu0 0
        %759 = vmatpush1.bf16.msra.mxu0 0
        %760 = vmatprep.subr.bf16.mxu0 0
        %761 = vmatpush1.bf16.msra.mxu0 0
        %762 = vmatprep.subr.bf16.mxu0 0
        %763 = vmatpush1.bf16.msra.mxu0 0
        %764 = vmatprep.subr.bf16.mxu0 0
        %765 = vmatpush1.bf16.msra.mxu0 0
        %766 = vmatprep.subr.bf16.mxu0 0
        %767 = vmatpush1.bf16.msra.mxu0 0
        %768 = vmatprep.subr.bf16.mxu0 0
        %769 = vmatpush1.bf16.msra.mxu0 0
        %770 = vmatprep.mubr.bf16.mxu0 0
        %771 = vmatmul.mubr.bf16.gmra.mrb[0].mxu0 %v736
        %v772 = vpop.f32.mrb[0].mxu0
        %v773 = vadd.f32 0.0, %v772
        %v774 = vpop.f32.mrb[0].mxu0
        %v775 = vpop.f32.mrb[0].mxu0
        %v776 = vpop.f32.mrb[0].mxu0
        %777 = vdwg.mxu0
        %v778 = vpack.c.bf16 %v773, %v773
        %s779 = scalar_lea.vmem %s413, 6 [#allocation18]
        %780 = vst.msk [vmem:[%s779] sm:$0x3] %vm614, %v778
        %vm781 = vcmask 125952
        %782 = vst.msk [vmem:[#allocation3] sm:$0xf] %vm781, 0
        %783 = vst.msk [vmem:[#allocation3 + $0x4] sm:$0xf] %vm781, 0
        %784 = vst.msk [vmem:[#allocation3 + $0x8] sm:$0xf] %vm781, 0
        %785 = vst.msk [vmem:[#allocation3 + $0xc] sm:$0xf] %vm781, 0
        %v786 = vld [vmem:[#allocation2] sm:$0xf]
        %787 = vst.msk [vmem:[#allocation3 + $0x10] sm:$0xf] %vm781, %v786
        %788 = vst.msk [vmem:[#allocation3 + $0x14] sm:$0xf] %vm781, 0
        %v789 = vld [vmem:[#allocation2] sm:$0xf0]
        %v791 = vunpack.c.h.b16 %v789
        %v792 = vpack.c.b16 %v791, %v791
        %794 = vst.msk [vmem:[#allocation3 + $0x18] sm:$0xf] %vm781, %v792
        %795 = vst.msk [vmem:[#allocation3 + $0x1c] sm:$0xf] %vm781, 0
        %v796 = vld [vmem:[#allocation2 + $0x8] sm:$0xf]
        %797 = vst.msk [vmem:[#allocation3 + $0x20] sm:$0xf] %vm781, %v796
        %798 = vst.msk [vmem:[#allocation3 + $0x24] sm:$0xf] %vm781, 0
        %v799 = vld [vmem:[#allocation2 + $0x8] sm:$0xf0]
        %v801 = vunpack.c.h.b16 %v799
        %v802 = vpack.c.b16 %v801, %v801
        %804 = vst.msk [vmem:[#allocation3 + $0x28] sm:$0xf] %vm781, %v802
        %805 = vst.msk [vmem:[#allocation3 + $0x2c] sm:$0xf] %vm781, 0
        %v806 = vld [vmem:[#allocation2 + $0x10] sm:$0xf]
        %807 = vst.msk [vmem:[#allocation3 + $0x30] sm:$0xf] %vm781, %v806
        %808 = vst.msk [vmem:[#allocation3 + $0x34] sm:$0xf] %vm781, 0
        %v809 = vld [vmem:[#allocation2 + $0x10] sm:$0xf0]
        %v811 = vunpack.c.h.b16 %v809
        %v812 = vpack.c.b16 %v811, %v811
        %814 = vst.msk [vmem:[#allocation3 + $0x38] sm:$0xf] %vm781, %v812
        %815 = vst.msk [vmem:[#allocation3 + $0x3c] sm:$0xf] %vm781, 0
        %v816 = vld [vmem:[#allocation2 + $0x18] sm:$0xf]
        %817 = vst.msk [vmem:[#allocation3 + $0x40] sm:$0xf] %vm781, %v816
        %818 = vst.msk [vmem:[#allocation3 + $0x44] sm:$0xf] %vm781, 0
        %v819 = vld [vmem:[#allocation2 + $0x18] sm:$0xf0]
        %v821 = vunpack.c.h.b16 %v819
        %v822 = vpack.c.b16 %v821, %v821
        %824 = vst.msk [vmem:[#allocation3 + $0x48] sm:$0xf] %vm781, %v822
        %825 = vst.msk [vmem:[#allocation3 + $0x4c] sm:$0xf] %vm781, 0
        %826 = vst.msk [vmem:[#allocation3 + $0x50] sm:$0xf] %vm781, 0
        %827 = vst.msk [vmem:[#allocation3 + $0x54] sm:$0xf] %vm781, 0
        %828 = vst.msk [vmem:[#allocation3 + $0x58] sm:$0xf] %vm781, 0
        %v829 = vld [vmem:[#allocation3 + $0x4] sm:$0x8]
        %v830 = vld [vmem:[#allocation3 + $0x8] sm:$0xf]
        %v831 = vld [vmem:[#allocation3 + $0xc] sm:$0xf]
        %v832 = vld [vmem:[#allocation3 + $0x10] sm:$0xf]
        %v833 = vld [vmem:[#allocation3 + $0x14] sm:$0xf]
        %v834 = vld [vmem:[#allocation3 + $0x18] sm:$0xf]
        %v835 = vld [vmem:[#allocation3 + $0x1c] sm:$0xf]
        %v836 = vld [vmem:[#allocation3 + $0x20] sm:$0xf]
        %v837 = vld [vmem:[#allocation3 + $0x24] sm:$0xf]
        %v838 = vld [vmem:[#allocation3 + $0x28] sm:$0xf]
        %v839 = vld [vmem:[#allocation3 + $0x2c] sm:$0xf]
        %v840 = vld [vmem:[#allocation3 + $0x30] sm:$0xf]
        %v841 = vld [vmem:[#allocation3 + $0x34] sm:$0xf]
        %v842 = vld [vmem:[#allocation3 + $0x38] sm:$0xf]
        %v843 = vld [vmem:[#allocation3 + $0x3c] sm:$0xf]
        %v844 = vld [vmem:[#allocation3 + $0x40] sm:$0xf]
        %v845 = vld [vmem:[#allocation3 + $0x44] sm:$0xf]
        %v846 = vld [vmem:[#allocation11] sm:$0xf]
        %v847 = vld [vmem:[#allocation11 + $0x4] sm:$0xf]
        %v865 = vunpack.c.l.b16 %v829
        %v866 = vunpack.c.l.b16 %v830
        %v867 = vunpack.c.l.b16 %v831
        %v868 = vunpack.c.l.b16 %v832
        %v869 = vunpack.c.l.b16 %v833
        %v870 = vunpack.c.l.b16 %v834
        %v871 = vunpack.c.l.b16 %v835
        %v872 = vunpack.c.l.b16 %v836
        %v873 = vunpack.c.l.b16 %v837
        %v874 = vunpack.c.l.b16 %v838
        %v875 = vunpack.c.l.b16 %v839
        %v876 = vunpack.c.l.b16 %v840
        %v877 = vunpack.c.l.b16 %v841
        %v878 = vunpack.c.l.b16 %v842
        %v879 = vunpack.c.l.b16 %v843
        %v880 = vunpack.c.l.b16 %v844
        %v881 = vunpack.c.l.b16 %v845
        %v882 = vpack.c.b16 %v866, %v865
        %v883 = vpack.c.b16 %v868, %v867
        %v884 = vpack.c.b16 %v870, %v869
        %v885 = vpack.c.b16 %v872, %v871
        %v886 = vpack.c.b16 %v874, %v873
        %v887 = vpack.c.b16 %v876, %v875
        %v888 = vpack.c.b16 %v878, %v877
        %v889 = vpack.c.b16 %v880, %v879
        %v890 = vpack.c.b16 %v881, %v881
        %vm891 = vsmask.f32 4352
        %v893 = vshrl.u32 %v882, 16
        %v895 = vrot.slane %v893, 3
        %v896 = vshll.u32 %v882, 16
        %v898 = vrot.slane %v896, 4
        %v899 = vor.u32 %v895, %v898
        %v901 = vshrl.u32 %v883, 16
        %v903 = vrot.slane %v901, 3
        %v904 = vshll.u32 %v883, 16
        %v906 = vrot.slane %v904, 4
        %v907 = vor.u32 %v903, %v906
        %v908 = vsel %vm891, %v899, %v907
        %v910 = vshrl.u32 %v884, 16
        %v912 = vrot.slane %v910, 3
        %v913 = vshll.u32 %v884, 16
        %v915 = vrot.slane %v913, 4
        %v916 = vor.u32 %v912, %v915
        %v917 = vsel %vm891, %v907, %v916
        %v919 = vshrl.u32 %v885, 16
        %v921 = vrot.slane %v919, 3
        %v922 = vshll.u32 %v885, 16
        %v924 = vrot.slane %v922, 4
        %v925 = vor.u32 %v921, %v924
        %v926 = vsel %vm891, %v916, %v925
        %v928 = vshrl.u32 %v886, 16
        %v930 = vrot.slane %v928, 3
        %v931 = vshll.u32 %v886, 16
        %v933 = vrot.slane %v931, 4
        %v934 = vor.u32 %v930, %v933
        %v935 = vsel %vm891, %v925, %v934
        %v937 = vshrl.u32 %v887, 16
        %v939 = vrot.slane %v937, 3
        %v940 = vshll.u32 %v887, 16
        %v942 = vrot.slane %v940, 4
        %v943 = vor.u32 %v939, %v942
        %v944 = vsel %vm891, %v934, %v943
        %v946 = vshrl.u32 %v888, 16
        %v948 = vrot.slane %v946, 3
        %v949 = vshll.u32 %v888, 16
        %v951 = vrot.slane %v949, 4
        %v952 = vor.u32 %v948, %v951
        %v953 = vsel %vm891, %v943, %v952
        %v955 = vshrl.u32 %v889, 16
        %v957 = vrot.slane %v955, 3
        %v958 = vshll.u32 %v889, 16
        %v960 = vrot.slane %v958, 4
        %v961 = vor.u32 %v957, %v960
        %v962 = vsel %vm891, %v952, %v961
        %v964 = vshrl.u32 %v890, 16
        %v966 = vrot.slane %v964, 3
        %v967 = vshll.u32 %v890, 16
        %v969 = vrot.slane %v967, 4
        %v970 = vor.u32 %v966, %v969
        %v971 = vsel %vm891, %v961, %v970
        %v974 = vunpack.c.l.b16 %v846
        %v975 = vunpack.c.l.b16 %v847
        %v976 = vpack.c.b16 %v975, %v974
        %v979 = vsel %vm556, %v908, 0
        %v982 = vsel %vm556, %v917, 0
        %v985 = vsel %vm556, %v926, 0
        %v988 = vsel %vm556, %v935, 0
        %v991 = vsel %vm556, %v944, 0
        %v994 = vsel %vm556, %v953, 0
        %v997 = vsel %vm556, %v962, 0
        %v1000 = vsel %vm556, %v971, 0
        %1002 = vmatprep.subr.bf16.mxu0 0
        %1003 = vmatpush1.bf16.msra.mxu0 %v976
        %1004 = vmatprep.subr.bf16.mxu0 0
        %1005 = vmatpush1.bf16.msra.mxu0 0
        %1006 = vmatprep.subr.bf16.mxu0 0
        %1007 = vmatpush1.bf16.msra.mxu0 0
        %1008 = vmatprep.subr.bf16.mxu0 0
        %1009 = vmatpush1.bf16.msra.mxu0 0
        %1010 = vmatprep.subr.bf16.mxu0 0
        %1011 = vmatpush1.bf16.msra.mxu0 0
        %1012 = vmatprep.subr.bf16.mxu0 0
        %1013 = vmatpush1.bf16.msra.mxu0 0
        %1014 = vmatprep.subr.bf16.mxu0 0
        %1015 = vmatpush1.bf16.msra.mxu0 0
        %1016 = vmatprep.subr.bf16.mxu0 0
        %1017 = vmatpush1.bf16.msra.mxu0 0
        %1018 = vmatprep.subr.bf16.mxu0 0
        %1019 = vmatpush1.bf16.msra.mxu0 0
        %1020 = vmatprep.subr.bf16.mxu0 0
        %1021 = vmatpush1.bf16.msra.mxu0 0
        %1022 = vmatprep.subr.bf16.mxu0 0
        %1023 = vmatpush1.bf16.msra.mxu0 0
        %1024 = vmatprep.subr.bf16.mxu0 0
        %1025 = vmatpush1.bf16.msra.mxu0 0
        %1026 = vmatprep.subr.bf16.mxu0 0
        %1027 = vmatpush1.bf16.msra.mxu0 0
        %1028 = vmatprep.subr.bf16.mxu0 0
        %1029 = vmatpush1.bf16.msra.mxu0 0
        %1030 = vmatprep.subr.bf16.mxu0 0
        %1031 = vmatpush1.bf16.msra.mxu0 0
        %1032 = vmatprep.subr.bf16.mxu0 0
        %1033 = vmatpush1.bf16.msra.mxu0 0
        %1034 = vmatprep.mubr.bf16.mxu0 0
        %1035 = vmatmul.mubr.bf16.gmra.mrb[0].mxu0 %v979
        %v1036 = vpop.f32.mrb[0].mxu0
        %v1037 = vadd.f32 0.0, %v1036
        %v1038 = vpop.f32.mrb[0].mxu0
        %v1039 = vpop.f32.mrb[0].mxu0
        %v1040 = vadd.f32 0.0, %v1039
        %v1041 = vpop.f32.mrb[0].mxu0
        %1042 = vmatprep.mubr.bf16.mxu0 0
        %1043 = vmatmul.mubr.bf16.gmra.mrb[0].mxu0 %v982
        %v1044 = vpop.f32.mrb[0].mxu0
        %v1045 = vadd.f32 0.0, %v1044
        %v1046 = vpop.f32.mrb[0].mxu0
        %v1047 = vpop.f32.mrb[0].mxu0
        %v1048 = vadd.f32 0.0, %v1047
        %v1049 = vpop.f32.mrb[0].mxu0
        %1050 = vmatprep.mubr.bf16.mxu0 0
        %1051 = vmatmul.mubr.bf16.gmra.mrb[0].mxu0 %v985
        %v1052 = vpop.f32.mrb[0].mxu0
        %v1053 = vadd.f32 0.0, %v1052
        %v1054 = vpop.f32.mrb[0].mxu0
        %v1055 = vpop.f32.mrb[0].mxu0
        %v1056 = vadd.f32 0.0, %v1055
        %v1057 = vpop.f32.mrb[0].mxu0
        %1058 = vmatprep.mubr.bf16.mxu0 0
        %1059 = vmatmul.mubr.bf16.gmra.mrb[0].mxu0 %v988
        %v1060 = vpop.f32.mrb[0].mxu0
        %v1061 = vadd.f32 0.0, %v1060
        %v1062 = vpop.f32.mrb[0].mxu0
        %v1063 = vpop.f32.mrb[0].mxu0
        %v1064 = vadd.f32 0.0, %v1063
        %v1065 = vpop.f32.mrb[0].mxu0
        %1066 = vmatprep.mubr.bf16.mxu0 0
        %1067 = vmatmul.mubr.bf16.gmra.mrb[0].mxu0 %v991
        %v1068 = vpop.f32.mrb[0].mxu0
        %v1069 = vadd.f32 0.0, %v1068
        %v1070 = vpop.f32.mrb[0].mxu0
        %v1071 = vpop.f32.mrb[0].mxu0
        %v1072 = vadd.f32 0.0, %v1071
        %v1073 = vpop.f32.mrb[0].mxu0
        %1074 = vmatprep.mubr.bf16.mxu0 0
        %1075 = vmatmul.mubr.bf16.gmra.mrb[0].mxu0 %v994
        %v1076 = vpop.f32.mrb[0].mxu0
        %v1077 = vadd.f32 0.0, %v1076
        %v1078 = vpop.f32.mrb[0].mxu0
        %v1079 = vpop.f32.mrb[0].mxu0
        %v1080 = vadd.f32 0.0, %v1079
        %v1081 = vpop.f32.mrb[0].mxu0
        %1082 = vmatprep.mubr.bf16.mxu0 0
        %1083 = vmatmul.mubr.bf16.gmra.mrb[0].mxu0 %v997
        %v1084 = vpop.f32.mrb[0].mxu0
        %v1085 = vadd.f32 0.0, %v1084
        %v1086 = vpop.f32.mrb[0].mxu0
        %v1087 = vpop.f32.mrb[0].mxu0
        %v1088 = vadd.f32 0.0, %v1087
        %v1089 = vpop.f32.mrb[0].mxu0
        %1090 = vmatprep.mubr.bf16.mxu0 0
        %1091 = vmatmul.mubr.bf16.gmra.mrb[0].mxu0 %v1000
        %v1092 = vpop.f32.mrb[0].mxu0
        %v1093 = vadd.f32 0.0, %v1092
        %v1094 = vpop.f32.mrb[0].mxu0
        %v1095 = vpop.f32.mrb[0].mxu0
        %v1096 = vadd.f32 0.0, %v1095
        %v1097 = vpop.f32.mrb[0].mxu0
        %1098 = vdwg.mxu0
        %1099 = vst.msk [vmem:[#allocation4] sm:$0xff] %vm556, %v1037
        %1100 = vst.msk [vmem:[#allocation4 + $0x8] sm:$0xff] %vm556, %v1040
        %1101 = vst.msk [vmem:[#allocation4 + $0x10] sm:$0xff] %vm556, %v1045
        %1102 = vst.msk [vmem:[#allocation4 + $0x18] sm:$0xff] %vm556, %v1048
        %1103 = vst.msk [vmem:[#allocation4 + $0x20] sm:$0xff] %vm556, %v1053
        %1104 = vst.msk [vmem:[#allocation4 + $0x28] sm:$0xff] %vm556, %v1056
        %1105 = vst.msk [vmem:[#allocation4 + $0x30] sm:$0xff] %vm556, %v1061
        %1106 = vst.msk [vmem:[#allocation4 + $0x38] sm:$0xff] %vm556, %v1064
        %1107 = vst.msk [vmem:[#allocation4 + $0x40] sm:$0xff] %vm556, %v1069
        %1108 = vst.msk [vmem:[#allocation4 + $0x48] sm:$0xff] %vm556, %v1072
        %1109 = vst.msk [vmem:[#allocation4 + $0x50] sm:$0xff] %vm556, %v1077
        %1110 = vst.msk [vmem:[#allocation4 + $0x58] sm:$0xff] %vm556, %v1080
        %1111 = vst.msk [vmem:[#allocation4 + $0x60] sm:$0xff] %vm556, %v1085
        %1112 = vst.msk [vmem:[#allocation4 + $0x68] sm:$0xff] %vm556, %v1088
        %1113 = vst.msk [vmem:[#allocation4 + $0x70] sm:$0xff] %vm556, %v1093
        %1114 = vst.msk [vmem:[#allocation4 + $0x78] sm:$0xff] %vm556, %v1096
        %v1115 = vld [vmem:[#allocation3 + $0x8] sm:$0xf]
        %v1116 = vld [vmem:[#allocation3 + $0xc] sm:$0xf]
        %v1117 = vld [vmem:[#allocation3 + $0x10] sm:$0xf]
        %v1118 = vld [vmem:[#allocation3 + $0x14] sm:$0xf]
        %v1119 = vld [vmem:[#allocation3 + $0x18] sm:$0xf]
        %v1120 = vld [vmem:[#allocation3 + $0x1c] sm:$0xf]
        %v1121 = vld [vmem:[#allocation3 + $0x20] sm:$0xf]
        %v1122 = vld [vmem:[#allocation3 + $0x24] sm:$0xf]
        %v1123 = vld [vmem:[#allocation3 + $0x28] sm:$0xf]
        %v1124 = vld [vmem:[#allocation3 + $0x2c] sm:$0xf]
        %v1125 = vld [vmem:[#allocation3 + $0x30] sm:$0xf]
        %v1126 = vld [vmem:[#allocation3 + $0x34] sm:$0xf]
        %v1127 = vld [vmem:[#allocation3 + $0x38] sm:$0xf]
        %v1128 = vld [vmem:[#allocation3 + $0x3c] sm:$0xf]
        %v1129 = vld [vmem:[#allocation3 + $0x40] sm:$0xf]
        %v1130 = vld [vmem:[#allocation3 + $0x44] sm:$0xf]
        %v1131 = vld [vmem:[#allocation11 + $0x8] sm:$0xf]
        %v1132 = vld [vmem:[#allocation11 + $0xc] sm:$0xf]
        %v1149 = vunpack.c.l.b16 %v1115
        %v1150 = vunpack.c.l.b16 %v1116
        %v1151 = vunpack.c.l.b16 %v1117
        %v1152 = vunpack.c.l.b16 %v1118
        %v1153 = vunpack.c.l.b16 %v1119
        %v1154 = vunpack.c.l.b16 %v1120
        %v1155 = vunpack.c.l.b16 %v1121
        %v1156 = vunpack.c.l.b16 %v1122
        %v1157 = vunpack.c.l.b16 %v1123
        %v1158 = vunpack.c.l.b16 %v1124
        %v1159 = vunpack.c.l.b16 %v1125
        %v1160 = vunpack.c.l.b16 %v1126
        %v1161 = vunpack.c.l.b16 %v1127
        %v1162 = vunpack.c.l.b16 %v1128
        %v1163 = vunpack.c.l.b16 %v1129
        %v1164 = vunpack.c.l.b16 %v1130
        %v1165 = vpack.c.b16 %v1150, %v1149
        %v1166 = vpack.c.b16 %v1152, %v1151
        %v1167 = vpack.c.b16 %v1154, %v1153
        %v1168 = vpack.c.b16 %v1156, %v1155
        %v1169 = vpack.c.b16 %v1158, %v1157
        %v1170 = vpack.c.b16 %v1160, %v1159
        %v1171 = vpack.c.b16 %v1162, %v1161
        %v1172 = vpack.c.b16 %v1164, %v1163
        %v1175 = vunpack.c.l.b16 %v1131
        %v1176 = vunpack.c.l.b16 %v1132
        %v1177 = vpack.c.b16 %v1176, %v1175
        %v1180 = vsel %vm556, %v1165, 0
        %v1183 = vsel %vm556, %v1166, 0
        %v1186 = vsel %vm556, %v1167, 0
        %v1189 = vsel %vm556, %v1168, 0
        %v1192 = vsel %vm556, %v1169, 0
        %v1195 = vsel %vm556, %v1170, 0
        %v1198 = vsel %vm556, %v1171, 0
        %v1201 = vsel %vm556, %v1172, 0
        %1203 = vmatprep.subr.bf16.mxu0 0
        %1204 = vmatpush1.bf16.msra.mxu0 %v1177
        %1205 = vmatprep.subr.bf16.mxu0 0
        %1206 = vmatpush1.bf16.msra.mxu0 0
        %1207 = vmatprep.subr.bf16.mxu0 0
        %1208 = vmatpush1.bf16.msra.mxu0 0
        %1209 = vmatprep.subr.bf16.mxu0 0
        %1210 = vmatpush1.bf16.msra.mxu0 0
        %1211 = vmatprep.subr.bf16.mxu0 0
        %1212 = vmatpush1.bf16.msra.mxu0 0
        %1213 = vmatprep.subr.bf16.mxu0 0
        %1214 = vmatpush1.bf16.msra.mxu0 0
        %1215 = vmatprep.subr.bf16.mxu0 0
        %1216 = vmatpush1.bf16.msra.mxu0 0
        %1217 = vmatprep.subr.bf16.mxu0 0
        %1218 = vmatpush1.bf16.msra.mxu0 0
        %1219 = vmatprep.subr.bf16.mxu0 0
        %1220 = vmatpush1.bf16.msra.mxu0 0
        %1221 = vmatprep.subr.bf16.mxu0 0
        %1222 = vmatpush1.bf16.msra.mxu0 0
        %1223 = vmatprep.subr.bf16.mxu0 0
        %1224 = vmatpush1.bf16.msra.mxu0 0
        %1225 = vmatprep.subr.bf16.mxu0 0
        %1226 = vmatpush1.bf16.msra.mxu0 0
        %1227 = vmatprep.subr.bf16.mxu0 0
        %1228 = vmatpush1.bf16.msra.mxu0 0
        %1229 = vmatprep.subr.bf16.mxu0 0
        %1230 = vmatpush1.bf16.msra.mxu0 0
        %1231 = vmatprep.subr.bf16.mxu0 0
        %1232 = vmatpush1.bf16.msra.mxu0 0
        %1233 = vmatprep.subr.bf16.mxu0 0
        %1234 = vmatpush1.bf16.msra.mxu0 0
        %1235 = vmatprep.mubr.bf16.mxu0 0
        %1236 = vmatmul.mubr.bf16.gmra.mrb[0].mxu0 %v1180
        %v1237 = vpop.f32.mrb[0].mxu0
        %v1238 = vadd.f32 0.0, %v1237
        %v1239 = vpop.f32.mrb[0].mxu0
        %v1240 = vpop.f32.mrb[0].mxu0
        %v1241 = vadd.f32 0.0, %v1240
        %v1242 = vpop.f32.mrb[0].mxu0
        %1243 = vmatprep.mubr.bf16.mxu0 0
        %1244 = vmatmul.mubr.bf16.gmra.mrb[0].mxu0 %v1183
        %v1245 = vpop.f32.mrb[0].mxu0
        %v1246 = vadd.f32 0.0, %v1245
        %v1247 = vpop.f32.mrb[0].mxu0
        %v1248 = vpop.f32.mrb[0].mxu0
        %v1249 = vadd.f32 0.0, %v1248
        %v1250 = vpop.f32.mrb[0].mxu0
        %1251 = vmatprep.mubr.bf16.mxu0 0
        %1252 = vmatmul.mubr.bf16.gmra.mrb[0].mxu0 %v1186
        %v1253 = vpop.f32.mrb[0].mxu0
        %v1254 = vadd.f32 0.0, %v1253
        %v1255 = vpop.f32.mrb[0].mxu0
        %v1256 = vpop.f32.mrb[0].mxu0
        %v1257 = vadd.f32 0.0, %v1256
        %v1258 = vpop.f32.mrb[0].mxu0
        %1259 = vmatprep.mubr.bf16.mxu0 0
        %1260 = vmatmul.mubr.bf16.gmra.mrb[0].mxu0 %v1189
        %v1261 = vpop.f32.mrb[0].mxu0
        %v1262 = vadd.f32 0.0, %v1261
        %v1263 = vpop.f32.mrb[0].mxu0
        %v1264 = vpop.f32.mrb[0].mxu0
        %v1265 = vadd.f32 0.0, %v1264
        %v1266 = vpop.f32.mrb[0].mxu0
        %1267 = vmatprep.mubr.bf16.mxu0 0
        %1268 = vmatmul.mubr.bf16.gmra.mrb[0].mxu0 %v1192
        %v1269 = vpop.f32.mrb[0].mxu0
        %v1270 = vadd.f32 0.0, %v1269
        %v1271 = vpop.f32.mrb[0].mxu0
        %v1272 = vpop.f32.mrb[0].mxu0
        %v1273 = vadd.f32 0.0, %v1272
        %v1274 = vpop.f32.mrb[0].mxu0
        %1275 = vmatprep.mubr.bf16.mxu0 0
        %1276 = vmatmul.mubr.bf16.gmra.mrb[0].mxu0 %v1195
        %v1277 = vpop.f32.mrb[0].mxu0
        %v1278 = vadd.f32 0.0, %v1277
        %v1279 = vpop.f32.mrb[0].mxu0
        %v1280 = vpop.f32.mrb[0].mxu0
        %v1281 = vadd.f32 0.0, %v1280
        %v1282 = vpop.f32.mrb[0].mxu0
        %1283 = vmatprep.mubr.bf16.mxu0 0
        %1284 = vmatmul.mubr.bf16.gmra.mrb[0].mxu0 %v1198
        %v1285 = vpop.f32.mrb[0].mxu0
        %v1286 = vadd.f32 0.0, %v1285
        %v1287 = vpop.f32.mrb[0].mxu0
        %v1288 = vpop.f32.mrb[0].mxu0
        %v1289 = vadd.f32 0.0, %v1288
        %v1290 = vpop.f32.mrb[0].mxu0
        %1291 = vmatprep.mubr.bf16.mxu0 0
        %1292 = vmatmul.mubr.bf16.gmra.mrb[0].mxu0 %v1201
        %v1293 = vpop.f32.mrb[0].mxu0
        %v1294 = vadd.f32 0.0, %v1293
        %v1295 = vpop.f32.mrb[0].mxu0
        %v1296 = vpop.f32.mrb[0].mxu0
        %v1297 = vadd.f32 0.0, %v1296
        %v1298 = vpop.f32.mrb[0].mxu0
        %1299 = vdwg.mxu0
        %v1300 = vld [vmem:[#allocation4] sm:$0xff]
        %v1301 = vld [vmem:[#allocation4 + $0x8] sm:$0xff]
        %v1302 = vld [vmem:[#allocation4 + $0x10] sm:$0xff]
        %v1303 = vld [vmem:[#allocation4 + $0x18] sm:$0xff]
        %v1304 = vld [vmem:[#allocation4 + $0x20] sm:$0xff]
        %v1305 = vld [vmem:[#allocation4 + $0x28] sm:$0xff]
        %v1306 = vld [vmem:[#allocation4 + $0x30] sm:$0xff]
        %v1307 = vld [vmem:[#allocation4 + $0x38] sm:$0xff]
        %v1308 = vld [vmem:[#allocation4 + $0x40] sm:$0xff]
        %v1309 = vld [vmem:[#allocation4 + $0x48] sm:$0xff]
        %v1310 = vld [vmem:[#allocation4 + $0x50] sm:$0xff]
        %v1311 = vld [vmem:[#allocation4 + $0x58] sm:$0xff]
        %v1312 = vld [vmem:[#allocation4 + $0x60] sm:$0xff]
        %v1313 = vld [vmem:[#allocation4 + $0x68] sm:$0xff]
        %v1314 = vld [vmem:[#allocation4 + $0x70] sm:$0xff]
        %v1315 = vld [vmem:[#allocation4 + $0x78] sm:$0xff]
        %v1316 = vadd.f32 %v1300, %v1238
        %v1317 = vadd.f32 %v1301, %v1241
        %v1318 = vadd.f32 %v1302, %v1246
        %v1319 = vadd.f32 %v1303, %v1249
        %v1320 = vadd.f32 %v1304, %v1254
        %v1321 = vadd.f32 %v1305, %v1257
        %v1322 = vadd.f32 %v1306, %v1262
        %v1323 = vadd.f32 %v1307, %v1265
        %v1324 = vadd.f32 %v1308, %v1270
        %v1325 = vadd.f32 %v1309, %v1273
        %v1326 = vadd.f32 %v1310, %v1278
        %v1327 = vadd.f32 %v1311, %v1281
        %v1328 = vadd.f32 %v1312, %v1286
        %v1329 = vadd.f32 %v1313, %v1289
        %v1330 = vadd.f32 %v1314, %v1294
        %v1331 = vadd.f32 %v1315, %v1297
        %1332 = vst.msk [vmem:[#allocation4] sm:$0xff] %vm556, %v1316
        %1333 = vst.msk [vmem:[#allocation4 + $0x8] sm:$0xff] %vm556, %v1317
        %1334 = vst.msk [vmem:[#allocation4 + $0x10] sm:$0xff] %vm556, %v1318
        %1335 = vst.msk [vmem:[#allocation4 + $0x18] sm:$0xff] %vm556, %v1319
        %1336 = vst.msk [vmem:[#allocation4 + $0x20] sm:$0xff] %vm556, %v1320
        %1337 = vst.msk [vmem:[#allocation4 + $0x28] sm:$0xff] %vm556, %v1321
        %1338 = vst.msk [vmem:[#allocation4 + $0x30] sm:$0xff] %vm556, %v1322
        %1339 = vst.msk [vmem:[#allocation4 + $0x38] sm:$0xff] %vm556, %v1323
        %1340 = vst.msk [vmem:[#allocation4 + $0x40] sm:$0xff] %vm556, %v1324
        %1341 = vst.msk [vmem:[#allocation4 + $0x48] sm:$0xff] %vm556, %v1325
        %1342 = vst.msk [vmem:[#allocation4 + $0x50] sm:$0xff] %vm556, %v1326
        %1343 = vst.msk [vmem:[#allocation4 + $0x58] sm:$0xff] %vm556, %v1327
        %1344 = vst.msk [vmem:[#allocation4 + $0x60] sm:$0xff] %vm556, %v1328
        %1345 = vst.msk [vmem:[#allocation4 + $0x68] sm:$0xff] %vm556, %v1329
        %1346 = vst.msk [vmem:[#allocation4 + $0x70] sm:$0xff] %vm556, %v1330
        %1347 = vst.msk [vmem:[#allocation4 + $0x78] sm:$0xff] %vm556, %v1331
        %v1348 = vld [vmem:[#allocation3 + $0x8] sm:$0xf]
        %v1349 = vld [vmem:[#allocation3 + $0xc] sm:$0xf]
        %v1350 = vld [vmem:[#allocation3 + $0x10] sm:$0xf]
        %v1351 = vld [vmem:[#allocation3 + $0x14] sm:$0xf]
        %v1352 = vld [vmem:[#allocation3 + $0x18] sm:$0xf]
        %v1353 = vld [vmem:[#allocation3 + $0x1c] sm:$0xf]
        %v1354 = vld [vmem:[#allocation3 + $0x20] sm:$0xf]
        %v1355 = vld [vmem:[#allocation3 + $0x24] sm:$0xf]
        %v1356 = vld [vmem:[#allocation3 + $0x28] sm:$0xf]
        %v1357 = vld [vmem:[#allocation3 + $0x2c] sm:$0xf]
        %v1358 = vld [vmem:[#allocation3 + $0x30] sm:$0xf]
        %v1359 = vld [vmem:[#allocation3 + $0x34] sm:$0xf]
        %v1360 = vld [vmem:[#allocation3 + $0x38] sm:$0xf]
        %v1361 = vld [vmem:[#allocation3 + $0x3c] sm:$0xf]
        %v1362 = vld [vmem:[#allocation3 + $0x40] sm:$0xf]
        %v1363 = vld [vmem:[#allocation3 + $0x44] sm:$0xf]
        %v1364 = vld [vmem:[#allocation3 + $0x48] sm:$0x1]
        %v1365 = vld [vmem:[#allocation11 + $0x10] sm:$0xf]
        %v1366 = vld [vmem:[#allocation11 + $0x14] sm:$0xf]
        %v1384 = vunpack.c.l.b16 %v1348
        %v1385 = vunpack.c.l.b16 %v1349
        %v1386 = vunpack.c.l.b16 %v1350
        %v1387 = vunpack.c.l.b16 %v1351
        %v1388 = vunpack.c.l.b16 %v1352
        %v1389 = vunpack.c.l.b16 %v1353
        %v1390 = vunpack.c.l.b16 %v1354
        %v1391 = vunpack.c.l.b16 %v1355
        %v1392 = vunpack.c.l.b16 %v1356
        %v1393 = vunpack.c.l.b16 %v1357
        %v1394 = vunpack.c.l.b16 %v1358
        %v1395 = vunpack.c.l.b16 %v1359
        %v1396 = vunpack.c.l.b16 %v1360
        %v1397 = vunpack.c.l.b16 %v1361
        %v1398 = vunpack.c.l.b16 %v1362
        %v1399 = vunpack.c.l.b16 %v1363
        %v1400 = vunpack.c.l.b16 %v1364
        %v1401 = vpack.c.b16 %v1385, %v1384
        %v1402 = vpack.c.b16 %v1387, %v1386
        %v1403 = vpack.c.b16 %v1389, %v1388
        %v1404 = vpack.c.b16 %v1391, %v1390
        %v1405 = vpack.c.b16 %v1393, %v1392
        %v1406 = vpack.c.b16 %v1395, %v1394
        %v1407 = vpack.c.b16 %v1397, %v1396
        %v1408 = vpack.c.b16 %v1399, %v1398
        %v1409 = vpack.c.b16 %v1400, %v1400
        %vm1410 = vsmask.f32 7424
        %v1412 = vshrl.u32 %v1401, 16
        %v1414 = vshll.u32 %v1401, 16
        %v1416 = vrot.slane %v1414, 1
        %v1417 = vor.u32 %v1412, %v1416
        %v1419 = vshll.u32 %v1402, 16
        %v1421 = vrot.slane %v1419, 1
        %v1422 = vsel %vm1410, %v1417, %v1421
        %v1423 = vshrl.u32 %v1402, 16
        %v1425 = vor.u32 %v1423, %v1421
        %v1427 = vshll.u32 %v1403, 16
        %v1429 = vrot.slane %v1427, 1
        %v1430 = vsel %vm1410, %v1425, %v1429
        %v1431 = vshrl.u32 %v1403, 16
        %v1433 = vor.u32 %v1431, %v1429
        %v1435 = vshll.u32 %v1404, 16
        %v1437 = vrot.slane %v1435, 1
        %v1438 = vsel %vm1410, %v1433, %v1437
        %v1439 = vshrl.u32 %v1404, 16
        %v1441 = vor.u32 %v1439, %v1437
        %v1443 = vshll.u32 %v1405, 16
        %v1445 = vrot.slane %v1443, 1
        %v1446 = vsel %vm1410, %v1441, %v1445
        %v1447 = vshrl.u32 %v1405, 16
        %v1449 = vor.u32 %v1447, %v1445
        %v1451 = vshll.u32 %v1406, 16
        %v1453 = vrot.slane %v1451, 1
        %v1454 = vsel %vm1410, %v1449, %v1453
        %v1455 = vshrl.u32 %v1406, 16
        %v1457 = vor.u32 %v1455, %v1453
        %v1459 = vshll.u32 %v1407, 16
        %v1461 = vrot.slane %v1459, 1
        %v1462 = vsel %vm1410, %v1457, %v1461
        %v1463 = vshrl.u32 %v1407, 16
        %v1465 = vor.u32 %v1463, %v1461
        %v1467 = vshll.u32 %v1408, 16
        %v1469 = vrot.slane %v1467, 1
        %v1470 = vsel %vm1410, %v1465, %v1469
        %v1471 = vshrl.u32 %v1408, 16
        %v1473 = vor.u32 %v1471, %v1469
        %v1475 = vshll.u32 %v1409, 16
        %v1477 = vrot.slane %v1475, 1
        %v1478 = vsel %vm1410, %v1473, %v1477
        %v1481 = vunpack.c.l.b16 %v1365
        %v1482 = vunpack.c.l.b16 %v1366
        %v1483 = vpack.c.b16 %v1482, %v1481
        %v1486 = vsel %vm556, %v1422, 0
        %v1489 = vsel %vm556, %v1430, 0
        %v1492 = vsel %vm556, %v1438, 0
        %v1495 = vsel %vm556, %v1446, 0
        %v1498 = vsel %vm556, %v1454, 0
        %v1501 = vsel %vm556, %v1462, 0
        %v1504 = vsel %vm556, %v1470, 0
        %v1507 = vsel %vm556, %v1478, 0
        %1509 = vmatprep.subr.bf16.mxu0 0
        %1510 = vmatpush1.bf16.msra.mxu0 %v1483
        %1511 = vmatprep.subr.bf16.mxu0 0
        %1512 = vmatpush1.bf16.msra.mxu0 0
        %1513 = vmatprep.subr.bf16.mxu0 0
        %1514 = vmatpush1.bf16.msra.mxu0 0
        %1515 = vmatprep.subr.bf16.mxu0 0
        %1516 = vmatpush1.bf16.msra.mxu0 0
        %1517 = vmatprep.subr.bf16.mxu0 0
        %1518 = vmatpush1.bf16.msra.mxu0 0
        %1519 = vmatprep.subr.bf16.mxu0 0
        %1520 = vmatpush1.bf16.msra.mxu0 0
        %1521 = vmatprep.subr.bf16.mxu0 0
        %1522 = vmatpush1.bf16.msra.mxu0 0
        %1523 = vmatprep.subr.bf16.mxu0 0
        %1524 = vmatpush1.bf16.msra.mxu0 0
        %1525 = vmatprep.subr.bf16.mxu0 0
        %1526 = vmatpush1.bf16.msra.mxu0 0
        %1527 = vmatprep.subr.bf16.mxu0 0
        %1528 = vmatpush1.bf16.msra.mxu0 0
        %1529 = vmatprep.subr.bf16.mxu0 0
        %1530 = vmatpush1.bf16.msra.mxu0 0
        %1531 = vmatprep.subr.bf16.mxu0 0
        %1532 = vmatpush1.bf16.msra.mxu0 0
        %1533 = vmatprep.subr.bf16.mxu0 0
        %1534 = vmatpush1.bf16.msra.mxu0 0
        %1535 = vmatprep.subr.bf16.mxu0 0
        %1536 = vmatpush1.bf16.msra.mxu0 0
        %1537 = vmatprep.subr.bf16.mxu0 0
        %1538 = vmatpush1.bf16.msra.mxu0 0
        %1539 = vmatprep.subr.bf16.mxu0 0
        %1540 = vmatpush1.bf16.msra.mxu0 0
        %1541 = vmatprep.mubr.bf16.mxu0 0
        %1542 = vmatmul.mubr.bf16.gmra.mrb[0].mxu0 %v1486
        %v1543 = vpop.f32.mrb[0].mxu0
        %v1544 = vadd.f32 0.0, %v1543
        %v1545 = vpop.f32.mrb[0].mxu0
        %v1546 = vpop.f32.mrb[0].mxu0
        %v1547 = vadd.f32 0.0, %v1546
        %v1548 = vpop.f32.mrb[0].mxu0
        %1549 = vmatprep.mubr.bf16.mxu0 0
        %1550 = vmatmul.mubr.bf16.gmra.mrb[0].mxu0 %v1489
        %v1551 = vpop.f32.mrb[0].mxu0
        %v1552 = vadd.f32 0.0, %v1551
        %v1553 = vpop.f32.mrb[0].mxu0
        %v1554 = vpop.f32.mrb[0].mxu0
        %v1555 = vadd.f32 0.0, %v1554
        %v1556 = vpop.f32.mrb[0].mxu0
        %1557 = vmatprep.mubr.bf16.mxu0 0
        %1558 = vmatmul.mubr.bf16.gmra.mrb[0].mxu0 %v1492
        %v1559 = vpop.f32.mrb[0].mxu0
        %v1560 = vadd.f32 0.0, %v1559
        %v1561 = vpop.f32.mrb[0].mxu0
        %v1562 = vpop.f32.mrb[0].mxu0
        %v1563 = vadd.f32 0.0, %v1562
        %v1564 = vpop.f32.mrb[0].mxu0
        %1565 = vmatprep.mubr.bf16.mxu0 0
        %1566 = vmatmul.mubr.bf16.gmra.mrb[0].mxu0 %v1495
        %v1567 = vpop.f32.mrb[0].mxu0
        %v1568 = vadd.f32 0.0, %v1567
        %v1569 = vpop.f32.mrb[0].mxu0
        %v1570 = vpop.f32.mrb[0].mxu0
        %v1571 = vadd.f32 0.0, %v1570
        %v1572 = vpop.f32.mrb[0].mxu0
        %1573 = vmatprep.mubr.bf16.mxu0 0
        %1574 = vmatmul.mubr.bf16.gmra.mrb[0].mxu0 %v1498
        %v1575 = vpop.f32.mrb[0].mxu0
        %v1576 = vadd.f32 0.0, %v1575
        %v1577 = vpop.f32.mrb[0].mxu0
        %v1578 = vpop.f32.mrb[0].mxu0
        %v1579 = vadd.f32 0.0, %v1578
        %v1580 = vpop.f32.mrb[0].mxu0
        %1581 = vmatprep.mubr.bf16.mxu0 0
        %1582 = vmatmul.mubr.bf16.gmra.mrb[0].mxu0 %v1501
        %v1583 = vpop.f32.mrb[0].mxu0
        %v1584 = vadd.f32 0.0, %v1583
        %v1585 = vpop.f32.mrb[0].mxu0
        %v1586 = vpop.f32.mrb[0].mxu0
        %v1587 = vadd.f32 0.0, %v1586
        %v1588 = vpop.f32.mrb[0].mxu0
        %1589 = vmatprep.mubr.bf16.mxu0 0
        %1590 = vmatmul.mubr.bf16.gmra.mrb[0].mxu0 %v1504
        %v1591 = vpop.f32.mrb[0].mxu0
        %v1592 = vadd.f32 0.0, %v1591
        %v1593 = vpop.f32.mrb[0].mxu0
        %v1594 = vpop.f32.mrb[0].mxu0
        %v1595 = vadd.f32 0.0, %v1594
        %v1596 = vpop.f32.mrb[0].mxu0
        %1597 = vmatprep.mubr.bf16.mxu0 0
        %1598 = vmatmul.mubr.bf16.gmra.mrb[0].mxu0 %v1507
        %v1599 = vpop.f32.mrb[0].mxu0
        %v1600 = vadd.f32 0.0, %v1599
        %v1601 = vpop.f32.mrb[0].mxu0
        %v1602 = vpop.f32.mrb[0].mxu0
        %v1603 = vadd.f32 0.0, %v1602
        %v1604 = vpop.f32.mrb[0].mxu0
        %1605 = vdwg.mxu0
        %v1606 = vld [vmem:[#allocation4] sm:$0xff]
        %v1607 = vld [vmem:[#allocation4 + $0x8] sm:$0xff]
        %v1608 = vld [vmem:[#allocation4 + $0x10] sm:$0xff]
        %v1609 = vld [vmem:[#allocation4 + $0x18] sm:$0xff]
        %v1610 = vld [vmem:[#allocation4 + $0x20] sm:$0xff]
        %v1611 = vld [vmem:[#allocation4 + $0x28] sm:$0xff]
        %v1612 = vld [vmem:[#allocation4 + $0x30] sm:$0xff]
        %v1613 = vld [vmem:[#allocation4 + $0x38] sm:$0xff]
        %v1614 = vld [vmem:[#allocation4 + $0x40] sm:$0xff]
        %v1615 = vld [vmem:[#allocation4 + $0x48] sm:$0xff]
        %v1616 = vld [vmem:[#allocation4 + $0x50] sm:$0xff]
        %v1617 = vld [vmem:[#allocation4 + $0x58] sm:$0xff]
        %v1618 = vld [vmem:[#allocation4 + $0x60] sm:$0xff]
        %v1619 = vld [vmem:[#allocation4 + $0x68] sm:$0xff]
        %v1620 = vld [vmem:[#allocation4 + $0x70] sm:$0xff]
        %v1621 = vld [vmem:[#allocation4 + $0x78] sm:$0xff]
        %v1622 = vadd.f32 %v1606, %v1544
        %v1623 = vadd.f32 %v1607, %v1547
        %v1624 = vadd.f32 %v1608, %v1552
        %v1625 = vadd.f32 %v1609, %v1555
        %v1626 = vadd.f32 %v1610, %v1560
        %v1627 = vadd.f32 %v1611, %v1563
        %v1628 = vadd.f32 %v1612, %v1568
        %v1629 = vadd.f32 %v1613, %v1571
        %v1630 = vadd.f32 %v1614, %v1576
        %v1631 = vadd.f32 %v1615, %v1579
        %v1632 = vadd.f32 %v1616, %v1584
        %v1633 = vadd.f32 %v1617, %v1587
        %v1634 = vadd.f32 %v1618, %v1592
        %v1635 = vadd.f32 %v1619, %v1595
        %v1636 = vadd.f32 %v1620, %v1600
        %v1637 = vadd.f32 %v1621, %v1603
        %1638 = vst.msk [vmem:[#allocation4] sm:$0xff] %vm556, %v1622
        %1639 = vst.msk [vmem:[#allocation4 + $0x8] sm:$0xff] %vm556, %v1623
        %1640 = vst.msk [vmem:[#allocation4 + $0x10] sm:$0xff] %vm556, %v1624
        %1641 = vst.msk [vmem:[#allocation4 + $0x18] sm:$0xff] %vm556, %v1625
        %1642 = vst.msk [vmem:[#allocation4 + $0x20] sm:$0xff] %vm556, %v1626
        %1643 = vst.msk [vmem:[#allocation4 + $0x28] sm:$0xff] %vm556, %v1627
        %1644 = vst.msk [vmem:[#allocation4 + $0x30] sm:$0xff] %vm556, %v1628
        %1645 = vst.msk [vmem:[#allocation4 + $0x38] sm:$0xff] %vm556, %v1629
        %1646 = vst.msk [vmem:[#allocation4 + $0x40] sm:$0xff] %vm556, %v1630
        %1647 = vst.msk [vmem:[#allocation4 + $0x48] sm:$0xff] %vm556, %v1631
        %1648 = vst.msk [vmem:[#allocation4 + $0x50] sm:$0xff] %vm556, %v1632
        %1649 = vst.msk [vmem:[#allocation4 + $0x58] sm:$0xff] %vm556, %v1633
        %1650 = vst.msk [vmem:[#allocation4 + $0x60] sm:$0xff] %vm556, %v1634
        %1651 = vst.msk [vmem:[#allocation4 + $0x68] sm:$0xff] %vm556, %v1635
        %1652 = vst.msk [vmem:[#allocation4 + $0x70] sm:$0xff] %vm556, %v1636
        %1653 = vst.msk [vmem:[#allocation4 + $0x78] sm:$0xff] %vm556, %v1637
        %v1654 = vld [vmem:[#allocation3 + $0xc] sm:$0x8]
        %v1655 = vld [vmem:[#allocation3 + $0x10] sm:$0xf]
        %v1656 = vld [vmem:[#allocation3 + $0x14] sm:$0xf]
        %v1657 = vld [vmem:[#allocation3 + $0x18] sm:$0xf]
        %v1658 = vld [vmem:[#allocation3 + $0x1c] sm:$0xf]
        %v1659 = vld [vmem:[#allocation3 + $0x20] sm:$0xf]
        %v1660 = vld [vmem:[#allocation3 + $0x24] sm:$0xf]
        %v1661 = vld [vmem:[#allocation3 + $0x28] sm:$0xf]
        %v1662 = vld [vmem:[#allocation3 + $0x2c] sm:$0xf]
        %v1663 = vld [vmem:[#allocation3 + $0x30] sm:$0xf]
        %v1664 = vld [vmem:[#allocation3 + $0x34] sm:$0xf]
        %v1665 = vld [vmem:[#allocation3 + $0x38] sm:$0xf]
        %v1666 = vld [vmem:[#allocation3 + $0x3c] sm:$0xf]
        %v1667 = vld [vmem:[#allocation3 + $0x40] sm:$0xf]
        %v1668 = vld [vmem:[#allocation3 + $0x44] sm:$0xf]
        %v1669 = vld [vmem:[#allocation3 + $0x48] sm:$0xf]
        %v1670 = vld [vmem:[#allocation3 + $0x4c] sm:$0xf]
        %v1671 = vld [vmem:[#allocation11 + $0x18] sm:$0xf]
        %v1672 = vld [vmem:[#allocation11 + $0x1c] sm:$0xf]
        %v1690 = vunpack.c.l.b16 %v1654
        %v1691 = vunpack.c.l.b16 %v1655
        %v1692 = vunpack.c.l.b16 %v1656
        %v1693 = vunpack.c.l.b16 %v1657
        %v1694 = vunpack.c.l.b16 %v1658
        %v1695 = vunpack.c.l.b16 %v1659
        %v1696 = vunpack.c.l.b16 %v1660
        %v1697 = vunpack.c.l.b16 %v1661
        %v1698 = vunpack.c.l.b16 %v1662
        %v1699 = vunpack.c.l.b16 %v1663
        %v1700 = vunpack.c.l.b16 %v1664
        %v1701 = vunpack.c.l.b16 %v1665
        %v1702 = vunpack.c.l.b16 %v1666
        %v1703 = vunpack.c.l.b16 %v1667
        %v1704 = vunpack.c.l.b16 %v1668
        %v1705 = vunpack.c.l.b16 %v1669
        %v1706 = vunpack.c.l.b16 %v1670
        %v1707 = vpack.c.b16 %v1691, %v1690
        %v1708 = vpack.c.b16 %v1693, %v1692
        %v1709 = vpack.c.b16 %v1695, %v1694
        %v1710 = vpack.c.b16 %v1697, %v1696
        %v1711 = vpack.c.b16 %v1699, %v1698
        %v1712 = vpack.c.b16 %v1701, %v1700
        %v1713 = vpack.c.b16 %v1703, %v1702
        %v1714 = vpack.c.b16 %v1705, %v1704
        %v1715 = vpack.c.b16 %v1706, %v1706
        %v1717 = vshrl.u32 %v1707, 16
        %v1719 = vrot.slane %v1717, 3
        %v1720 = vshll.u32 %v1707, 16
        %v1722 = vrot.slane %v1720, 4
        %v1723 = vor.u32 %v1719, %v1722
        %v1725 = vshrl.u32 %v1708, 16
        %v1727 = vrot.slane %v1725, 3
        %v1728 = vshll.u32 %v1708, 16
        %v1730 = vrot.slane %v1728, 4
        %v1731 = vor.u32 %v1727, %v1730
        %v1732 = vsel %vm891, %v1723, %v1731
        %v1734 = vshrl.u32 %v1709, 16
        %v1736 = vrot.slane %v1734, 3
        %v1737 = vshll.u32 %v1709, 16
        %v1739 = vrot.slane %v1737, 4
        %v1740 = vor.u32 %v1736, %v1739
        %v1741 = vsel %vm891, %v1731, %v1740
        %v1743 = vshrl.u32 %v1710, 16
        %v1745 = vrot.slane %v1743, 3
        %v1746 = vshll.u32 %v1710, 16
        %v1748 = vrot.slane %v1746, 4
        %v1749 = vor.u32 %v1745, %v1748
        %v1750 = vsel %vm891, %v1740, %v1749
        %v1752 = vshrl.u32 %v1711, 16
        %v1754 = vrot.slane %v1752, 3
        %v1755 = vshll.u32 %v1711, 16
        %v1757 = vrot.slane %v1755, 4
        %v1758 = vor.u32 %v1754, %v1757
        %v1759 = vsel %vm891, %v1749, %v1758
        %v1761 = vshrl.u32 %v1712, 16
        %v1763 = vrot.slane %v1761, 3
        %v1764 = vshll.u32 %v1712, 16
        %v1766 = vrot.slane %v1764, 4
        %v1767 = vor.u32 %v1763, %v1766
        %v1768 = vsel %vm891, %v1758, %v1767
        %v1770 = vshrl.u32 %v1713, 16
        %v1772 = vrot.slane %v1770, 3
        %v1773 = vshll.u32 %v1713, 16
        %v1775 = vrot.slane %v1773, 4
        %v1776 = vor.u32 %v1772, %v1775
        %v1777 = vsel %vm891, %v1767, %v1776
        %v1779 = vshrl.u32 %v1714, 16
        %v1781 = vrot.slane %v1779, 3
        %v1782 = vshll.u32 %v1714, 16
        %v1784 = vrot.slane %v1782, 4
        %v1785 = vor.u32 %v1781, %v1784
        %v1786 = vsel %vm891, %v1776, %v1785
        %v1788 = vshrl.u32 %v1715, 16
        %v1790 = vrot.slane %v1788, 3
        %v1791 = vshll.u32 %v1715, 16
        %v1793 = vrot.slane %v1791, 4
        %v1794 = vor.u32 %v1790, %v1793
        %v1795 = vsel %vm891, %v1785, %v1794
        %v1798 = vunpack.c.l.b16 %v1671
        %v1799 = vunpack.c.l.b16 %v1672
        %v1800 = vpack.c.b16 %v1799, %v1798
        %v1803 = vsel %vm556, %v1732, 0
        %v1806 = vsel %vm556, %v1741, 0
        %v1809 = vsel %vm556, %v1750, 0
        %v1812 = vsel %vm556, %v1759, 0
        %v1815 = vsel %vm556, %v1768, 0
        %v1818 = vsel %vm556, %v1777, 0
        %v1821 = vsel %vm556, %v1786, 0
        %v1824 = vsel %vm556, %v1795, 0
        %1826 = vmatprep.subr.bf16.mxu0 0
        %1827 = vmatpush1.bf16.msra.mxu0 %v1800
        %1828 = vmatprep.subr.bf16.mxu0 0
        %1829 = vmatpush1.bf16.msra.mxu0 0
        %1830 = vmatprep.subr.bf16.mxu0 0
        %1831 = vmatpush1.bf16.msra.mxu0 0
        %1832 = vmatprep.subr.bf16.mxu0 0
        %1833 = vmatpush1.bf16.msra.mxu0 0
        %1834 = vmatprep.subr.bf16.mxu0 0
        %1835 = vmatpush1.bf16.msra.mxu0 0
        %1836 = vmatprep.subr.bf16.mxu0 0
        %1837 = vmatpush1.bf16.msra.mxu0 0
        %1838 = vmatprep.subr.bf16.mxu0 0
        %1839 = vmatpush1.bf16.msra.mxu0 0
        %1840 = vmatprep.subr.bf16.mxu0 0
        %1841 = vmatpush1.bf16.msra.mxu0 0
        %1842 = vmatprep.subr.bf16.mxu0 0
        %1843 = vmatpush1.bf16.msra.mxu0 0
        %1844 = vmatprep.subr.bf16.mxu0 0
        %1845 = vmatpush1.bf16.msra.mxu0 0
        %1846 = vmatprep.subr.bf16.mxu0 0
        %1847 = vmatpush1.bf16.msra.mxu0 0
        %1848 = vmatprep.subr.bf16.mxu0 0
        %1849 = vmatpush1.bf16.msra.mxu0 0
        %1850 = vmatprep.subr.bf16.mxu0 0
        %1851 = vmatpush1.bf16.msra.mxu0 0
        %1852 = vmatprep.subr.bf16.mxu0 0
        %1853 = vmatpush1.bf16.msra.mxu0 0
        %1854 = vmatprep.subr.bf16.mxu0 0
        %1855 = vmatpush1.bf16.msra.mxu0 0
        %1856 = vmatprep.subr.bf16.mxu0 0
        %1857 = vmatpush1.bf16.msra.mxu0 0
        %1858 = vmatprep.mubr.bf16.mxu0 0
        %1859 = vmatmul.mubr.bf16.gmra.mrb[0].mxu0 %v1803
        %v1860 = vpop.f32.mrb[0].mxu0
        %v1861 = vadd.f32 0.0, %v1860
        %v1862 = vpop.f32.mrb[0].mxu0
        %v1863 = vpop.f32.mrb[0].mxu0
        %v1864 = vadd.f32 0.0, %v1863
        %v1865 = vpop.f32.mrb[0].mxu0
        %1866 = vmatprep.mubr.bf16.mxu0 0
        %1867 = vmatmul.mubr.bf16.gmra.mrb[0].mxu0 %v1806
        %v1868 = vpop.f32.mrb[0].mxu0
        %v1869 = vadd.f32 0.0, %v1868
        %v1870 = vpop.f32.mrb[0].mxu0
        %v1871 = vpop.f32.mrb[0].mxu0
        %v1872 = vadd.f32 0.0, %v1871
        %v1873 = vpop.f32.mrb[0].mxu0
        %1874 = vmatprep.mubr.bf16.mxu0 0
        %1875 = vmatmul.mubr.bf16.gmra.mrb[0].mxu0 %v1809
        %v1876 = vpop.f32.mrb[0].mxu0
        %v1877 = vadd.f32 0.0, %v1876
        %v1878 = vpop.f32.mrb[0].mxu0
        %v1879 = vpop.f32.mrb[0].mxu0
        %v1880 = vadd.f32 0.0, %v1879
        %v1881 = vpop.f32.mrb[0].mxu0
        %1882 = vmatprep.mubr.bf16.mxu0 0
        %1883 = vmatmul.mubr.bf16.gmra.mrb[0].mxu0 %v1812
        %v1884 = vpop.f32.mrb[0].mxu0
        %v1885 = vadd.f32 0.0, %v1884
        %v1886 = vpop.f32.mrb[0].mxu0
        %v1887 = vpop.f32.mrb[0].mxu0
        %v1888 = vadd.f32 0.0, %v1887
        %v1889 = vpop.f32.mrb[0].mxu0
        %1890 = vmatprep.mubr.bf16.mxu0 0
        %1891 = vmatmul.mubr.bf16.gmra.mrb[0].mxu0 %v1815
        %v1892 = vpop.f32.mrb[0].mxu0
        %v1893 = vadd.f32 0.0, %v1892
        %v1894 = vpop.f32.mrb[0].mxu0
        %v1895 = vpop.f32.mrb[0].mxu0
        %v1896 = vadd.f32 0.0, %v1895
        %v1897 = vpop.f32.mrb[0].mxu0
        %1898 = vmatprep.mubr.bf16.mxu0 0
        %1899 = vmatmul.mubr.bf16.gmra.mrb[0].mxu0 %v1818
        %v1900 = vpop.f32.mrb[0].mxu0
        %v1901 = vadd.f32 0.0, %v1900
        %v1902 = vpop.f32.mrb[0].mxu0
        %v1903 = vpop.f32.mrb[0].mxu0
        %v1904 = vadd.f32 0.0, %v1903
        %v1905 = vpop.f32.mrb[0].mxu0
        %1906 = vmatprep.mubr.bf16.mxu0 0
        %1907 = vmatmul.mubr.bf16.gmra.mrb[0].mxu0 %v1821
        %v1908 = vpop.f32.mrb[0].mxu0
        %v1909 = vadd.f32 0.0, %v1908
        %v1910 = vpop.f32.mrb[0].mxu0
        %v1911 = vpop.f32.mrb[0].mxu0
        %v1912 = vadd.f32 0.0, %v1911
        %v1913 = vpop.f32.mrb[0].mxu0
        %1914 = vmatprep.mubr.bf16.mxu0 0
        %1915 = vmatmul.mubr.bf16.gmra.mrb[0].mxu0 %v1824
        %v1916 = vpop.f32.mrb[0].mxu0
        %v1917 = vadd.f32 0.0, %v1916
        %v1918 = vpop.f32.mrb[0].mxu0
        %v1919 = vpop.f32.mrb[0].mxu0
        %v1920 = vadd.f32 0.0, %v1919
        %v1921 = vpop.f32.mrb[0].mxu0
        %1922 = vdwg.mxu0
        %v1923 = vld [vmem:[#allocation4] sm:$0xff]
        %v1924 = vld [vmem:[#allocation4 + $0x8] sm:$0xff]
        %v1925 = vld [vmem:[#allocation4 + $0x10] sm:$0xff]
        %v1926 = vld [vmem:[#allocation4 + $0x18] sm:$0xff]
        %v1927 = vld [vmem:[#allocation4 + $0x20] sm:$0xff]
        %v1928 = vld [vmem:[#allocation4 + $0x28] sm:$0xff]
        %v1929 = vld [vmem:[#allocation4 + $0x30] sm:$0xff]
        %v1930 = vld [vmem:[#allocation4 + $0x38] sm:$0xff]
        %v1931 = vld [vmem:[#allocation4 + $0x40] sm:$0xff]
        %v1932 = vld [vmem:[#allocation4 + $0x48] sm:$0xff]
        %v1933 = vld [vmem:[#allocation4 + $0x50] sm:$0xff]
        %v1934 = vld [vmem:[#allocation4 + $0x58] sm:$0xff]
        %v1935 = vld [vmem:[#allocation4 + $0x60] sm:$0xff]
        %v1936 = vld [vmem:[#allocation4 + $0x68] sm:$0xff]
        %v1937 = vld [vmem:[#allocation4 + $0x70] sm:$0xff]
        %v1938 = vld [vmem:[#allocation4 + $0x78] sm:$0xff]
        %v1939 = vadd.f32 %v1923, %v1861
        %v1940 = vadd.f32 %v1924, %v1864
        %v1941 = vadd.f32 %v1925, %v1869
        %v1942 = vadd.f32 %v1926, %v1872
        %v1943 = vadd.f32 %v1927, %v1877
        %v1944 = vadd.f32 %v1928, %v1880
        %v1945 = vadd.f32 %v1929, %v1885
        %v1946 = vadd.f32 %v1930, %v1888
        %v1947 = vadd.f32 %v1931, %v1893
        %v1948 = vadd.f32 %v1932, %v1896
        %v1949 = vadd.f32 %v1933, %v1901
        %v1950 = vadd.f32 %v1934, %v1904
        %v1951 = vadd.f32 %v1935, %v1909
        %v1952 = vadd.f32 %v1936, %v1912
        %v1953 = vadd.f32 %v1937, %v1917
        %v1954 = vadd.f32 %v1938, %v1920
        %1955 = vst.msk [vmem:[#allocation4] sm:$0xff] %vm556, %v1939
        %1956 = vst.msk [vmem:[#allocation4 + $0x8] sm:$0xff] %vm556, %v1940
        %1957 = vst.msk [vmem:[#allocation4 + $0x10] sm:$0xff] %vm556, %v1941
        %1958 = vst.msk [vmem:[#allocation4 + $0x18] sm:$0xff] %vm556, %v1942
        %1959 = vst.msk [vmem:[#allocation4 + $0x20] sm:$0xff] %vm556, %v1943
        %1960 = vst.msk [vmem:[#allocation4 + $0x28] sm:$0xff] %vm556, %v1944
        %1961 = vst.msk [vmem:[#allocation4 + $0x30] sm:$0xff] %vm556, %v1945
        %1962 = vst.msk [vmem:[#allocation4 + $0x38] sm:$0xff] %vm556, %v1946
        %1963 = vst.msk [vmem:[#allocation4 + $0x40] sm:$0xff] %vm556, %v1947
        %1964 = vst.msk [vmem:[#allocation4 + $0x48] sm:$0xff] %vm556, %v1948
        %1965 = vst.msk [vmem:[#allocation4 + $0x50] sm:$0xff] %vm556, %v1949
        %1966 = vst.msk [vmem:[#allocation4 + $0x58] sm:$0xff] %vm556, %v1950
        %1967 = vst.msk [vmem:[#allocation4 + $0x60] sm:$0xff] %vm556, %v1951
        %1968 = vst.msk [vmem:[#allocation4 + $0x68] sm:$0xff] %vm556, %v1952
        %1969 = vst.msk [vmem:[#allocation4 + $0x70] sm:$0xff] %vm556, %v1953
        %1970 = vst.msk [vmem:[#allocation4 + $0x78] sm:$0xff] %vm556, %v1954
        %v1971 = vld [vmem:[#allocation3 + $0x10] sm:$0xf]
        %v1972 = vld [vmem:[#allocation3 + $0x14] sm:$0xf]
        %v1973 = vld [vmem:[#allocation3 + $0x18] sm:$0xf]
        %v1974 = vld [vmem:[#allocation3 + $0x1c] sm:$0xf]
        %v1975 = vld [vmem:[#allocation3 + $0x20] sm:$0xf]
        %v1976 = vld [vmem:[#allocation3 + $0x24] sm:$0xf]
        %v1977 = vld [vmem:[#allocation3 + $0x28] sm:$0xf]
        %v1978 = vld [vmem:[#allocation3 + $0x2c] sm:$0xf]
        %v1979 = vld [vmem:[#allocation3 + $0x30] sm:$0xf]
        %v1980 = vld [vmem:[#allocation3 + $0x34] sm:$0xf]
        %v1981 = vld [vmem:[#allocation3 + $0x38] sm:$0xf]
        %v1982 = vld [vmem:[#allocation3 + $0x3c] sm:$0xf]
        %v1983 = vld [vmem:[#allocation3 + $0x40] sm:$0xf]
        %v1984 = vld [vmem:[#allocation3 + $0x44] sm:$0xf]
        %v1985 = vld [vmem:[#allocation3 + $0x48] sm:$0xf]
        %v1986 = vld [vmem:[#allocation3 + $0x4c] sm:$0xf]
        %v1987 = vld [vmem:[#allocation11 + $0x20] sm:$0xf]
        %v1988 = vld [vmem:[#allocation11 + $0x24] sm:$0xf]
        %v2005 = vunpack.c.l.b16 %v1971
        %v2006 = vunpack.c.l.b16 %v1972
        %v2007 = vunpack.c.l.b16 %v1973
        %v2008 = vunpack.c.l.b16 %v1974
        %v2009 = vunpack.c.l.b16 %v1975
        %v2010 = vunpack.c.l.b16 %v1976
        %v2011 = vunpack.c.l.b16 %v1977
        %v2012 = vunpack.c.l.b16 %v1978
        %v2013 = vunpack.c.l.b16 %v1979
        %v2014 = vunpack.c.l.b16 %v1980
        %v2015 = vunpack.c.l.b16 %v1981
        %v2016 = vunpack.c.l.b16 %v1982
        %v2017 = vunpack.c.l.b16 %v1983
        %v2018 = vunpack.c.l.b16 %v1984
        %v2019 = vunpack.c.l.b16 %v1985
        %v2020 = vunpack.c.l.b16 %v1986
        %v2021 = vpack.c.b16 %v2006, %v2005
        %v2022 = vpack.c.b16 %v2008, %v2007
        %v2023 = vpack.c.b16 %v2010, %v2009
        %v2024 = vpack.c.b16 %v2012, %v2011
        %v2025 = vpack.c.b16 %v2014, %v2013
        %v2026 = vpack.c.b16 %v2016, %v2015
        %v2027 = vpack.c.b16 %v2018, %v2017
        %v2028 = vpack.c.b16 %v2020, %v2019
        %v2031 = vunpack.c.l.b16 %v1987
        %v2032 = vunpack.c.l.b16 %v1988
        %v2033 = vpack.c.b16 %v2032, %v2031
        %v2036 = vsel %vm556, %v2021, 0
        %v2039 = vsel %vm556, %v2022, 0
        %v2042 = vsel %vm556, %v2023, 0
        %v2045 = vsel %vm556, %v2024, 0
        %v2048 = vsel %vm556, %v2025, 0
        %v2051 = vsel %vm556, %v2026, 0
        %v2054 = vsel %vm556, %v2027, 0
        %v2057 = vsel %vm556, %v2028, 0
        %2059 = vmatprep.subr.bf16.mxu0 0
        %2060 = vmatpush1.bf16.msra.mxu0 %v2033
        %2061 = vmatprep.subr.bf16.mxu0 0
        %2062 = vmatpush1.bf16.msra.mxu0 0
        %2063 = vmatprep.subr.bf16.mxu0 0
        %2064 = vmatpush1.bf16.msra.mxu0 0
        %2065 = vmatprep.subr.bf16.mxu0 0
        %2066 = vmatpush1.bf16.msra.mxu0 0
        %2067 = vmatprep.subr.bf16.mxu0 0
        %2068 = vmatpush1.bf16.msra.mxu0 0
        %2069 = vmatprep.subr.bf16.mxu0 0
        %2070 = vmatpush1.bf16.msra.mxu0 0
        %2071 = vmatprep.subr.bf16.mxu0 0
        %2072 = vmatpush1.bf16.msra.mxu0 0
        %2073 = vmatprep.subr.bf16.mxu0 0
        %2074 = vmatpush1.bf16.msra.mxu0 0
        %2075 = vmatprep.subr.bf16.mxu0 0
        %2076 = vmatpush1.bf16.msra.mxu0 0
        %2077 = vmatprep.subr.bf16.mxu0 0
        %2078 = vmatpush1.bf16.msra.mxu0 0
        %2079 = vmatprep.subr.bf16.mxu0 0
        %2080 = vmatpush1.bf16.msra.mxu0 0
        %2081 = vmatprep.subr.bf16.mxu0 0
        %2082 = vmatpush1.bf16.msra.mxu0 0
        %2083 = vmatprep.subr.bf16.mxu0 0
        %2084 = vmatpush1.bf16.msra.mxu0 0
        %2085 = vmatprep.subr.bf16.mxu0 0
        %2086 = vmatpush1.bf16.msra.mxu0 0
        %2087 = vmatprep.subr.bf16.mxu0 0
        %2088 = vmatpush1.bf16.msra.mxu0 0
        %2089 = vmatprep.subr.bf16.mxu0 0
        %2090 = vmatpush1.bf16.msra.mxu0 0
        %2091 = vmatprep.mubr.bf16.mxu0 0
        %2092 = vmatmul.mubr.bf16.gmra.mrb[0].mxu0 %v2036
        %v2093 = vpop.f32.mrb[0].mxu0
        %v2094 = vadd.f32 0.0, %v2093
        %v2095 = vpop.f32.mrb[0].mxu0
        %v2096 = vpop.f32.mrb[0].mxu0
        %v2097 = vadd.f32 0.0, %v2096
        %v2098 = vpop.f32.mrb[0].mxu0
        %2099 = vmatprep.mubr.bf16.mxu0 0
        %2100 = vmatmul.mubr.bf16.gmra.mrb[0].mxu0 %v2039
        %v2101 = vpop.f32.mrb[0].mxu0
        %v2102 = vadd.f32 0.0, %v2101
        %v2103 = vpop.f32.mrb[0].mxu0
        %v2104 = vpop.f32.mrb[0].mxu0
        %v2105 = vadd.f32 0.0, %v2104
        %v2106 = vpop.f32.mrb[0].mxu0
        %2107 = vmatprep.mubr.bf16.mxu0 0
        %2108 = vmatmul.mubr.bf16.gmra.mrb[0].mxu0 %v2042
        %v2109 = vpop.f32.mrb[0].mxu0
        %v2110 = vadd.f32 0.0, %v2109
        %v2111 = vpop.f32.mrb[0].mxu0
        %v2112 = vpop.f32.mrb[0].mxu0
        %v2113 = vadd.f32 0.0, %v2112
        %v2114 = vpop.f32.mrb[0].mxu0
        %2115 = vmatprep.mubr.bf16.mxu0 0
        %2116 = vmatmul.mubr.bf16.gmra.mrb[0].mxu0 %v2045
        %v2117 = vpop.f32.mrb[0].mxu0
        %v2118 = vadd.f32 0.0, %v2117
        %v2119 = vpop.f32.mrb[0].mxu0
        %v2120 = vpop.f32.mrb[0].mxu0
        %v2121 = vadd.f32 0.0, %v2120
        %v2122 = vpop.f32.mrb[0].mxu0
        %2123 = vmatprep.mubr.bf16.mxu0 0
        %2124 = vmatmul.mubr.bf16.gmra.mrb[0].mxu0 %v2048
        %v2125 = vpop.f32.mrb[0].mxu0
        %v2126 = vadd.f32 0.0, %v2125
        %v2127 = vpop.f32.mrb[0].mxu0
        %v2128 = vpop.f32.mrb[0].mxu0
        %v2129 = vadd.f32 0.0, %v2128
        %v2130 = vpop.f32.mrb[0].mxu0
        %2131 = vmatprep.mubr.bf16.mxu0 0
        %2132 = vmatmul.mubr.bf16.gmra.mrb[0].mxu0 %v2051
        %v2133 = vpop.f32.mrb[0].mxu0
        %v2134 = vadd.f32 0.0, %v2133
        %v2135 = vpop.f32.mrb[0].mxu0
        %v2136 = vpop.f32.mrb[0].mxu0
        %v2137 = vadd.f32 0.0, %v2136
        %v2138 = vpop.f32.mrb[0].mxu0
        %2139 = vmatprep.mubr.bf16.mxu0 0
        %2140 = vmatmul.mubr.bf16.gmra.mrb[0].mxu0 %v2054
        %v2141 = vpop.f32.mrb[0].mxu0
        %v2142 = vadd.f32 0.0, %v2141
        %v2143 = vpop.f32.mrb[0].mxu0
        %v2144 = vpop.f32.mrb[0].mxu0
        %v2145 = vadd.f32 0.0, %v2144
        %v2146 = vpop.f32.mrb[0].mxu0
        %2147 = vmatprep.mubr.bf16.mxu0 0
        %2148 = vmatmul.mubr.bf16.gmra.mrb[0].mxu0 %v2057
        %v2149 = vpop.f32.mrb[0].mxu0
        %v2150 = vadd.f32 0.0, %v2149
        %v2151 = vpop.f32.mrb[0].mxu0
        %v2152 = vpop.f32.mrb[0].mxu0
        %v2153 = vadd.f32 0.0, %v2152
        %v2154 = vpop.f32.mrb[0].mxu0
        %2155 = vdwg.mxu0
        %v2156 = vld [vmem:[#allocation4] sm:$0xff]
        %v2157 = vld [vmem:[#allocation4 + $0x8] sm:$0xff]
        %v2158 = vld [vmem:[#allocation4 + $0x10] sm:$0xff]
        %v2159 = vld [vmem:[#allocation4 + $0x18] sm:$0xff]
        %v2160 = vld [vmem:[#allocation4 + $0x20] sm:$0xff]
        %v2161 = vld [vmem:[#allocation4 + $0x28] sm:$0xff]
        %v2162 = vld [vmem:[#allocation4 + $0x30] sm:$0xff]
        %v2163 = vld [vmem:[#allocation4 + $0x38] sm:$0xff]
        %v2164 = vld [vmem:[#allocation4 + $0x40] sm:$0xff]
        %v2165 = vld [vmem:[#allocation4 + $0x48] sm:$0xff]
        %v2166 = vld [vmem:[#allocation4 + $0x50] sm:$0xff]
        %v2167 = vld [vmem:[#allocation4 + $0x58] sm:$0xff]
        %v2168 = vld [vmem:[#allocation4 + $0x60] sm:$0xff]
        %v2169 = vld [vmem:[#allocation4 + $0x68] sm:$0xff]
        %v2170 = vld [vmem:[#allocation4 + $0x70] sm:$0xff]
        %v2171 = vld [vmem:[#allocation4 + $0x78] sm:$0xff]
        %v2172 = vadd.f32 %v2156, %v2094
        %v2173 = vadd.f32 %v2157, %v2097
        %v2174 = vadd.f32 %v2158, %v2102
        %v2175 = vadd.f32 %v2159, %v2105
        %v2176 = vadd.f32 %v2160, %v2110
        %v2177 = vadd.f32 %v2161, %v2113
        %v2178 = vadd.f32 %v2162, %v2118
        %v2179 = vadd.f32 %v2163, %v2121
        %v2180 = vadd.f32 %v2164, %v2126
        %v2181 = vadd.f32 %v2165, %v2129
        %v2182 = vadd.f32 %v2166, %v2134
        %v2183 = vadd.f32 %v2167, %v2137
        %v2184 = vadd.f32 %v2168, %v2142
        %v2185 = vadd.f32 %v2169, %v2145
        %v2186 = vadd.f32 %v2170, %v2150
        %v2187 = vadd.f32 %v2171, %v2153
        %2188 = vst.msk [vmem:[#allocation4] sm:$0xff] %vm556, %v2172
        %2189 = vst.msk [vmem:[#allocation4 + $0x8] sm:$0xff] %vm556, %v2173
        %2190 = vst.msk [vmem:[#allocation4 + $0x10] sm:$0xff] %vm556, %v2174
        %2191 = vst.msk [vmem:[#allocation4 + $0x18] sm:$0xff] %vm556, %v2175
        %2192 = vst.msk [vmem:[#allocation4 + $0x20] sm:$0xff] %vm556, %v2176
        %2193 = vst.msk [vmem:[#allocation4 + $0x28] sm:$0xff] %vm556, %v2177
        %2194 = vst.msk [vmem:[#allocation4 + $0x30] sm:$0xff] %vm556, %v2178
        %2195 = vst.msk [vmem:[#allocation4 + $0x38] sm:$0xff] %vm556, %v2179
        %2196 = vst.msk [vmem:[#allocation4 + $0x40] sm:$0xff] %vm556, %v2180
        %2197 = vst.msk [vmem:[#allocation4 + $0x48] sm:$0xff] %vm556, %v2181
        %2198 = vst.msk [vmem:[#allocation4 + $0x50] sm:$0xff] %vm556, %v2182
        %2199 = vst.msk [vmem:[#allocation4 + $0x58] sm:$0xff] %vm556, %v2183
        %2200 = vst.msk [vmem:[#allocation4 + $0x60] sm:$0xff] %vm556, %v2184
        %2201 = vst.msk [vmem:[#allocation4 + $0x68] sm:$0xff] %vm556, %v2185
        %2202 = vst.msk [vmem:[#allocation4 + $0x70] sm:$0xff] %vm556, %v2186
        %2203 = vst.msk [vmem:[#allocation4 + $0x78] sm:$0xff] %vm556, %v2187
        %v2204 = vld [vmem:[#allocation3 + $0x10] sm:$0xf]
        %v2205 = vld [vmem:[#allocation3 + $0x14] sm:$0xf]
        %v2206 = vld [vmem:[#allocation3 + $0x18] sm:$0xf]
        %v2207 = vld [vmem:[#allocation3 + $0x1c] sm:$0xf]
        %v2208 = vld [vmem:[#allocation3 + $0x20] sm:$0xf]
        %v2209 = vld [vmem:[#allocation3 + $0x24] sm:$0xf]
        %v2210 = vld [vmem:[#allocation3 + $0x28] sm:$0xf]
        %v2211 = vld [vmem:[#allocation3 + $0x2c] sm:$0xf]
        %v2212 = vld [vmem:[#allocation3 + $0x30] sm:$0xf]
        %v2213 = vld [vmem:[#allocation3 + $0x34] sm:$0xf]
        %v2214 = vld [vmem:[#allocation3 + $0x38] sm:$0xf]
        %v2215 = vld [vmem:[#allocation3 + $0x3c] sm:$0xf]
        %v2216 = vld [vmem:[#allocation3 + $0x40] sm:$0xf]
        %v2217 = vld [vmem:[#allocation3 + $0x44] sm:$0xf]
        %v2218 = vld [vmem:[#allocation3 + $0x48] sm:$0xf]
        %v2219 = vld [vmem:[#allocation3 + $0x4c] sm:$0xf]
        %v2220 = vld [vmem:[#allocation3 + $0x50] sm:$0x1]
        %v2221 = vld [vmem:[#allocation11 + $0x28] sm:$0xf]
        %v2222 = vld [vmem:[#allocation11 + $0x2c] sm:$0xf]
        %v2240 = vunpack.c.l.b16 %v2204
        %v2241 = vunpack.c.l.b16 %v2205
        %v2242 = vunpack.c.l.b16 %v2206
        %v2243 = vunpack.c.l.b16 %v2207
        %v2244 = vunpack.c.l.b16 %v2208
        %v2245 = vunpack.c.l.b16 %v2209
        %v2246 = vunpack.c.l.b16 %v2210
        %v2247 = vunpack.c.l.b16 %v2211
        %v2248 = vunpack.c.l.b16 %v2212
        %v2249 = vunpack.c.l.b16 %v2213
        %v2250 = vunpack.c.l.b16 %v2214
        %v2251 = vunpack.c.l.b16 %v2215
        %v2252 = vunpack.c.l.b16 %v2216
        %v2253 = vunpack.c.l.b16 %v2217
        %v2254 = vunpack.c.l.b16 %v2218
        %v2255 = vunpack.c.l.b16 %v2219
        %v2256 = vunpack.c.l.b16 %v2220
        %v2257 = vpack.c.b16 %v2241, %v2240
        %v2258 = vpack.c.b16 %v2243, %v2242
        %v2259 = vpack.c.b16 %v2245, %v2244
        %v2260 = vpack.c.b16 %v2247, %v2246
        %v2261 = vpack.c.b16 %v2249, %v2248
        %v2262 = vpack.c.b16 %v2251, %v2250
        %v2263 = vpack.c.b16 %v2253, %v2252
        %v2264 = vpack.c.b16 %v2255, %v2254
        %v2265 = vpack.c.b16 %v2256, %v2256
        %v2267 = vshrl.u32 %v2257, 16
        %v2269 = vshll.u32 %v2257, 16
        %v2271 = vrot.slane %v2269, 1
        %v2272 = vor.u32 %v2267, %v2271
        %v2274 = vshll.u32 %v2258, 16
        %v2276 = vrot.slane %v2274, 1
        %v2277 = vsel %vm1410, %v2272, %v2276
        %v2278 = vshrl.u32 %v2258, 16
        %v2280 = vor.u32 %v2278, %v2276
        %v2282 = vshll.u32 %v2259, 16
        %v2284 = vrot.slane %v2282, 1
        %v2285 = vsel %vm1410, %v2280, %v2284
        %v2286 = vshrl.u32 %v2259, 16
        %v2288 = vor.u32 %v2286, %v2284
        %v2290 = vshll.u32 %v2260, 16
        %v2292 = vrot.slane %v2290, 1
        %v2293 = vsel %vm1410, %v2288, %v2292
        %v2294 = vshrl.u32 %v2260, 16
        %v2296 = vor.u32 %v2294, %v2292
        %v2298 = vshll.u32 %v2261, 16
        %v2300 = vrot.slane %v2298, 1
        %v2301 = vsel %vm1410, %v2296, %v2300
        %v2302 = vshrl.u32 %v2261, 16
        %v2304 = vor.u32 %v2302, %v2300
        %v2306 = vshll.u32 %v2262, 16
        %v2308 = vrot.slane %v2306, 1
        %v2309 = vsel %vm1410, %v2304, %v2308
        %v2310 = vshrl.u32 %v2262, 16
        %v2312 = vor.u32 %v2310, %v2308
        %v2314 = vshll.u32 %v2263, 16
        %v2316 = vrot.slane %v2314, 1
        %v2317 = vsel %vm1410, %v2312, %v2316
        %v2318 = vshrl.u32 %v2263, 16
        %v2320 = vor.u32 %v2318, %v2316
        %v2322 = vshll.u32 %v2264, 16
        %v2324 = vrot.slane %v2322, 1
        %v2325 = vsel %vm1410, %v2320, %v2324
        %v2326 = vshrl.u32 %v2264, 16
        %v2328 = vor.u32 %v2326, %v2324
        %v2330 = vshll.u32 %v2265, 16
        %v2332 = vrot.slane %v2330, 1
        %v2333 = vsel %vm1410, %v2328, %v2332
        %v2336 = vunpack.c.l.b16 %v2221
        %v2337 = vunpack.c.l.b16 %v2222
        %v2338 = vpack.c.b16 %v2337, %v2336
        %v2341 = vsel %vm556, %v2277, 0
        %v2344 = vsel %vm556, %v2285, 0
        %v2347 = vsel %vm556, %v2293, 0
        %v2350 = vsel %vm556, %v2301, 0
        %v2353 = vsel %vm556, %v2309, 0
        %v2356 = vsel %vm556, %v2317, 0
        %v2359 = vsel %vm556, %v2325, 0
        %v2362 = vsel %vm556, %v2333, 0
        %2364 = vmatprep.subr.bf16.mxu0 0
        %2365 = vmatpush1.bf16.msra.mxu0 %v2338
        %2366 = vmatprep.subr.bf16.mxu0 0
        %2367 = vmatpush1.bf16.msra.mxu0 0
        %2368 = vmatprep.subr.bf16.mxu0 0
        %2369 = vmatpush1.bf16.msra.mxu0 0
        %2370 = vmatprep.subr.bf16.mxu0 0
        %2371 = vmatpush1.bf16.msra.mxu0 0
        %2372 = vmatprep.subr.bf16.mxu0 0
        %2373 = vmatpush1.bf16.msra.mxu0 0
        %2374 = vmatprep.subr.bf16.mxu0 0
        %2375 = vmatpush1.bf16.msra.mxu0 0
        %2376 = vmatprep.subr.bf16.mxu0 0
        %2377 = vmatpush1.bf16.msra.mxu0 0
        %2378 = vmatprep.subr.bf16.mxu0 0
        %2379 = vmatpush1.bf16.msra.mxu0 0
        %2380 = vmatprep.subr.bf16.mxu0 0
        %2381 = vmatpush1.bf16.msra.mxu0 0
        %2382 = vmatprep.subr.bf16.mxu0 0
        %2383 = vmatpush1.bf16.msra.mxu0 0
        %2384 = vmatprep.subr.bf16.mxu0 0
        %2385 = vmatpush1.bf16.msra.mxu0 0
        %2386 = vmatprep.subr.bf16.mxu0 0
        %2387 = vmatpush1.bf16.msra.mxu0 0
        %2388 = vmatprep.subr.bf16.mxu0 0
        %2389 = vmatpush1.bf16.msra.mxu0 0
        %2390 = vmatprep.subr.bf16.mxu0 0
        %2391 = vmatpush1.bf16.msra.mxu0 0
        %2392 = vmatprep.subr.bf16.mxu0 0
        %2393 = vmatpush1.bf16.msra.mxu0 0
        %2394 = vmatprep.subr.bf16.mxu0 0
        %2395 = vmatpush1.bf16.msra.mxu0 0
        %2396 = vmatprep.mubr.bf16.mxu0 0
        %2397 = vmatmul.mubr.bf16.gmra.mrb[0].mxu0 %v2341
        %v2398 = vpop.f32.mrb[0].mxu0
        %v2399 = vadd.f32 0.0, %v2398
        %v2400 = vpop.f32.mrb[0].mxu0
        %v2401 = vpop.f32.mrb[0].mxu0
        %v2402 = vadd.f32 0.0, %v2401
        %v2403 = vpop.f32.mrb[0].mxu0
        %2404 = vmatprep.mubr.bf16.mxu0 0
        %2405 = vmatmul.mubr.bf16.gmra.mrb[0].mxu0 %v2344
        %v2406 = vpop.f32.mrb[0].mxu0
        %v2407 = vadd.f32 0.0, %v2406
        %v2408 = vpop.f32.mrb[0].mxu0
        %v2409 = vpop.f32.mrb[0].mxu0
        %v2410 = vadd.f32 0.0, %v2409
        %v2411 = vpop.f32.mrb[0].mxu0
        %2412 = vmatprep.mubr.bf16.mxu0 0
        %2413 = vmatmul.mubr.bf16.gmra.mrb[0].mxu0 %v2347
        %v2414 = vpop.f32.mrb[0].mxu0
        %v2415 = vadd.f32 0.0, %v2414
        %v2416 = vpop.f32.mrb[0].mxu0
        %v2417 = vpop.f32.mrb[0].mxu0
        %v2418 = vadd.f32 0.0, %v2417
        %v2419 = vpop.f32.mrb[0].mxu0
        %2420 = vmatprep.mubr.bf16.mxu0 0
        %2421 = vmatmul.mubr.bf16.gmra.mrb[0].mxu0 %v2350
        %v2422 = vpop.f32.mrb[0].mxu0
        %v2423 = vadd.f32 0.0, %v2422
        %v2424 = vpop.f32.mrb[0].mxu0
        %v2425 = vpop.f32.mrb[0].mxu0
        %v2426 = vadd.f32 0.0, %v2425
        %v2427 = vpop.f32.mrb[0].mxu0
        %2428 = vmatprep.mubr.bf16.mxu0 0
        %2429 = vmatmul.mubr.bf16.gmra.mrb[0].mxu0 %v2353
        %v2430 = vpop.f32.mrb[0].mxu0
        %v2431 = vadd.f32 0.0, %v2430
        %v2432 = vpop.f32.mrb[0].mxu0
        %v2433 = vpop.f32.mrb[0].mxu0
        %v2434 = vadd.f32 0.0, %v2433
        %v2435 = vpop.f32.mrb[0].mxu0
        %2436 = vmatprep.mubr.bf16.mxu0 0
        %2437 = vmatmul.mubr.bf16.gmra.mrb[0].mxu0 %v2356
        %v2438 = vpop.f32.mrb[0].mxu0
        %v2439 = vadd.f32 0.0, %v2438
        %v2440 = vpop.f32.mrb[0].mxu0
        %v2441 = vpop.f32.mrb[0].mxu0
        %v2442 = vadd.f32 0.0, %v2441
        %v2443 = vpop.f32.mrb[0].mxu0
        %2444 = vmatprep.mubr.bf16.mxu0 0
        %2445 = vmatmul.mubr.bf16.gmra.mrb[0].mxu0 %v2359
        %v2446 = vpop.f32.mrb[0].mxu0
        %v2447 = vadd.f32 0.0, %v2446
        %v2448 = vpop.f32.mrb[0].mxu0
        %v2449 = vpop.f32.mrb[0].mxu0
        %v2450 = vadd.f32 0.0, %v2449
        %v2451 = vpop.f32.mrb[0].mxu0
        %2452 = vmatprep.mubr.bf16.mxu0 0
        %2453 = vmatmul.mubr.bf16.gmra.mrb[0].mxu0 %v2362
        %v2454 = vpop.f32.mrb[0].mxu0
        %v2455 = vadd.f32 0.0, %v2454
        %v2456 = vpop.f32.mrb[0].mxu0
        %v2457 = vpop.f32.mrb[0].mxu0
        %v2458 = vadd.f32 0.0, %v2457
        %v2459 = vpop.f32.mrb[0].mxu0
        %2460 = vdwg.mxu0
        %v2461 = vld [vmem:[#allocation4] sm:$0xff]
        %v2462 = vld [vmem:[#allocation4 + $0x8] sm:$0xff]
        %v2463 = vld [vmem:[#allocation4 + $0x10] sm:$0xff]
        %v2464 = vld [vmem:[#allocation4 + $0x18] sm:$0xff]
        %v2465 = vld [vmem:[#allocation4 + $0x20] sm:$0xff]
        %v2466 = vld [vmem:[#allocation4 + $0x28] sm:$0xff]
        %v2467 = vld [vmem:[#allocation4 + $0x30] sm:$0xff]
        %v2468 = vld [vmem:[#allocation4 + $0x38] sm:$0xff]
        %v2469 = vld [vmem:[#allocation4 + $0x40] sm:$0xff]
        %v2470 = vld [vmem:[#allocation4 + $0x48] sm:$0xff]
        %v2471 = vld [vmem:[#allocation4 + $0x50] sm:$0xff]
        %v2472 = vld [vmem:[#allocation4 + $0x58] sm:$0xff]
        %v2473 = vld [vmem:[#allocation4 + $0x60] sm:$0xff]
        %v2474 = vld [vmem:[#allocation4 + $0x68] sm:$0xff]
        %v2475 = vld [vmem:[#allocation4 + $0x70] sm:$0xff]
        %v2476 = vld [vmem:[#allocation4 + $0x78] sm:$0xff]
        %v2477 = vadd.f32 %v2461, %v2399
        %v2478 = vadd.f32 %v2462, %v2402
        %v2479 = vadd.f32 %v2463, %v2407
        %v2480 = vadd.f32 %v2464, %v2410
        %v2481 = vadd.f32 %v2465, %v2415
        %v2482 = vadd.f32 %v2466, %v2418
        %v2483 = vadd.f32 %v2467, %v2423
        %v2484 = vadd.f32 %v2468, %v2426
        %v2485 = vadd.f32 %v2469, %v2431
        %v2486 = vadd.f32 %v2470, %v2434
        %v2487 = vadd.f32 %v2471, %v2439
        %v2488 = vadd.f32 %v2472, %v2442
        %v2489 = vadd.f32 %v2473, %v2447
        %v2490 = vadd.f32 %v2474, %v2450
        %v2491 = vadd.f32 %v2475, %v2455
        %v2492 = vadd.f32 %v2476, %v2458
        %2493 = vst.msk [vmem:[#allocation4] sm:$0xff] %vm556, %v2477
        %2494 = vst.msk [vmem:[#allocation4 + $0x8] sm:$0xff] %vm556, %v2478
        %2495 = vst.msk [vmem:[#allocation4 + $0x10] sm:$0xff] %vm556, %v2479
        %2496 = vst.msk [vmem:[#allocation4 + $0x18] sm:$0xff] %vm556, %v2480
        %2497 = vst.msk [vmem:[#allocation4 + $0x20] sm:$0xff] %vm556, %v2481
        %2498 = vst.msk [vmem:[#allocation4 + $0x28] sm:$0xff] %vm556, %v2482
        %2499 = vst.msk [vmem:[#allocation4 + $0x30] sm:$0xff] %vm556, %v2483
        %2500 = vst.msk [vmem:[#allocation4 + $0x38] sm:$0xff] %vm556, %v2484
        %2501 = vst.msk [vmem:[#allocation4 + $0x40] sm:$0xff] %vm556, %v2485
        %2502 = vst.msk [vmem:[#allocation4 + $0x48] sm:$0xff] %vm556, %v2486
        %2503 = vst.msk [vmem:[#allocation4 + $0x50] sm:$0xff] %vm556, %v2487
        %2504 = vst.msk [vmem:[#allocation4 + $0x58] sm:$0xff] %vm556, %v2488
        %2505 = vst.msk [vmem:[#allocation4 + $0x60] sm:$0xff] %vm556, %v2489
        %2506 = vst.msk [vmem:[#allocation4 + $0x68] sm:$0xff] %vm556, %v2490
        %2507 = vst.msk [vmem:[#allocation4 + $0x70] sm:$0xff] %vm556, %v2491
        %2508 = vst.msk [vmem:[#allocation4 + $0x78] sm:$0xff] %vm556, %v2492
        %v2509 = vld [vmem:[#allocation3 + $0x14] sm:$0x8]
        %v2510 = vld [vmem:[#allocation3 + $0x18] sm:$0xf]
        %v2511 = vld [vmem:[#allocation3 + $0x1c] sm:$0xf]
        %v2512 = vld [vmem:[#allocation3 + $0x20] sm:$0xf]
        %v2513 = vld [vmem:[#allocation3 + $0x24] sm:$0xf]
        %v2514 = vld [vmem:[#allocation3 + $0x28] sm:$0xf]
        %v2515 = vld [vmem:[#allocation3 + $0x2c] sm:$0xf]
        %v2516 = vld [vmem:[#allocation3 + $0x30] sm:$0xf]
        %v2517 = vld [vmem:[#allocation3 + $0x34] sm:$0xf]
        %v2518 = vld [vmem:[#allocation3 + $0x38] sm:$0xf]
        %v2519 = vld [vmem:[#allocation3 + $0x3c] sm:$0xf]
        %v2520 = vld [vmem:[#allocation3 + $0x40] sm:$0xf]
        %v2521 = vld [vmem:[#allocation3 + $0x44] sm:$0xf]
        %v2522 = vld [vmem:[#allocation3 + $0x48] sm:$0xf]
        %v2523 = vld [vmem:[#allocation3 + $0x4c] sm:$0xf]
        %v2524 = vld [vmem:[#allocation3 + $0x50] sm:$0xf]
        %v2525 = vld [vmem:[#allocation3 + $0x54] sm:$0xf]
        %v2526 = vld [vmem:[#allocation11 + $0x30] sm:$0xf]
        %v2527 = vld [vmem:[#allocation11 + $0x34] sm:$0xf]
        %v2545 = vunpack.c.l.b16 %v2509
        %v2546 = vunpack.c.l.b16 %v2510
        %v2547 = vunpack.c.l.b16 %v2511
        %v2548 = vunpack.c.l.b16 %v2512
        %v2549 = vunpack.c.l.b16 %v2513
        %v2550 = vunpack.c.l.b16 %v2514
        %v2551 = vunpack.c.l.b16 %v2515
        %v2552 = vunpack.c.l.b16 %v2516
        %v2553 = vunpack.c.l.b16 %v2517
        %v2554 = vunpack.c.l.b16 %v2518
        %v2555 = vunpack.c.l.b16 %v2519
        %v2556 = vunpack.c.l.b16 %v2520
        %v2557 = vunpack.c.l.b16 %v2521
        %v2558 = vunpack.c.l.b16 %v2522
        %v2559 = vunpack.c.l.b16 %v2523
        %v2560 = vunpack.c.l.b16 %v2524
        %v2561 = vunpack.c.l.b16 %v2525
        %v2562 = vpack.c.b16 %v2546, %v2545
        %v2563 = vpack.c.b16 %v2548, %v2547
        %v2564 = vpack.c.b16 %v2550, %v2549
        %v2565 = vpack.c.b16 %v2552, %v2551
        %v2566 = vpack.c.b16 %v2554, %v2553
        %v2567 = vpack.c.b16 %v2556, %v2555
        %v2568 = vpack.c.b16 %v2558, %v2557
        %v2569 = vpack.c.b16 %v2560, %v2559
        %v2570 = vpack.c.b16 %v2561, %v2561
        %v2572 = vshrl.u32 %v2562, 16
        %v2574 = vrot.slane %v2572, 3
        %v2575 = vshll.u32 %v2562, 16
        %v2577 = vrot.slane %v2575, 4
        %v2578 = vor.u32 %v2574, %v2577
        %v2580 = vshrl.u32 %v2563, 16
        %v2582 = vrot.slane %v2580, 3
        %v2583 = vshll.u32 %v2563, 16
        %v2585 = vrot.slane %v2583, 4
        %v2586 = vor.u32 %v2582, %v2585
        %v2587 = vsel %vm891, %v2578, %v2586
        %v2589 = vshrl.u32 %v2564, 16
        %v2591 = vrot.slane %v2589, 3
        %v2592 = vshll.u32 %v2564, 16
        %v2594 = vrot.slane %v2592, 4
        %v2595 = vor.u32 %v2591, %v2594
        %v2596 = vsel %vm891, %v2586, %v2595
        %v2598 = vshrl.u32 %v2565, 16
        %v2600 = vrot.slane %v2598, 3
        %v2601 = vshll.u32 %v2565, 16
        %v2603 = vrot.slane %v2601, 4
        %v2604 = vor.u32 %v2600, %v2603
        %v2605 = vsel %vm891, %v2595, %v2604
        %v2607 = vshrl.u32 %v2566, 16
        %v2609 = vrot.slane %v2607, 3
        %v2610 = vshll.u32 %v2566, 16
        %v2612 = vrot.slane %v2610, 4
        %v2613 = vor.u32 %v2609, %v2612
        %v2614 = vsel %vm891, %v2604, %v2613
        %v2616 = vshrl.u32 %v2567, 16
        %v2618 = vrot.slane %v2616, 3
        %v2619 = vshll.u32 %v2567, 16
        %v2621 = vrot.slane %v2619, 4
        %v2622 = vor.u32 %v2618, %v2621
        %v2623 = vsel %vm891, %v2613, %v2622
        %v2625 = vshrl.u32 %v2568, 16
        %v2627 = vrot.slane %v2625, 3
        %v2628 = vshll.u32 %v2568, 16
        %v2630 = vrot.slane %v2628, 4
        %v2631 = vor.u32 %v2627, %v2630
        %v2632 = vsel %vm891, %v2622, %v2631
        %v2634 = vshrl.u32 %v2569, 16
        %v2636 = vrot.slane %v2634, 3
        %v2637 = vshll.u32 %v2569, 16
        %v2639 = vrot.slane %v2637, 4
        %v2640 = vor.u32 %v2636, %v2639
        %v2641 = vsel %vm891, %v2631, %v2640
        %v2643 = vshrl.u32 %v2570, 16
        %v2645 = vrot.slane %v2643, 3
        %v2646 = vshll.u32 %v2570, 16
        %v2648 = vrot.slane %v2646, 4
        %v2649 = vor.u32 %v2645, %v2648
        %v2650 = vsel %vm891, %v2640, %v2649
        %v2653 = vunpack.c.l.b16 %v2526
        %v2654 = vunpack.c.l.b16 %v2527
        %v2655 = vpack.c.b16 %v2654, %v2653
        %v2658 = vsel %vm556, %v2587, 0
        %v2661 = vsel %vm556, %v2596, 0
        %v2664 = vsel %vm556, %v2605, 0
        %v2667 = vsel %vm556, %v2614, 0
        %v2670 = vsel %vm556, %v2623, 0
        %v2673 = vsel %vm556, %v2632, 0
        %v2676 = vsel %vm556, %v2641, 0
        %v2679 = vsel %vm556, %v2650, 0
        %2681 = vmatprep.subr.bf16.mxu0 0
        %2682 = vmatpush1.bf16.msra.mxu0 %v2655
        %2683 = vmatprep.subr.bf16.mxu0 0
        %2684 = vmatpush1.bf16.msra.mxu0 0
        %2685 = vmatprep.subr.bf16.mxu0 0
        %2686 = vmatpush1.bf16.msra.mxu0 0
        %2687 = vmatprep.subr.bf16.mxu0 0
        %2688 = vmatpush1.bf16.msra.mxu0 0
        %2689 = vmatprep.subr.bf16.mxu0 0
        %2690 = vmatpush1.bf16.msra.mxu0 0
        %2691 = vmatprep.subr.bf16.mxu0 0
        %2692 = vmatpush1.bf16.msra.mxu0 0
        %2693 = vmatprep.subr.bf16.mxu0 0
        %2694 = vmatpush1.bf16.msra.mxu0 0
        %2695 = vmatprep.subr.bf16.mxu0 0
        %2696 = vmatpush1.bf16.msra.mxu0 0
        %2697 = vmatprep.subr.bf16.mxu0 0
        %2698 = vmatpush1.bf16.msra.mxu0 0
        %2699 = vmatprep.subr.bf16.mxu0 0
        %2700 = vmatpush1.bf16.msra.mxu0 0
        %2701 = vmatprep.subr.bf16.mxu0 0
        %2702 = vmatpush1.bf16.msra.mxu0 0
        %2703 = vmatprep.subr.bf16.mxu0 0
        %2704 = vmatpush1.bf16.msra.mxu0 0
        %2705 = vmatprep.subr.bf16.mxu0 0
        %2706 = vmatpush1.bf16.msra.mxu0 0
        %2707 = vmatprep.subr.bf16.mxu0 0
        %2708 = vmatpush1.bf16.msra.mxu0 0
        %2709 = vmatprep.subr.bf16.mxu0 0
        %2710 = vmatpush1.bf16.msra.mxu0 0
        %2711 = vmatprep.subr.bf16.mxu0 0
        %2712 = vmatpush1.bf16.msra.mxu0 0
        %2713 = vmatprep.mubr.bf16.mxu0 0
        %2714 = vmatmul.mubr.bf16.gmra.mrb[0].mxu0 %v2658
        %v2715 = vpop.f32.mrb[0].mxu0
        %v2716 = vadd.f32 0.0, %v2715
        %v2717 = vpop.f32.mrb[0].mxu0
        %v2718 = vpop.f32.mrb[0].mxu0
        %v2719 = vadd.f32 0.0, %v2718
        %v2720 = vpop.f32.mrb[0].mxu0
        %2721 = vmatprep.mubr.bf16.mxu0 0
        %2722 = vmatmul.mubr.bf16.gmra.mrb[0].mxu0 %v2661
        %v2723 = vpop.f32.mrb[0].mxu0
        %v2724 = vadd.f32 0.0, %v2723
        %v2725 = vpop.f32.mrb[0].mxu0
        %v2726 = vpop.f32.mrb[0].mxu0
        %v2727 = vadd.f32 0.0, %v2726
        %v2728 = vpop.f32.mrb[0].mxu0
        %2729 = vmatprep.mubr.bf16.mxu0 0
        %2730 = vmatmul.mubr.bf16.gmra.mrb[0].mxu0 %v2664
        %v2731 = vpop.f32.mrb[0].mxu0
        %v2732 = vadd.f32 0.0, %v2731
        %v2733 = vpop.f32.mrb[0].mxu0
        %v2734 = vpop.f32.mrb[0].mxu0
        %v2735 = vadd.f32 0.0, %v2734
        %v2736 = vpop.f32.mrb[0].mxu0
        %2737 = vmatprep.mubr.bf16.mxu0 0
        %2738 = vmatmul.mubr.bf16.gmra.mrb[0].mxu0 %v2667
        %v2739 = vpop.f32.mrb[0].mxu0
        %v2740 = vadd.f32 0.0, %v2739
        %v2741 = vpop.f32.mrb[0].mxu0
        %v2742 = vpop.f32.mrb[0].mxu0
        %v2743 = vadd.f32 0.0, %v2742
        %v2744 = vpop.f32.mrb[0].mxu0
        %2745 = vmatprep.mubr.bf16.mxu0 0
        %2746 = vmatmul.mubr.bf16.gmra.mrb[0].mxu0 %v2670
        %v2747 = vpop.f32.mrb[0].mxu0
        %v2748 = vadd.f32 0.0, %v2747
        %v2749 = vpop.f32.mrb[0].mxu0
        %v2750 = vpop.f32.mrb[0].mxu0
        %v2751 = vadd.f32 0.0, %v2750
        %v2752 = vpop.f32.mrb[0].mxu0
        %2753 = vmatprep.mubr.bf16.mxu0 0
        %2754 = vmatmul.mubr.bf16.gmra.mrb[0].mxu0 %v2673
        %v2755 = vpop.f32.mrb[0].mxu0
        %v2756 = vadd.f32 0.0, %v2755
        %v2757 = vpop.f32.mrb[0].mxu0
        %v2758 = vpop.f32.mrb[0].mxu0
        %v2759 = vadd.f32 0.0, %v2758
        %v2760 = vpop.f32.mrb[0].mxu0
        %2761 = vmatprep.mubr.bf16.mxu0 0
        %2762 = vmatmul.mubr.bf16.gmra.mrb[0].mxu0 %v2676
        %v2763 = vpop.f32.mrb[0].mxu0
        %v2764 = vadd.f32 0.0, %v2763
        %v2765 = vpop.f32.mrb[0].mxu0
        %v2766 = vpop.f32.mrb[0].mxu0
        %v2767 = vadd.f32 0.0, %v2766
        %v2768 = vpop.f32.mrb[0].mxu0
        %2769 = vmatprep.mubr.bf16.mxu0 0
        %2770 = vmatmul.mubr.bf16.gmra.mrb[0].mxu0 %v2679
        %v2771 = vpop.f32.mrb[0].mxu0
        %v2772 = vadd.f32 0.0, %v2771
        %v2773 = vpop.f32.mrb[0].mxu0
        %v2774 = vpop.f32.mrb[0].mxu0
        %v2775 = vadd.f32 0.0, %v2774
        %v2776 = vpop.f32.mrb[0].mxu0
        %2777 = vdwg.mxu0
        %v2778 = vld [vmem:[#allocation4] sm:$0xff]
        %v2779 = vld [vmem:[#allocation4 + $0x8] sm:$0xff]
        %v2780 = vld [vmem:[#allocation4 + $0x10] sm:$0xff]
        %v2781 = vld [vmem:[#allocation4 + $0x18] sm:$0xff]
        %v2782 = vld [vmem:[#allocation4 + $0x20] sm:$0xff]
        %v2783 = vld [vmem:[#allocation4 + $0x28] sm:$0xff]
        %v2784 = vld [vmem:[#allocation4 + $0x30] sm:$0xff]
        %v2785 = vld [vmem:[#allocation4 + $0x38] sm:$0xff]
        %v2786 = vld [vmem:[#allocation4 + $0x40] sm:$0xff]
        %v2787 = vld [vmem:[#allocation4 + $0x48] sm:$0xff]
        %v2788 = vld [vmem:[#allocation4 + $0x50] sm:$0xff]
        %v2789 = vld [vmem:[#allocation4 + $0x58] sm:$0xff]
        %v2790 = vld [vmem:[#allocation4 + $0x60] sm:$0xff]
        %v2791 = vld [vmem:[#allocation4 + $0x68] sm:$0xff]
        %v2792 = vld [vmem:[#allocation4 + $0x70] sm:$0xff]
        %v2793 = vld [vmem:[#allocation4 + $0x78] sm:$0xff]
        %v2794 = vadd.f32 %v2778, %v2716
        %v2795 = vadd.f32 %v2779, %v2719
        %v2796 = vadd.f32 %v2780, %v2724
        %v2797 = vadd.f32 %v2781, %v2727
        %v2798 = vadd.f32 %v2782, %v2732
        %v2799 = vadd.f32 %v2783, %v2735
        %v2800 = vadd.f32 %v2784, %v2740
        %v2801 = vadd.f32 %v2785, %v2743
        %v2802 = vadd.f32 %v2786, %v2748
        %v2803 = vadd.f32 %v2787, %v2751
        %v2804 = vadd.f32 %v2788, %v2756
        %v2805 = vadd.f32 %v2789, %v2759
        %v2806 = vadd.f32 %v2790, %v2764
        %v2807 = vadd.f32 %v2791, %v2767
        %v2808 = vadd.f32 %v2792, %v2772
        %v2809 = vadd.f32 %v2793, %v2775
        %2810 = vst.msk [vmem:[#allocation4] sm:$0xff] %vm556, %v2794
        %2811 = vst.msk [vmem:[#allocation4 + $0x8] sm:$0xff] %vm556, %v2795
        %2812 = vst.msk [vmem:[#allocation4 + $0x10] sm:$0xff] %vm556, %v2796
        %2813 = vst.msk [vmem:[#allocation4 + $0x18] sm:$0xff] %vm556, %v2797
        %2814 = vst.msk [vmem:[#allocation4 + $0x20] sm:$0xff] %vm556, %v2798
        %2815 = vst.msk [vmem:[#allocation4 + $0x28] sm:$0xff] %vm556, %v2799
        %2816 = vst.msk [vmem:[#allocation4 + $0x30] sm:$0xff] %vm556, %v2800
        %2817 = vst.msk [vmem:[#allocation4 + $0x38] sm:$0xff] %vm556, %v2801
        %2818 = vst.msk [vmem:[#allocation4 + $0x40] sm:$0xff] %vm556, %v2802
        %2819 = vst.msk [vmem:[#allocation4 + $0x48] sm:$0xff] %vm556, %v2803
        %2820 = vst.msk [vmem:[#allocation4 + $0x50] sm:$0xff] %vm556, %v2804
        %2821 = vst.msk [vmem:[#allocation4 + $0x58] sm:$0xff] %vm556, %v2805
        %2822 = vst.msk [vmem:[#allocation4 + $0x60] sm:$0xff] %vm556, %v2806
        %2823 = vst.msk [vmem:[#allocation4 + $0x68] sm:$0xff] %vm556, %v2807
        %2824 = vst.msk [vmem:[#allocation4 + $0x70] sm:$0xff] %vm556, %v2808
        %2825 = vst.msk [vmem:[#allocation4 + $0x78] sm:$0xff] %vm556, %v2809
        %v2826 = vld [vmem:[#allocation3 + $0x18] sm:$0xf]
        %v2827 = vld [vmem:[#allocation3 + $0x1c] sm:$0xf]
        %v2828 = vld [vmem:[#allocation3 + $0x20] sm:$0xf]
        %v2829 = vld [vmem:[#allocation3 + $0x24] sm:$0xf]
        %v2830 = vld [vmem:[#allocation3 + $0x28] sm:$0xf]
        %v2831 = vld [vmem:[#allocation3 + $0x2c] sm:$0xf]
        %v2832 = vld [vmem:[#allocation3 + $0x30] sm:$0xf]
        %v2833 = vld [vmem:[#allocation3 + $0x34] sm:$0xf]
        %v2834 = vld [vmem:[#allocation3 + $0x38] sm:$0xf]
        %v2835 = vld [vmem:[#allocation3 + $0x3c] sm:$0xf]
        %v2836 = vld [vmem:[#allocation3 + $0x40] sm:$0xf]
        %v2837 = vld [vmem:[#allocation3 + $0x44] sm:$0xf]
        %v2838 = vld [vmem:[#allocation3 + $0x48] sm:$0xf]
        %v2839 = vld [vmem:[#allocation3 + $0x4c] sm:$0xf]
        %v2840 = vld [vmem:[#allocation3 + $0x50] sm:$0xf]
        %v2841 = vld [vmem:[#allocation3 + $0x54] sm:$0xf]
        %v2842 = vld [vmem:[#allocation11 + $0x38] sm:$0xf]
        %v2843 = vld [vmem:[#allocation11 + $0x3c] sm:$0xf]
        %v2860 = vunpack.c.l.b16 %v2826
        %v2861 = vunpack.c.l.b16 %v2827
        %v2862 = vunpack.c.l.b16 %v2828
        %v2863 = vunpack.c.l.b16 %v2829
        %v2864 = vunpack.c.l.b16 %v2830
        %v2865 = vunpack.c.l.b16 %v2831
        %v2866 = vunpack.c.l.b16 %v2832
        %v2867 = vunpack.c.l.b16 %v2833
        %v2868 = vunpack.c.l.b16 %v2834
        %v2869 = vunpack.c.l.b16 %v2835
        %v2870 = vunpack.c.l.b16 %v2836
        %v2871 = vunpack.c.l.b16 %v2837
        %v2872 = vunpack.c.l.b16 %v2838
        %v2873 = vunpack.c.l.b16 %v2839
        %v2874 = vunpack.c.l.b16 %v2840
        %v2875 = vunpack.c.l.b16 %v2841
        %v2876 = vpack.c.b16 %v2861, %v2860
        %v2877 = vpack.c.b16 %v2863, %v2862
        %v2878 = vpack.c.b16 %v2865, %v2864
        %v2879 = vpack.c.b16 %v2867, %v2866
        %v2880 = vpack.c.b16 %v2869, %v2868
        %v2881 = vpack.c.b16 %v2871, %v2870
        %v2882 = vpack.c.b16 %v2873, %v2872
        %v2883 = vpack.c.b16 %v2875, %v2874
        %v2886 = vunpack.c.l.b16 %v2842
        %v2887 = vunpack.c.l.b16 %v2843
        %v2888 = vpack.c.b16 %v2887, %v2886
        %v2891 = vsel %vm556, %v2876, 0
        %v2894 = vsel %vm556, %v2877, 0
        %v2897 = vsel %vm556, %v2878, 0
        %v2900 = vsel %vm556, %v2879, 0
        %v2903 = vsel %vm556, %v2880, 0
        %v2906 = vsel %vm556, %v2881, 0
        %v2909 = vsel %vm556, %v2882, 0
        %v2912 = vsel %vm556, %v2883, 0
        %2914 = vmatprep.subr.bf16.mxu0 0
        %2915 = vmatpush1.bf16.msra.mxu0 %v2888
        %2916 = vmatprep.subr.bf16.mxu0 0
        %2917 = vmatpush1.bf16.msra.mxu0 0
        %2918 = vmatprep.subr.bf16.mxu0 0
        %2919 = vmatpush1.bf16.msra.mxu0 0
        %2920 = vmatprep.subr.bf16.mxu0 0
        %2921 = vmatpush1.bf16.msra.mxu0 0
        %2922 = vmatprep.subr.bf16.mxu0 0
        %2923 = vmatpush1.bf16.msra.mxu0 0
        %2924 = vmatprep.subr.bf16.mxu0 0
        %2925 = vmatpush1.bf16.msra.mxu0 0
        %2926 = vmatprep.subr.bf16.mxu0 0
        %2927 = vmatpush1.bf16.msra.mxu0 0
        %2928 = vmatprep.subr.bf16.mxu0 0
        %2929 = vmatpush1.bf16.msra.mxu0 0
        %2930 = vmatprep.subr.bf16.mxu0 0
        %2931 = vmatpush1.bf16.msra.mxu0 0
        %2932 = vmatprep.subr.bf16.mxu0 0
        %2933 = vmatpush1.bf16.msra.mxu0 0
        %2934 = vmatprep.subr.bf16.mxu0 0
        %2935 = vmatpush1.bf16.msra.mxu0 0
        %2936 = vmatprep.subr.bf16.mxu0 0
        %2937 = vmatpush1.bf16.msra.mxu0 0
        %2938 = vmatprep.subr.bf16.mxu0 0
        %2939 = vmatpush1.bf16.msra.mxu0 0
        %2940 = vmatprep.subr.bf16.mxu0 0
        %2941 = vmatpush1.bf16.msra.mxu0 0
        %2942 = vmatprep.subr.bf16.mxu0 0
        %2943 = vmatpush1.bf16.msra.mxu0 0
        %2944 = vmatprep.subr.bf16.mxu0 0
        %2945 = vmatpush1.bf16.msra.mxu0 0
        %2946 = vmatprep.mubr.bf16.mxu0 0
        %2947 = vmatmul.mubr.bf16.gmra.mrb[0].mxu0 %v2891
        %v2948 = vpop.f32.mrb[0].mxu0
        %v2949 = vadd.f32 0.0, %v2948
        %v2950 = vpop.f32.mrb[0].mxu0
        %v2951 = vpop.f32.mrb[0].mxu0
        %v2952 = vadd.f32 0.0, %v2951
        %v2953 = vpop.f32.mrb[0].mxu0
        %2954 = vmatprep.mubr.bf16.mxu0 0
        %2955 = vmatmul.mubr.bf16.gmra.mrb[0].mxu0 %v2894
        %v2956 = vpop.f32.mrb[0].mxu0
        %v2957 = vadd.f32 0.0, %v2956
        %v2958 = vpop.f32.mrb[0].mxu0
        %v2959 = vpop.f32.mrb[0].mxu0
        %v2960 = vadd.f32 0.0, %v2959
        %v2961 = vpop.f32.mrb[0].mxu0
        %2962 = vmatprep.mubr.bf16.mxu0 0
        %2963 = vmatmul.mubr.bf16.gmra.mrb[0].mxu0 %v2897
        %v2964 = vpop.f32.mrb[0].mxu0
        %v2965 = vadd.f32 0.0, %v2964
        %v2966 = vpop.f32.mrb[0].mxu0
        %v2967 = vpop.f32.mrb[0].mxu0
        %v2968 = vadd.f32 0.0, %v2967
        %v2969 = vpop.f32.mrb[0].mxu0
        %2970 = vmatprep.mubr.bf16.mxu0 0
        %2971 = vmatmul.mubr.bf16.gmra.mrb[0].mxu0 %v2900
        %v2972 = vpop.f32.mrb[0].mxu0
        %v2973 = vadd.f32 0.0, %v2972
        %v2974 = vpop.f32.mrb[0].mxu0
        %v2975 = vpop.f32.mrb[0].mxu0
        %v2976 = vadd.f32 0.0, %v2975
        %v2977 = vpop.f32.mrb[0].mxu0
        %2978 = vmatprep.mubr.bf16.mxu0 0
        %2979 = vmatmul.mubr.bf16.gmra.mrb[0].mxu0 %v2903
        %v2980 = vpop.f32.mrb[0].mxu0
        %v2981 = vadd.f32 0.0, %v2980
        %v2982 = vpop.f32.mrb[0].mxu0
        %v2983 = vpop.f32.mrb[0].mxu0
        %v2984 = vadd.f32 0.0, %v2983
        %v2985 = vpop.f32.mrb[0].mxu0
        %2986 = vmatprep.mubr.bf16.mxu0 0
        %2987 = vmatmul.mubr.bf16.gmra.mrb[0].mxu0 %v2906
        %v2988 = vpop.f32.mrb[0].mxu0
        %v2989 = vadd.f32 0.0, %v2988
        %v2990 = vpop.f32.mrb[0].mxu0
        %v2991 = vpop.f32.mrb[0].mxu0
        %v2992 = vadd.f32 0.0, %v2991
        %v2993 = vpop.f32.mrb[0].mxu0
        %2994 = vmatprep.mubr.bf16.mxu0 0
        %2995 = vmatmul.mubr.bf16.gmra.mrb[0].mxu0 %v2909
        %v2996 = vpop.f32.mrb[0].mxu0
        %v2997 = vadd.f32 0.0, %v2996
        %v2998 = vpop.f32.mrb[0].mxu0
        %v2999 = vpop.f32.mrb[0].mxu0
        %v3000 = vadd.f32 0.0, %v2999
        %v3001 = vpop.f32.mrb[0].mxu0
        %3002 = vmatprep.mubr.bf16.mxu0 0
        %3003 = vmatmul.mubr.bf16.gmra.mrb[0].mxu0 %v2912
        %v3004 = vpop.f32.mrb[0].mxu0
        %v3005 = vadd.f32 0.0, %v3004
        %v3006 = vpop.f32.mrb[0].mxu0
        %v3007 = vpop.f32.mrb[0].mxu0
        %v3008 = vadd.f32 0.0, %v3007
        %v3009 = vpop.f32.mrb[0].mxu0
        %3010 = vdwg.mxu0
        %v3011 = vld [vmem:[#allocation4] sm:$0xff]
        %v3012 = vld [vmem:[#allocation4 + $0x8] sm:$0xff]
        %v3013 = vld [vmem:[#allocation4 + $0x10] sm:$0xff]
        %v3014 = vld [vmem:[#allocation4 + $0x18] sm:$0xff]
        %v3015 = vld [vmem:[#allocation4 + $0x20] sm:$0xff]
        %v3016 = vld [vmem:[#allocation4 + $0x28] sm:$0xff]
        %v3017 = vld [vmem:[#allocation4 + $0x30] sm:$0xff]
        %v3018 = vld [vmem:[#allocation4 + $0x38] sm:$0xff]
        %v3019 = vld [vmem:[#allocation4 + $0x40] sm:$0xff]
        %v3020 = vld [vmem:[#allocation4 + $0x48] sm:$0xff]
        %v3021 = vld [vmem:[#allocation4 + $0x50] sm:$0xff]
        %v3022 = vld [vmem:[#allocation4 + $0x58] sm:$0xff]
        %v3023 = vld [vmem:[#allocation4 + $0x60] sm:$0xff]
        %v3024 = vld [vmem:[#allocation4 + $0x68] sm:$0xff]
        %v3025 = vld [vmem:[#allocation4 + $0x70] sm:$0xff]
        %v3026 = vld [vmem:[#allocation4 + $0x78] sm:$0xff]
        %v3027 = vadd.f32 %v3011, %v2949
        %v3028 = vadd.f32 %v3012, %v2952
        %v3029 = vadd.f32 %v3013, %v2957
        %v3030 = vadd.f32 %v3014, %v2960
        %v3031 = vadd.f32 %v3015, %v2965
        %v3032 = vadd.f32 %v3016, %v2968
        %v3033 = vadd.f32 %v3017, %v2973
        %v3034 = vadd.f32 %v3018, %v2976
        %v3035 = vadd.f32 %v3019, %v2981
        %v3036 = vadd.f32 %v3020, %v2984
        %v3037 = vadd.f32 %v3021, %v2989
        %v3038 = vadd.f32 %v3022, %v2992
        %v3039 = vadd.f32 %v3023, %v2997
        %v3040 = vadd.f32 %v3024, %v3000
        %v3041 = vadd.f32 %v3025, %v3005
        %v3042 = vadd.f32 %v3026, %v3008
        %3043 = vst.msk [vmem:[#allocation4] sm:$0xff] %vm556, %v3027
        %3044 = vst.msk [vmem:[#allocation4 + $0x8] sm:$0xff] %vm556, %v3028
        %3045 = vst.msk [vmem:[#allocation4 + $0x10] sm:$0xff] %vm556, %v3029
        %3046 = vst.msk [vmem:[#allocation4 + $0x18] sm:$0xff] %vm556, %v3030
        %3047 = vst.msk [vmem:[#allocation4 + $0x20] sm:$0xff] %vm556, %v3031
        %3048 = vst.msk [vmem:[#allocation4 + $0x28] sm:$0xff] %vm556, %v3032
        %3049 = vst.msk [vmem:[#allocation4 + $0x30] sm:$0xff] %vm556, %v3033
        %3050 = vst.msk [vmem:[#allocation4 + $0x38] sm:$0xff] %vm556, %v3034
        %3051 = vst.msk [vmem:[#allocation4 + $0x40] sm:$0xff] %vm556, %v3035
        %3052 = vst.msk [vmem:[#allocation4 + $0x48] sm:$0xff] %vm556, %v3036
        %3053 = vst.msk [vmem:[#allocation4 + $0x50] sm:$0xff] %vm556, %v3037
        %3054 = vst.msk [vmem:[#allocation4 + $0x58] sm:$0xff] %vm556, %v3038
        %3055 = vst.msk [vmem:[#allocation4 + $0x60] sm:$0xff] %vm556, %v3039
        %3056 = vst.msk [vmem:[#allocation4 + $0x68] sm:$0xff] %vm556, %v3040
        %3057 = vst.msk [vmem:[#allocation4 + $0x70] sm:$0xff] %vm556, %v3041
        %3058 = vst.msk [vmem:[#allocation4 + $0x78] sm:$0xff] %vm556, %v3042
        %v3059 = vld [vmem:[#allocation3 + $0x18] sm:$0xf]
        %v3060 = vld [vmem:[#allocation3 + $0x1c] sm:$0xf]
        %v3061 = vld [vmem:[#allocation3 + $0x20] sm:$0xf]
        %v3062 = vld [vmem:[#allocation3 + $0x24] sm:$0xf]
        %v3063 = vld [vmem:[#allocation3 + $0x28] sm:$0xf]
        %v3064 = vld [vmem:[#allocation3 + $0x2c] sm:$0xf]
        %v3065 = vld [vmem:[#allocation3 + $0x30] sm:$0xf]
        %v3066 = vld [vmem:[#allocation3 + $0x34] sm:$0xf]
        %v3067 = vld [vmem:[#allocation3 + $0x38] sm:$0xf]
        %v3068 = vld [vmem:[#allocation3 + $0x3c] sm:$0xf]
        %v3069 = vld [vmem:[#allocation3 + $0x40] sm:$0xf]
        %v3070 = vld [vmem:[#allocation3 + $0x44] sm:$0xf]
        %v3071 = vld [vmem:[#allocation3 + $0x48] sm:$0xf]
        %v3072 = vld [vmem:[#allocation3 + $0x4c] sm:$0xf]
        %v3073 = vld [vmem:[#allocation3 + $0x50] sm:$0xf]
        %v3074 = vld [vmem:[#allocation3 + $0x54] sm:$0xf]
        %v3075 = vld [vmem:[#allocation3 + $0x58] sm:$0x1]
        %v3076 = vld [vmem:[#allocation11 + $0x40] sm:$0xf]
        %v3077 = vld [vmem:[#allocation11 + $0x44] sm:$0xf]
        %v3095 = vunpack.c.l.b16 %v3059
        %v3096 = vunpack.c.l.b16 %v3060
        %v3097 = vunpack.c.l.b16 %v3061
        %v3098 = vunpack.c.l.b16 %v3062
        %v3099 = vunpack.c.l.b16 %v3063
        %v3100 = vunpack.c.l.b16 %v3064
        %v3101 = vunpack.c.l.b16 %v3065
        %v3102 = vunpack.c.l.b16 %v3066
        %v3103 = vunpack.c.l.b16 %v3067
        %v3104 = vunpack.c.l.b16 %v3068
        %v3105 = vunpack.c.l.b16 %v3069
        %v3106 = vunpack.c.l.b16 %v3070
        %v3107 = vunpack.c.l.b16 %v3071
        %v3108 = vunpack.c.l.b16 %v3072
        %v3109 = vunpack.c.l.b16 %v3073
        %v3110 = vunpack.c.l.b16 %v3074
        %v3111 = vunpack.c.l.b16 %v3075
        %v3112 = vpack.c.b16 %v3096, %v3095
        %v3113 = vpack.c.b16 %v3098, %v3097
        %v3114 = vpack.c.b16 %v3100, %v3099
        %v3115 = vpack.c.b16 %v3102, %v3101
        %v3116 = vpack.c.b16 %v3104, %v3103
        %v3117 = vpack.c.b16 %v3106, %v3105
        %v3118 = vpack.c.b16 %v3108, %v3107
        %v3119 = vpack.c.b16 %v3110, %v3109
        %v3120 = vpack.c.b16 %v3111, %v3111
        %v3122 = vshrl.u32 %v3112, 16
        %v3124 = vshll.u32 %v3112, 16
        %v3126 = vrot.slane %v3124, 1
        %v3127 = vor.u32 %v3122, %v3126
        %v3129 = vshll.u32 %v3113, 16
        %v3131 = vrot.slane %v3129, 1
        %v3132 = vsel %vm1410, %v3127, %v3131
        %v3133 = vshrl.u32 %v3113, 16
        %v3135 = vor.u32 %v3133, %v3131
        %v3137 = vshll.u32 %v3114, 16
        %v3139 = vrot.slane %v3137, 1
        %v3140 = vsel %vm1410, %v3135, %v3139
        %v3141 = vshrl.u32 %v3114, 16
        %v3143 = vor.u32 %v3141, %v3139
        %v3145 = vshll.u32 %v3115, 16
        %v3147 = vrot.slane %v3145, 1
        %v3148 = vsel %vm1410, %v3143, %v3147
        %v3149 = vshrl.u32 %v3115, 16
        %v3151 = vor.u32 %v3149, %v3147
        %v3153 = vshll.u32 %v3116, 16
        %v3155 = vrot.slane %v3153, 1
        %v3156 = vsel %vm1410, %v3151, %v3155
        %v3157 = vshrl.u32 %v3116, 16
        %v3159 = vor.u32 %v3157, %v3155
        %v3161 = vshll.u32 %v3117, 16
        %v3163 = vrot.slane %v3161, 1
        %v3164 = vsel %vm1410, %v3159, %v3163
        %v3165 = vshrl.u32 %v3117, 16
        %v3167 = vor.u32 %v3165, %v3163
        %v3169 = vshll.u32 %v3118, 16
        %v3171 = vrot.slane %v3169, 1
        %v3172 = vsel %vm1410, %v3167, %v3171
        %v3173 = vshrl.u32 %v3118, 16
        %v3175 = vor.u32 %v3173, %v3171
        %v3177 = vshll.u32 %v3119, 16
        %v3179 = vrot.slane %v3177, 1
        %v3180 = vsel %vm1410, %v3175, %v3179
        %v3181 = vshrl.u32 %v3119, 16
        %v3183 = vor.u32 %v3181, %v3179
        %v3185 = vshll.u32 %v3120, 16
        %v3187 = vrot.slane %v3185, 1
        %v3188 = vsel %vm1410, %v3183, %v3187
        %v3191 = vunpack.c.l.b16 %v3076
        %v3192 = vunpack.c.l.b16 %v3077
        %v3193 = vpack.c.b16 %v3192, %v3191
        %v3196 = vsel %vm556, %v3132, 0
        %v3199 = vsel %vm556, %v3140, 0
        %v3202 = vsel %vm556, %v3148, 0
        %v3205 = vsel %vm556, %v3156, 0
        %v3208 = vsel %vm556, %v3164, 0
        %v3211 = vsel %vm556, %v3172, 0
        %v3214 = vsel %vm556, %v3180, 0
        %v3217 = vsel %vm556, %v3188, 0
        %3219 = vmatprep.subr.bf16.mxu0 0
        %3220 = vmatpush1.bf16.msra.mxu0 %v3193
        %3221 = vmatprep.subr.bf16.mxu0 0
        %3222 = vmatpush1.bf16.msra.mxu0 0
        %3223 = vmatprep.subr.bf16.mxu0 0
        %3224 = vmatpush1.bf16.msra.mxu0 0
        %3225 = vmatprep.subr.bf16.mxu0 0
        %3226 = vmatpush1.bf16.msra.mxu0 0
        %3227 = vmatprep.subr.bf16.mxu0 0
        %3228 = vmatpush1.bf16.msra.mxu0 0
        %3229 = vmatprep.subr.bf16.mxu0 0
        %3230 = vmatpush1.bf16.msra.mxu0 0
        %3231 = vmatprep.subr.bf16.mxu0 0
        %3232 = vmatpush1.bf16.msra.mxu0 0
        %3233 = vmatprep.subr.bf16.mxu0 0
        %3234 = vmatpush1.bf16.msra.mxu0 0
        %3235 = vmatprep.subr.bf16.mxu0 0
        %3236 = vmatpush1.bf16.msra.mxu0 0
        %3237 = vmatprep.subr.bf16.mxu0 0
        %3238 = vmatpush1.bf16.msra.mxu0 0
        %3239 = vmatprep.subr.bf16.mxu0 0
        %3240 = vmatpush1.bf16.msra.mxu0 0
        %3241 = vmatprep.subr.bf16.mxu0 0
        %3242 = vmatpush1.bf16.msra.mxu0 0
        %3243 = vmatprep.subr.bf16.mxu0 0
        %3244 = vmatpush1.bf16.msra.mxu0 0
        %3245 = vmatprep.subr.bf16.mxu0 0
        %3246 = vmatpush1.bf16.msra.mxu0 0
        %3247 = vmatprep.subr.bf16.mxu0 0
        %3248 = vmatpush1.bf16.msra.mxu0 0
        %3249 = vmatprep.subr.bf16.mxu0 0
        %3250 = vmatpush1.bf16.msra.mxu0 0
        %3251 = vmatprep.mubr.bf16.mxu0 0
        %3252 = vmatmul.mubr.bf16.gmra.mrb[0].mxu0 %v3196
        %v3253 = vpop.f32.mrb[0].mxu0
        %v3254 = vadd.f32 0.0, %v3253
        %v3255 = vpop.f32.mrb[0].mxu0
        %v3256 = vpop.f32.mrb[0].mxu0
        %v3257 = vadd.f32 0.0, %v3256
        %v3258 = vpop.f32.mrb[0].mxu0
        %3259 = vmatprep.mubr.bf16.mxu0 0
        %3260 = vmatmul.mubr.bf16.gmra.mrb[0].mxu0 %v3199
        %v3261 = vpop.f32.mrb[0].mxu0
        %v3262 = vadd.f32 0.0, %v3261
        %v3263 = vpop.f32.mrb[0].mxu0
        %v3264 = vpop.f32.mrb[0].mxu0
        %v3265 = vadd.f32 0.0, %v3264
        %v3266 = vpop.f32.mrb[0].mxu0
        %3267 = vmatprep.mubr.bf16.mxu0 0
        %3268 = vmatmul.mubr.bf16.gmra.mrb[0].mxu0 %v3202
        %v3269 = vpop.f32.mrb[0].mxu0
        %v3270 = vadd.f32 0.0, %v3269
        %v3271 = vpop.f32.mrb[0].mxu0
        %v3272 = vpop.f32.mrb[0].mxu0
        %v3273 = vadd.f32 0.0, %v3272
        %v3274 = vpop.f32.mrb[0].mxu0
        %3275 = vmatprep.mubr.bf16.mxu0 0
        %3276 = vmatmul.mubr.bf16.gmra.mrb[0].mxu0 %v3205
        %v3277 = vpop.f32.mrb[0].mxu0
        %v3278 = vadd.f32 0.0, %v3277
        %v3279 = vpop.f32.mrb[0].mxu0
        %v3280 = vpop.f32.mrb[0].mxu0
        %v3281 = vadd.f32 0.0, %v3280
        %v3282 = vpop.f32.mrb[0].mxu0
        %3283 = vmatprep.mubr.bf16.mxu0 0
        %3284 = vmatmul.mubr.bf16.gmra.mrb[0].mxu0 %v3208
        %v3285 = vpop.f32.mrb[0].mxu0
        %v3286 = vadd.f32 0.0, %v3285
        %v3287 = vpop.f32.mrb[0].mxu0
        %v3288 = vpop.f32.mrb[0].mxu0
        %v3289 = vadd.f32 0.0, %v3288
        %v3290 = vpop.f32.mrb[0].mxu0
        %3291 = vmatprep.mubr.bf16.mxu0 0
        %3292 = vmatmul.mubr.bf16.gmra.mrb[0].mxu0 %v3211
        %v3293 = vpop.f32.mrb[0].mxu0
        %v3294 = vadd.f32 0.0, %v3293
        %v3295 = vpop.f32.mrb[0].mxu0
        %v3296 = vpop.f32.mrb[0].mxu0
        %v3297 = vadd.f32 0.0, %v3296
        %v3298 = vpop.f32.mrb[0].mxu0
        %3299 = vmatprep.mubr.bf16.mxu0 0
        %3300 = vmatmul.mubr.bf16.gmra.mrb[0].mxu0 %v3214
        %v3301 = vpop.f32.mrb[0].mxu0
        %v3302 = vadd.f32 0.0, %v3301
        %v3303 = vpop.f32.mrb[0].mxu0
        %v3304 = vpop.f32.mrb[0].mxu0
        %v3305 = vadd.f32 0.0, %v3304
        %v3306 = vpop.f32.mrb[0].mxu0
        %3307 = vmatprep.mubr.bf16.mxu0 0
        %3308 = vmatmul.mubr.bf16.gmra.mrb[0].mxu0 %v3217
        %v3309 = vpop.f32.mrb[0].mxu0
        %v3310 = vadd.f32 0.0, %v3309
        %v3311 = vpop.f32.mrb[0].mxu0
        %v3312 = vpop.f32.mrb[0].mxu0
        %v3313 = vadd.f32 0.0, %v3312
        %v3314 = vpop.f32.mrb[0].mxu0
        %3315 = vdwg.mxu0
        %v3316 = vld [vmem:[#allocation4] sm:$0xff]
        %v3317 = vld [vmem:[#allocation4 + $0x8] sm:$0xff]
        %v3318 = vld [vmem:[#allocation4 + $0x10] sm:$0xff]
        %v3319 = vld [vmem:[#allocation4 + $0x18] sm:$0xff]
        %v3320 = vld [vmem:[#allocation4 + $0x20] sm:$0xff]
        %v3321 = vld [vmem:[#allocation4 + $0x28] sm:$0xff]
        %v3322 = vld [vmem:[#allocation4 + $0x30] sm:$0xff]
        %v3323 = vld [vmem:[#allocation4 + $0x38] sm:$0xff]
        %v3324 = vld [vmem:[#allocation4 + $0x40] sm:$0xff]
        %v3325 = vld [vmem:[#allocation4 + $0x48] sm:$0xff]
        %v3326 = vld [vmem:[#allocation4 + $0x50] sm:$0xff]
        %v3327 = vld [vmem:[#allocation4 + $0x58] sm:$0xff]
        %v3328 = vld [vmem:[#allocation4 + $0x60] sm:$0xff]
        %v3329 = vld [vmem:[#allocation4 + $0x68] sm:$0xff]
        %v3330 = vld [vmem:[#allocation4 + $0x70] sm:$0xff]
        %v3331 = vld [vmem:[#allocation4 + $0x78] sm:$0xff]
        %v3332 = vadd.f32 %v3316, %v3254
        %v3333 = vadd.f32 %v3317, %v3257
        %v3334 = vadd.f32 %v3318, %v3262
        %v3335 = vadd.f32 %v3319, %v3265
        %v3336 = vadd.f32 %v3320, %v3270
        %v3337 = vadd.f32 %v3321, %v3273
        %v3338 = vadd.f32 %v3322, %v3278
        %v3339 = vadd.f32 %v3323, %v3281
        %v3340 = vadd.f32 %v3324, %v3286
        %v3341 = vadd.f32 %v3325, %v3289
        %v3342 = vadd.f32 %v3326, %v3294
        %v3343 = vadd.f32 %v3327, %v3297
        %v3344 = vadd.f32 %v3328, %v3302
        %v3345 = vadd.f32 %v3329, %v3305
        %v3346 = vadd.f32 %v3330, %v3310
        %v3347 = vadd.f32 %v3331, %v3313
        %3348 = vst.msk [vmem:[#allocation4] sm:$0xff] %vm556, %v3332
        %3349 = vst.msk [vmem:[#allocation4 + $0x8] sm:$0xff] %vm556, %v3333
        %3350 = vst.msk [vmem:[#allocation4 + $0x10] sm:$0xff] %vm556, %v3334
        %3351 = vst.msk [vmem:[#allocation4 + $0x18] sm:$0xff] %vm556, %v3335
        %3352 = vst.msk [vmem:[#allocation4 + $0x20] sm:$0xff] %vm556, %v3336
        %3353 = vst.msk [vmem:[#allocation4 + $0x28] sm:$0xff] %vm556, %v3337
        %3354 = vst.msk [vmem:[#allocation4 + $0x30] sm:$0xff] %vm556, %v3338
        %3355 = vst.msk [vmem:[#allocation4 + $0x38] sm:$0xff] %vm556, %v3339
        %3356 = vst.msk [vmem:[#allocation4 + $0x40] sm:$0xff] %vm556, %v3340
        %3357 = vst.msk [vmem:[#allocation4 + $0x48] sm:$0xff] %vm556, %v3341
        %3358 = vst.msk [vmem:[#allocation4 + $0x50] sm:$0xff] %vm556, %v3342
        %3359 = vst.msk [vmem:[#allocation4 + $0x58] sm:$0xff] %vm556, %v3343
        %3360 = vst.msk [vmem:[#allocation4 + $0x60] sm:$0xff] %vm556, %v3344
        %3361 = vst.msk [vmem:[#allocation4 + $0x68] sm:$0xff] %vm556, %v3345
        %3362 = vst.msk [vmem:[#allocation4 + $0x70] sm:$0xff] %vm556, %v3346
        %3363 = vst.msk [vmem:[#allocation4 + $0x78] sm:$0xff] %vm556, %v3347
        %v3364 = vld [vmem:[#allocation4] sm:$0xff]
        %v3365 = vld [vmem:[#allocation4 + $0x8] sm:$0xff]
        %v3366 = vld [vmem:[#allocation4 + $0x10] sm:$0xff]
        %v3367 = vld [vmem:[#allocation4 + $0x18] sm:$0xff]
        %v3368 = vld [vmem:[#allocation4 + $0x20] sm:$0xff]
        %v3369 = vld [vmem:[#allocation4 + $0x28] sm:$0xff]
        %v3370 = vld [vmem:[#allocation4 + $0x30] sm:$0xff]
        %v3371 = vld [vmem:[#allocation4 + $0x38] sm:$0xff]
        %v3372 = vld [vmem:[#allocation4 + $0x40] sm:$0xff]
        %v3373 = vld [vmem:[#allocation4 + $0x48] sm:$0xff]
        %v3374 = vld [vmem:[#allocation4 + $0x50] sm:$0xff]
        %v3375 = vld [vmem:[#allocation4 + $0x58] sm:$0xff]
        %v3376 = vld [vmem:[#allocation4 + $0x60] sm:$0xff]
        %v3377 = vld [vmem:[#allocation4 + $0x68] sm:$0xff]
        %v3378 = vld [vmem:[#allocation4 + $0x70] sm:$0xff]
        %v3379 = vld [vmem:[#allocation4 + $0x78] sm:$0xff]
        %v3380 = vld [vmem:[#allocation13] sm:$0x1]
        %v3382 = vlaneseq
        %v3383 = vshrl.u32 %v3382, 7
        %v3384 = vsub.s32 0, %v3383
        %v3385 = vrot.slane %v3380, %v3384
        %v3387 = vadd.f32 %v3364, %v3385
        %v3388 = vadd.f32 %v3365, %v3385
        %v3389 = vadd.f32 %v3366, %v3385
        %v3390 = vadd.f32 %v3367, %v3385
        %v3391 = vadd.f32 %v3368, %v3385
        %v3392 = vadd.f32 %v3369, %v3385
        %v3393 = vadd.f32 %v3370, %v3385
        %v3394 = vadd.f32 %v3371, %v3385
        %v3395 = vadd.f32 %v3372, %v3385
        %v3396 = vadd.f32 %v3373, %v3385
        %v3397 = vadd.f32 %v3374, %v3385
        %v3398 = vadd.f32 %v3375, %v3385
        %v3399 = vadd.f32 %v3376, %v3385
        %v3400 = vadd.f32 %v3377, %v3385
        %v3401 = vadd.f32 %v3378, %v3385
        %v3402 = vadd.f32 %v3379, %v3385
        %v3403 = vmax.f32 %v3387, 0.0
        %v3404 = vmax.f32 %v3388, 0.0
        %v3405 = vmax.f32 %v3389, 0.0
        %v3406 = vmax.f32 %v3390, 0.0
        %v3407 = vmax.f32 %v3391, 0.0
        %v3408 = vmax.f32 %v3392, 0.0
        %v3409 = vmax.f32 %v3393, 0.0
        %v3410 = vmax.f32 %v3394, 0.0
        %v3411 = vmax.f32 %v3395, 0.0
        %v3412 = vmax.f32 %v3396, 0.0
        %v3413 = vmax.f32 %v3397, 0.0
        %v3414 = vmax.f32 %v3398, 0.0
        %v3415 = vmax.f32 %v3399, 0.0
        %v3416 = vmax.f32 %v3400, 0.0
        %v3417 = vmax.f32 %v3401, 0.0
        %v3418 = vmax.f32 %v3402, 0.0
        %3419 = vst.msk [vmem:[#allocation4] sm:$0xff] %vm556, %v3403
        %3420 = vst.msk [vmem:[#allocation4 + $0x8] sm:$0xff] %vm556, %v3404
        %3421 = vst.msk [vmem:[#allocation4 + $0x10] sm:$0xff] %vm556, %v3405
        %3422 = vst.msk [vmem:[#allocation4 + $0x18] sm:$0xff] %vm556, %v3406
        %3423 = vst.msk [vmem:[#allocation4 + $0x20] sm:$0xff] %vm556, %v3407
        %3424 = vst.msk [vmem:[#allocation4 + $0x28] sm:$0xff] %vm556, %v3408
        %3425 = vst.msk [vmem:[#allocation4 + $0x30] sm:$0xff] %vm556, %v3409
        %3426 = vst.msk [vmem:[#allocation4 + $0x38] sm:$0xff] %vm556, %v3410
        %3427 = vst.msk [vmem:[#allocation4 + $0x40] sm:$0xff] %vm556, %v3411
        %3428 = vst.msk [vmem:[#allocation4 + $0x48] sm:$0xff] %vm556, %v3412
        %3429 = vst.msk [vmem:[#allocation4 + $0x50] sm:$0xff] %vm556, %v3413
        %3430 = vst.msk [vmem:[#allocation4 + $0x58] sm:$0xff] %vm556, %v3414
        %3431 = vst.msk [vmem:[#allocation4 + $0x60] sm:$0xff] %vm556, %v3415
        %3432 = vst.msk [vmem:[#allocation4 + $0x68] sm:$0xff] %vm556, %v3416
        %3433 = vst.msk [vmem:[#allocation4 + $0x70] sm:$0xff] %vm556, %v3417
        %3434 = vst.msk [vmem:[#allocation4 + $0x78] sm:$0xff] %vm556, %v3418
        %v3435 = vld [vmem:[#allocation4] sm:$0xff]
        %v3436 = vld [vmem:[#allocation4 + $0x8] sm:$0xff]
        %v3437 = vld [vmem:[#allocation4 + $0x10] sm:$0xff]
        %v3438 = vld [vmem:[#allocation4 + $0x18] sm:$0xff]
        %v3439 = vld [vmem:[#allocation14] sm:$0xf]
        %v3441 = vsel %vm466, %v3439, 0
        %3443 = vmatprep.subr.mxu0 0.0
        %3444 = vmatpush1.msra.mxu0 %v3435
        %3445 = vmatprep.subr.mxu0 0.0
        %3446 = vmatpush1.msra.mxu0 %v3436
        %3447 = vmatprep.subr.mxu0 0.0
        %3448 = vmatpush1.msra.mxu0 %v3437
        %3449 = vmatprep.subr.mxu0 0.0
        %3450 = vmatpush1.msra.mxu0 %v3438
        %3451 = vmatprep.subr.mxu0 0.0
        %3452 = vmatpush1.msra.mxu0 0.0
        %3453 = vmatprep.subr.mxu0 0.0
        %3454 = vmatpush1.msra.mxu0 0.0
        %3455 = vmatprep.subr.mxu0 0.0
        %3456 = vmatpush1.msra.mxu0 0.0
        %3457 = vmatprep.subr.mxu0 0.0
        %3458 = vmatpush1.msra.mxu0 0.0
        %3459 = vmatprep.subr.mxu0 0.0
        %3460 = vmatpush1.msra.mxu0 0.0
        %3461 = vmatprep.subr.mxu0 0.0
        %3462 = vmatpush1.msra.mxu0 0.0
        %3463 = vmatprep.subr.mxu0 0.0
        %3464 = vmatpush1.msra.mxu0 0.0
        %3465 = vmatprep.subr.mxu0 0.0
        %3466 = vmatpush1.msra.mxu0 0.0
        %3467 = vmatprep.subr.mxu0 0.0
        %3468 = vmatpush1.msra.mxu0 0.0
        %3469 = vmatprep.subr.mxu0 0.0
        %3470 = vmatpush1.msra.mxu0 0.0
        %3471 = vmatprep.subr.mxu0 0.0
        %3472 = vmatpush1.msra.mxu0 0.0
        %3473 = vmatprep.subr.mxu0 0.0
        %3474 = vmatpush1.msra.mxu0 0.0
        %3475 = vmatprep.subr.mxu0 0.0
        %3476 = vmatpush1.msra.mxu0 0.0
        %3477 = vmatprep.subr.mxu0 0.0
        %3478 = vmatpush1.msra.mxu0 0.0
        %3479 = vmatprep.subr.mxu0 0.0
        %3480 = vmatpush1.msra.mxu0 0.0
        %3481 = vmatprep.subr.mxu0 0.0
        %3482 = vmatpush1.msra.mxu0 0.0
        %3483 = vmatprep.subr.mxu0 0.0
        %3484 = vmatpush1.msra.mxu0 0.0
        %3485 = vmatprep.subr.mxu0 0.0
        %3486 = vmatpush1.msra.mxu0 0.0
        %3487 = vmatprep.subr.mxu0 0.0
        %3488 = vmatpush1.msra.mxu0 0.0
        %3489 = vmatprep.subr.mxu0 0.0
        %3490 = vmatpush1.msra.mxu0 0.0
        %3491 = vmatprep.subr.mxu0 0.0
        %3492 = vmatpush1.msra.mxu0 0.0
        %3493 = vmatprep.subr.mxu0 0.0
        %3494 = vmatpush1.msra.mxu0 0.0
        %3495 = vmatprep.subr.mxu0 0.0
        %3496 = vmatpush1.msra.mxu0 0.0
        %3497 = vmatprep.subr.mxu0 0.0
        %3498 = vmatpush1.msra.mxu0 0.0
        %3499 = vmatprep.subr.mxu0 0.0
        %3500 = vmatpush1.msra.mxu0 0.0
        %3501 = vmatprep.subr.mxu0 0.0
        %3502 = vmatpush1.msra.mxu0 0.0
        %3503 = vmatprep.subr.mxu0 0.0
        %3504 = vmatpush1.msra.mxu0 0.0
        %3505 = vmatprep.subr.mxu0 0.0
        %3506 = vmatpush1.msra.mxu0 0.0
        %3507 = vmatprep.mubr.f32.mxu0 0.0
        %3508 = vmatmul.mubr.f32.gmra.mrb[0].mxu0 %v3441
        %v3509 = vpop.f32.mrb[0].mxu0
        %v3510 = vadd.f32 0.0, %v3509
        %v3511 = vpop.f32.mrb[0].mxu0
        %3512 = vdwg.mxu0
        %v3513 = vpack.c.bf16 %v3510, %v3510
        %vm3514 = vcmask 123904
        %3515 = vst.msk [vmem:[%s406] sm:$0x3] %vm3514, %v3513
        %v3516 = vld [vmem:[#allocation4 + $0x20] sm:$0xff]
        %v3517 = vld [vmem:[#allocation4 + $0x28] sm:$0xff]
        %v3518 = vld [vmem:[#allocation4 + $0x30] sm:$0xff]
        %v3519 = vld [vmem:[#allocation4 + $0x38] sm:$0xff]
        %v3520 = vld [vmem:[#allocation14] sm:$0xf]
        %v3522 = vsel %vm466, %v3520, 0
        %3524 = vmatprep.subr.mxu0 0.0
        %3525 = vmatpush1.msra.mxu0 %v3516
        %3526 = vmatprep.subr.mxu0 0.0
        %3527 = vmatpush1.msra.mxu0 %v3517
        %3528 = vmatprep.subr.mxu0 0.0
        %3529 = vmatpush1.msra.mxu0 %v3518
        %3530 = vmatprep.subr.mxu0 0.0
        %3531 = vmatpush1.msra.mxu0 %v3519
        %3532 = vmatprep.subr.mxu0 0.0
        %3533 = vmatpush1.msra.mxu0 0.0
        %3534 = vmatprep.subr.mxu0 0.0
        %3535 = vmatpush1.msra.mxu0 0.0
        %3536 = vmatprep.subr.mxu0 0.0
        %3537 = vmatpush1.msra.mxu0 0.0
        %3538 = vmatprep.subr.mxu0 0.0
        %3539 = vmatpush1.msra.mxu0 0.0
        %3540 = vmatprep.subr.mxu0 0.0
        %3541 = vmatpush1.msra.mxu0 0.0
        %3542 = vmatprep.subr.mxu0 0.0
        %3543 = vmatpush1.msra.mxu0 0.0
        %3544 = vmatprep.subr.mxu0 0.0
        %3545 = vmatpush1.msra.mxu0 0.0
        %3546 = vmatprep.subr.mxu0 0.0
        %3547 = vmatpush1.msra.mxu0 0.0
        %3548 = vmatprep.subr.mxu0 0.0
        %3549 = vmatpush1.msra.mxu0 0.0
        %3550 = vmatprep.subr.mxu0 0.0
        %3551 = vmatpush1.msra.mxu0 0.0
        %3552 = vmatprep.subr.mxu0 0.0
        %3553 = vmatpush1.msra.mxu0 0.0
        %3554 = vmatprep.subr.mxu0 0.0
        %3555 = vmatpush1.msra.mxu0 0.0
        %3556 = vmatprep.subr.mxu0 0.0
        %3557 = vmatpush1.msra.mxu0 0.0
        %3558 = vmatprep.subr.mxu0 0.0
        %3559 = vmatpush1.msra.mxu0 0.0
        %3560 = vmatprep.subr.mxu0 0.0
        %3561 = vmatpush1.msra.mxu0 0.0
        %3562 = vmatprep.subr.mxu0 0.0
        %3563 = vmatpush1.msra.mxu0 0.0
        %3564 = vmatprep.subr.mxu0 0.0
        %3565 = vmatpush1.msra.mxu0 0.0
        %3566 = vmatprep.subr.mxu0 0.0
        %3567 = vmatpush1.msra.mxu0 0.0
        %3568 = vmatprep.subr.mxu0 0.0
        %3569 = vmatpush1.msra.mxu0 0.0
        %3570 = vmatprep.subr.mxu0 0.0
        %3571 = vmatpush1.msra.mxu0 0.0
        %3572 = vmatprep.subr.mxu0 0.0
        %3573 = vmatpush1.msra.mxu0 0.0
        %3574 = vmatprep.subr.mxu0 0.0
        %3575 = vmatpush1.msra.mxu0 0.0
        %3576 = vmatprep.subr.mxu0 0.0
        %3577 = vmatpush1.msra.mxu0 0.0
        %3578 = vmatprep.subr.mxu0 0.0
        %3579 = vmatpush1.msra.mxu0 0.0
        %3580 = vmatprep.subr.mxu0 0.0
        %3581 = vmatpush1.msra.mxu0 0.0
        %3582 = vmatprep.subr.mxu0 0.0
        %3583 = vmatpush1.msra.mxu0 0.0
        %3584 = vmatprep.subr.mxu0 0.0
        %3585 = vmatpush1.msra.mxu0 0.0
        %3586 = vmatprep.subr.mxu0 0.0
        %3587 = vmatpush1.msra.mxu0 0.0
        %3588 = vmatprep.mubr.f32.mxu0 0.0
        %3589 = vmatmul.mubr.f32.gmra.mrb[0].mxu0 %v3522
        %v3590 = vpop.f32.mrb[0].mxu0
        %v3591 = vadd.f32 0.0, %v3590
        %v3592 = vpop.f32.mrb[0].mxu0
        %3593 = vdwg.mxu0
        %v3594 = vpack.c.bf16 %v3591, %v3591
        %s3595 = scalar_lea.vmem %s406, 2 [#allocation17]
        %3596 = vst.msk [vmem:[%s3595] sm:$0x3] %vm3514, %v3594
        %v3597 = vld [vmem:[#allocation4 + $0x40] sm:$0xff]
        %v3598 = vld [vmem:[#allocation4 + $0x48] sm:$0xff]
        %v3599 = vld [vmem:[#allocation4 + $0x50] sm:$0xff]
        %v3600 = vld [vmem:[#allocation4 + $0x58] sm:$0xff]
        %v3601 = vld [vmem:[#allocation14] sm:$0xf]
        %v3603 = vsel %vm466, %v3601, 0
        %3605 = vmatprep.subr.mxu0 0.0
        %3606 = vmatpush1.msra.mxu0 %v3597
        %3607 = vmatprep.subr.mxu0 0.0
        %3608 = vmatpush1.msra.mxu0 %v3598
        %3609 = vmatprep.subr.mxu0 0.0
        %3610 = vmatpush1.msra.mxu0 %v3599
        %3611 = vmatprep.subr.mxu0 0.0
        %3612 = vmatpush1.msra.mxu0 %v3600
        %3613 = vmatprep.subr.mxu0 0.0
        %3614 = vmatpush1.msra.mxu0 0.0
        %3615 = vmatprep.subr.mxu0 0.0
        %3616 = vmatpush1.msra.mxu0 0.0
        %3617 = vmatprep.subr.mxu0 0.0
        %3618 = vmatpush1.msra.mxu0 0.0
        %3619 = vmatprep.subr.mxu0 0.0
        %3620 = vmatpush1.msra.mxu0 0.0
        %3621 = vmatprep.subr.mxu0 0.0
        %3622 = vmatpush1.msra.mxu0 0.0
        %3623 = vmatprep.subr.mxu0 0.0
        %3624 = vmatpush1.msra.mxu0 0.0
        %3625 = vmatprep.subr.mxu0 0.0
        %3626 = vmatpush1.msra.mxu0 0.0
        %3627 = vmatprep.subr.mxu0 0.0
        %3628 = vmatpush1.msra.mxu0 0.0
        %3629 = vmatprep.subr.mxu0 0.0
        %3630 = vmatpush1.msra.mxu0 0.0
        %3631 = vmatprep.subr.mxu0 0.0
        %3632 = vmatpush1.msra.mxu0 0.0
        %3633 = vmatprep.subr.mxu0 0.0
        %3634 = vmatpush1.msra.mxu0 0.0
        %3635 = vmatprep.subr.mxu0 0.0
        %3636 = vmatpush1.msra.mxu0 0.0
        %3637 = vmatprep.subr.mxu0 0.0
        %3638 = vmatpush1.msra.mxu0 0.0
        %3639 = vmatprep.subr.mxu0 0.0
        %3640 = vmatpush1.msra.mxu0 0.0
        %3641 = vmatprep.subr.mxu0 0.0
        %3642 = vmatpush1.msra.mxu0 0.0
        %3643 = vmatprep.subr.mxu0 0.0
        %3644 = vmatpush1.msra.mxu0 0.0
        %3645 = vmatprep.subr.mxu0 0.0
        %3646 = vmatpush1.msra.mxu0 0.0
        %3647 = vmatprep.subr.mxu0 0.0
        %3648 = vmatpush1.msra.mxu0 0.0
        %3649 = vmatprep.subr.mxu0 0.0
        %3650 = vmatpush1.msra.mxu0 0.0
        %3651 = vmatprep.subr.mxu0 0.0
        %3652 = vmatpush1.msra.mxu0 0.0
        %3653 = vmatprep.subr.mxu0 0.0
        %3654 = vmatpush1.msra.mxu0 0.0
        %3655 = vmatprep.subr.mxu0 0.0
        %3656 = vmatpush1.msra.mxu0 0.0
        %3657 = vmatprep.subr.mxu0 0.0
        %3658 = vmatpush1.msra.mxu0 0.0
        %3659 = vmatprep.subr.mxu0 0.0
        %3660 = vmatpush1.msra.mxu0 0.0
        %3661 = vmatprep.subr.mxu0 0.0
        %3662 = vmatpush1.msra.mxu0 0.0
        %3663 = vmatprep.subr.mxu0 0.0
        %3664 = vmatpush1.msra.mxu0 0.0
        %3665 = vmatprep.subr.mxu0 0.0
        %3666 = vmatpush1.msra.mxu0 0.0
        %3667 = vmatprep.subr.mxu0 0.0
        %3668 = vmatpush1.msra.mxu0 0.0
        %3669 = vmatprep.mubr.f32.mxu0 0.0
        %3670 = vmatmul.mubr.f32.gmra.mrb[0].mxu0 %v3603
        %v3671 = vpop.f32.mrb[0].mxu0
        %v3672 = vadd.f32 0.0, %v3671
        %v3673 = vpop.f32.mrb[0].mxu0
        %3674 = vdwg.mxu0
        %v3675 = vpack.c.bf16 %v3672, %v3672
        %s3676 = scalar_lea.vmem %s406, 4 [#allocation17]
        %3677 = vst.msk [vmem:[%s3676] sm:$0x3] %vm3514, %v3675
        %v3678 = vld [vmem:[#allocation4 + $0x60] sm:$0xff]
        %v3679 = vld [vmem:[#allocation4 + $0x68] sm:$0xff]
        %v3680 = vld [vmem:[#allocation4 + $0x70] sm:$0xff]
        %v3681 = vld [vmem:[#allocation4 + $0x78] sm:$0xff]
        %v3682 = vld [vmem:[#allocation14] sm:$0xf]
        %v3684 = vsel %vm466, %v3682, 0
        %3686 = vmatprep.subr.mxu0 0.0
        %3687 = vmatpush1.msra.mxu0 %v3678
        %3688 = vmatprep.subr.mxu0 0.0
        %3689 = vmatpush1.msra.mxu0 %v3679
        %3690 = vmatprep.subr.mxu0 0.0
        %3691 = vmatpush1.msra.mxu0 %v3680
        %3692 = vmatprep.subr.mxu0 0.0
        %3693 = vmatpush1.msra.mxu0 %v3681
        %3694 = vmatprep.subr.mxu0 0.0
        %3695 = vmatpush1.msra.mxu0 0.0
        %3696 = vmatprep.subr.mxu0 0.0
        %3697 = vmatpush1.msra.mxu0 0.0
        %3698 = vmatprep.subr.mxu0 0.0
        %3699 = vmatpush1.msra.mxu0 0.0
        %3700 = vmatprep.subr.mxu0 0.0
        %3701 = vmatpush1.msra.mxu0 0.0
        %3702 = vmatprep.subr.mxu0 0.0
        %3703 = vmatpush1.msra.mxu0 0.0
        %3704 = vmatprep.subr.mxu0 0.0
        %3705 = vmatpush1.msra.mxu0 0.0
        %3706 = vmatprep.subr.mxu0 0.0
        %3707 = vmatpush1.msra.mxu0 0.0
        %3708 = vmatprep.subr.mxu0 0.0
        %3709 = vmatpush1.msra.mxu0 0.0
        %3710 = vmatprep.subr.mxu0 0.0
        %3711 = vmatpush1.msra.mxu0 0.0
        %3712 = vmatprep.subr.mxu0 0.0
        %3713 = vmatpush1.msra.mxu0 0.0
        %3714 = vmatprep.subr.mxu0 0.0
        %3715 = vmatpush1.msra.mxu0 0.0
        %3716 = vmatprep.subr.mxu0 0.0
        %3717 = vmatpush1.msra.mxu0 0.0
        %3718 = vmatprep.subr.mxu0 0.0
        %3719 = vmatpush1.msra.mxu0 0.0
        %3720 = vmatprep.subr.mxu0 0.0
        %3721 = vmatpush1.msra.mxu0 0.0
        %3722 = vmatprep.subr.mxu0 0.0
        %3723 = vmatpush1.msra.mxu0 0.0
        %3724 = vmatprep.subr.mxu0 0.0
        %3725 = vmatpush1.msra.mxu0 0.0
        %3726 = vmatprep.subr.mxu0 0.0
        %3727 = vmatpush1.msra.mxu0 0.0
        %3728 = vmatprep.subr.mxu0 0.0
        %3729 = vmatpush1.msra.mxu0 0.0
        %3730 = vmatprep.subr.mxu0 0.0
        %3731 = vmatpush1.msra.mxu0 0.0
        %3732 = vmatprep.subr.mxu0 0.0
        %3733 = vmatpush1.msra.mxu0 0.0
        %3734 = vmatprep.subr.mxu0 0.0
        %3735 = vmatpush1.msra.mxu0 0.0
        %3736 = vmatprep.subr.mxu0 0.0
        %3737 = vmatpush1.msra.mxu0 0.0
        %3738 = vmatprep.subr.mxu0 0.0
        %3739 = vmatpush1.msra.mxu0 0.0
        %3740 = vmatprep.subr.mxu0 0.0
        %3741 = vmatpush1.msra.mxu0 0.0
        %3742 = vmatprep.subr.mxu0 0.0
        %3743 = vmatpush1.msra.mxu0 0.0
        %3744 = vmatprep.subr.mxu0 0.0
        %3745 = vmatpush1.msra.mxu0 0.0
        %3746 = vmatprep.subr.mxu0 0.0
        %3747 = vmatpush1.msra.mxu0 0.0
        %3748 = vmatprep.subr.mxu0 0.0
        %3749 = vmatpush1.msra.mxu0 0.0
        %3750 = vmatprep.mubr.f32.mxu0 0.0
        %3751 = vmatmul.mubr.f32.gmra.mrb[0].mxu0 %v3684
        %v3752 = vpop.f32.mrb[0].mxu0
        %v3753 = vadd.f32 0.0, %v3752
        %v3754 = vpop.f32.mrb[0].mxu0
        %3755 = vdwg.mxu0
        %v3756 = vpack.c.bf16 %v3753, %v3753
        %s3757 = scalar_lea.vmem %s406, 6 [#allocation17]
        %3758 = vst.msk [vmem:[%s3757] sm:$0x3] %vm3514, %v3756
        %s3759 = sand.u32 %s192, 1
        %s3760 = scalar_lea.sflag [#allocation7], %s3759
        %s3761 = sand.u32 %s192, 1
        %s3762 = smul.addr %s3761, 8
        %s3763 = scalar_lea.vmem [#allocation17], %s3762
        %s3764 = sand.u32 %s218, 1
        %s3765 = scalar_lea.sflag [#allocation19], %s3764
        %s3766 = sand.u32 %s218, 1
        %s3767 = smul.addr %s3766, 8
        %s3768 = scalar_lea.vmem [#allocation18], %s3767
        // Predicated region
        $region77: #{tpu_custom_call.1} parent=47 // pred_check
          %p3769 = pneg %p202
        $region78: #{tpu_custom_call.1} parent=47 // pred_check_branch
          %3771 = sbr.rel (%p3769) target = $region80
        $region79: #{tpu_custom_call.1} parent=47 // pred_region
          %s3773 = ssub.s32 128, 128
          %3774 = vsyncadd %s3760, %s3773
          %s3775 = smul.addr %s32, 4
          %s3776 = smul.addr %s3775, 32
          %s3777 = scalar_lea.hbm %s7, %s3776
          %s3778 = sshll.u32 %s3763, 4
          %s3779 = int_to_ptr.vmem [resolvable:$true] %s3778
          %3784 = dma.vmem_to_hbm [thread:$0]  %s3779, 128, %s3777, %s3760, 32, 32, 2
        $region80: #{tpu_custom_call.1} parent=47 // pred_fallthru
          _
        // Predicated region
        $region81: #{tpu_custom_call.1} parent=47 // pred_check
          %p3785 = pneg %p228
        $region82: #{tpu_custom_call.1} parent=47 // pred_check_branch
          %3787 = sbr.rel (%p3785) target = $region84
        $region83: #{tpu_custom_call.1} parent=47 // pred_region
          %s3789 = ssub.s32 128, 128
          %3790 = vsyncadd %s3765, %s3789
          %s3791 = smul.addr %s32, 4
          %s3792 = smul.addr %s3791, 32
          %s3793 = scalar_lea.hbm %s8, %s3792
          %s3794 = sshll.u32 %s3768, 4
          %s3795 = int_to_ptr.vmem [resolvable:$true] %s3794
          %3800 = dma.vmem_to_hbm [thread:$0]  %s3795, 128, %s3793, %s3765, 32, 32, 2
        $region84: #{tpu_custom_call.1} parent=47 // pred_fallthru
          _
      $region48: #{tpu_custom_call.1} parent=5 // pred_fallthru
        _
      %p3801 = scmp.le.s32.totalorder 2, %s27
      // Predicated region
      $region85: #{tpu_custom_call.1} parent=5 // pred_check
        %p3802 = pneg %p3801
      $region86: #{tpu_custom_call.1} parent=5 // pred_check_branch
        %3804 = sbr.rel (%p3802) target = $region88
      $region87: #{tpu_custom_call.1} parent=5 // pred_region
        %s3805 = ssub.s32 %s27, 2
        // Predicated region
        $region89: #{tpu_custom_call.1} parent=87 // pred_check
          %p3806 = pneg %p208
        $region90: #{tpu_custom_call.1} parent=87 // pred_check_branch
          %3808 = sbr.rel (%p3806) target = $region92
        $region91: #{tpu_custom_call.1} parent=87 // pred_region
          %s3809 = sand.u32 %s193, 1
          %s3810 = scalar_lea.sflag [#allocation7], %s3809
          %s3811 = sand.u32 %s193, 1
          %s3812 = smul.addr %s3811, 8
          %s3813 = scalar_lea.vmem [#allocation17], %s3812
          %3814 = dma.done %s3810, 128
        $region92: #{tpu_custom_call.1} parent=87 // pred_fallthru
          _
        // Predicated region
        $region93: #{tpu_custom_call.1} parent=87 // pred_check
          %p3815 = pneg %p234
        $region94: #{tpu_custom_call.1} parent=87 // pred_check_branch
          %3817 = sbr.rel (%p3815) target = $region96
        $region95: #{tpu_custom_call.1} parent=87 // pred_region
          %s3818 = sand.u32 %s219, 1
          %s3819 = scalar_lea.sflag [#allocation19], %s3818
          %s3820 = sand.u32 %s219, 1
          %s3821 = smul.addr %s3820, 8
          %s3822 = scalar_lea.vmem [#allocation18], %s3821
          %3823 = dma.done %s3819, 128
        $region96: #{tpu_custom_call.1} parent=87 // pred_fallthru
          _
      $region88: #{tpu_custom_call.1} parent=5 // pred_fallthru
        _
    $region6: #{tpu_custom_call.1} parent=1 // loop_footer
      %s31 = sadd.s32 1, %s27
    $region7: #{tpu_custom_call.1} parent=1 // loop_footer_branch
      %26 = sbr.rel target = $region3
    $region8: #{tpu_custom_call.1} parent=1 // loop_exit
      _
    %3824 = vsyncpa [#allocation6], 1
    %s3825 = scalar_lea.sflag [#allocation6], 1
    %3826 = vsyncpa %s3825, 1
    %3827 = vsyncpa [#allocation9], 1
    %3828 = vsyncpa [#allocation12], 1
    %3829 = vsyncpa [#allocation15], 1
    %3830 = vsyncpa [#allocation7], 1
    %s3831 = scalar_lea.sflag [#allocation7], 1
    %3832 = vsyncpa %s3831, 1
    %3833 = vsyncpa [#allocation19], 1
    %s3834 = scalar_lea.sflag [#allocation19], 1
    %3835 = vsyncpa %s3834, 1

</llo_original>
